<compile_context>
chip_gen: v7x
topology: tpu7x:2x2x1
jax: 0.10.0
libtpu: 0.0.40
codegen_flags: <defaults>
</compile_context>

<pallas_src>
import math

import jax
import jax.numpy as jnp
from jax.experimental import pallas as pl
from jax.experimental.pallas import tpu as pltpu


_W_PAD = 8  # left zero-pad in W: interior store lands on a sublane-aligned offset


def _recip(x):
    # EUP approximate reciprocal + one Newton refinement -> ~f32 accuracy.
    r = pl.reciprocal(x, approx=True)
    return r * (2.0 - x * r)


def _erf_approx(x):
    # Abramowitz & Stegun 7.1.26 polynomial erf (max abs err ~1.5e-7).
    p = 0.3275911
    a1, a2, a3, a4, a5 = (0.254829592, -0.284496736, 1.421413741,
                          -1.453152027, 1.061405429)
    sgn = jnp.where(x >= 0.0, 1.0, -1.0)
    ax = jnp.abs(x)
    t = _recip(1.0 + p * ax)
    poly = ((((a5 * t + a4) * t + a3) * t + a2) * t + a1) * t
    return sgn * (1.0 - poly * jnp.exp(-ax * ax))


def _gelu_exact(x):
    # matches torch.nn.GELU() (erf-based) to ~1e-6
    return 0.5 * x * (1.0 + _erf_approx(x * (1.0 / math.sqrt(2.0))))


def rgblock_kernel(x_ref, w1a_ref, w1v_ref, b1a_ref, b1v_ref,
                   dwk_ref, dwb_ref, w2_ref, b2_ref, o_ref, pad_ref):
    nb, hs, ws, cin = x_ref.shape
    hid = dwk_ref.shape[2]
    cout = w2_ref.shape[1]
    m = nb * hs * ws

    # ---- fc1: 1x1 conv == channel matmul over all Nb*H*W pixels at once.
    xm = x_ref[...].reshape(m, cin).astype(w1a_ref.dtype)
    a = jnp.dot(xm, w1a_ref[...], preferred_element_type=jnp.float32) + b1a_ref[...]
    v = jnp.dot(xm, w1v_ref[...], preferred_element_type=jnp.float32) + b1v_ref[...]
    a4 = a.reshape(nb, hs, ws, hid)

    # ---- Depthwise 3x3 conv (stride 1, pad 1) via zero-padded VMEM scratch.
    # Zero the whole (tiny) buffer with one trivial store, then write the
    # interior at a sublane-aligned W offset (unmasked store).
    pad_ref[...] = jnp.zeros_like(pad_ref)
    pad_ref[:, 1:hs + 1, _W_PAD:_W_PAD + ws, :] = a4

    dwk = dwk_ref[...]                               # (3, 3, hid) f32
    acc = jnp.zeros((nb, hs, ws, hid), jnp.float32)
    for kh in range(3):                              # statically unrolled taps
        for kw in range(3):
            tap = pad_ref[:, kh:kh + hs,
                          _W_PAD - 1 + kw:_W_PAD - 1 + kw + ws, :]
            w = dwk[kh:kh + 1, kw:kw + 1, :]         # (1, 1, hid) broadcast
            acc = acc + tap * w
    acc = acc + dwb_ref[...]                         # (1, hid) broadcasts

    # ---- act(dwconv(x) + x) * v, then fc2 (second 1x1 conv == channel matmul).
    g = (_gelu_exact(acc + a4) * v.reshape(nb, hs, ws, hid)).reshape(m, hid)
    out = (jnp.dot(g.astype(w2_ref.dtype), w2_ref[...],
                   preferred_element_type=jnp.float32) + b2_ref[...])
    o_ref[...] = out.reshape(nb, hs, ws, cout).astype(o_ref.dtype)


def _largest_divisor_at_most(n, cap):
    cap = max(1, min(n, cap))
    for d in range(cap, 0, -1):
        if n % d == 0:
            return d
    return 1


def prepare_params(w1_oihw, b1, wdw_oihw, bdw, w2_oihw, b2,
                   *, matmul_dtype=jnp.float32):
    """PyTorch-layout RGBlock params -> kernel layout (fc1 pre-split into chunks)."""
    hid = wdw_oihw.shape[0]
    w1 = jnp.transpose(w1_oihw[:, :, 0, 0], (1, 0))                      # (Cin, 2*hid)
    w1a = w1[:, :hid].astype(matmul_dtype)
    w1v = w1[:, hid:].astype(matmul_dtype)
    b1a = b1[:hid].reshape(1, hid).astype(jnp.float32)
    b1v = b1[hid:].reshape(1, hid).astype(jnp.float32)
    dwk = jnp.transpose(wdw_oihw[:, 0], (1, 2, 0)).astype(jnp.float32)   # (3,3,hid)
    dwb = bdw.reshape(1, hid).astype(jnp.float32)
    w2 = jnp.transpose(w2_oihw[:, :, 0, 0], (1, 0)).astype(matmul_dtype)  # (hid,Cout)
    b2k = b2.reshape(1, -1).astype(jnp.float32)
    return (w1a, w1v, b1a, b1v, dwk, dwb, w2, b2k)


def rgblock_forward(x_nhwc, kparams, *, block_batch=None):
    """RGBlock forward.  x_nhwc: (N, H, W, Cin) float32, channels-last."""
    w1a, w1v, b1a, b1v, dwk, dwb, w2, b2 = kparams
    n, hs, ws, cin = x_nhwc.shape
    hid = dwk.shape[2]
    cout = w2.shape[1]
    wpad = ws + _W_PAD + 1

    if block_batch is None:
        # Biggest batch-block whose working set stays well under the default
        # scoped VMEM; a large Nb*H*W amortizes per-step overhead and feeds the
        # MXU a real M tile.
        bytes_per_image = (4 * hs * ws * (2 * cin + 2 * cout + 8 * hid)
                           + 4 * (hs + 2) * wpad * hid)
        cap = max(1, (8 << 20) // max(1, bytes_per_image))
        block_batch = _largest_divisor_at_most(n, cap)
    nb = block_batch
    assert n % nb == 0, (n, nb)

    def full(arr):
        r = arr.ndim
        return pl.BlockSpec(arr.shape, lambda i, r=r: (0,) * r)

    return pl.pallas_call(
        rgblock_kernel,
        out_shape=jax.ShapeDtypeStruct((n, hs, ws, cout), jnp.float32),
        grid_spec=pltpu.PrefetchScalarGridSpec(
            num_scalar_prefetch=0,
            grid=(n // nb,),
            in_specs=[
                pl.BlockSpec((nb, hs, ws, cin), lambda i: (i, 0, 0, 0)),
                full(w1a), full(w1v), full(b1a), full(b1v),
                full(dwk), full(dwb), full(w2), full(b2),
            ],
            out_specs=pl.BlockSpec((nb, hs, ws, cout), lambda i: (i, 0, 0, 0)),
            scratch_shapes=[pltpu.VMEM((nb, hs + 2, wpad, hid), jnp.float32)],
        ),
        compiler_params=pltpu.CompilerParams(
            # Independent batch blocks -> shardable across v7x's two TensorCores.
            dimension_semantics=("parallel",)),
    )(x_nhwc.astype(jnp.float32), w1a, w1v, b1a, b1v, dwk, dwb, w2, b2)


def rgblock_reference(x_nchw, tparams):
    """Pure-JAX reference using XLA convs (PyTorch NCHW/OIHW layout)."""
    w1_oihw, b1, wdw_oihw, bdw, w2_oihw, b2 = tparams
    dn = ("NCHW", "OIHW", "NCHW")
    hid = wdw_oihw.shape[0]
    hp = jax.lax.Precision.HIGHEST
    y = jax.lax.conv_general_dilated(x_nchw, w1_oihw, (1, 1), "VALID",
                                     dimension_numbers=dn, precision=hp)
    y = y + b1[None, :, None, None]
    a, v = y[:, :hid], y[:, hid:]
    d = jax.lax.conv_general_dilated(a, wdw_oihw, (1, 1), ((1, 1), (1, 1)),
                                     dimension_numbers=dn,
                                     feature_group_count=hid, precision=hp)
    d = d + bdw[None, :, None, None]
    g = jax.nn.gelu(d + a, approximate=False) * v
    out = jax.lax.conv_general_dilated(g, w2_oihw, (1, 1), "VALID",
                                       dimension_numbers=dn, precision=hp)
    return out + b2[None, :, None, None]


if __name__ == "__main__":
    # Shapes consistent with RGBlock(in_features=12):
    #   hidden = int(2 * 12 / 3) = 8, fc1 out = 16, out_features = 12
    N, CIN, HS, WS = 2, 12, 16, 16
    HID = int(2 * CIN / 3)
    COUT = CIN

    key = jax.random.PRNGKey(0)
    k1, k2, k3, k4, k5, k6, kx = jax.random.split(key, 7)

    w1_oihw = 0.2 * jax.random.normal(k1, (2 * HID, CIN, 1, 1), jnp.float32)
    b1 = 0.1 * jax.random.normal(k2, (2 * HID,), jnp.float32)
    wdw_oihw = 0.2 * jax.random.normal(k3, (HID, 1, 3, 3), jnp.float32)
    bdw = 0.1 * jax.random.normal(k4, (HID,), jnp.float32)
    w2_oihw = 0.2 * jax.random.normal(k5, (COUT, HID, 1, 1), jnp.float32)
    b2 = 0.1 * jax.random.normal(k6, (COUT,), jnp.float32)

    # Kernel path is channels-last; NCHW exists only to feed the XLA reference.
    x_nhwc = jax.random.normal(kx, (N, HS, WS, CIN), jnp.float32)
    x_nchw = jnp.transpose(x_nhwc, (0, 3, 1, 2))

    out_ref = rgblock_reference(x_nchw, (w1_oihw, b1, wdw_oihw, bdw, w2_oihw, b2))
    out_ref_nhwc = jax.block_until_ready(jnp.transpose(out_ref, (0, 2, 3, 1)))

    # 1) Default f32 matmul path.
    p_f32 = prepare_params(w1_oihw, b1, wdw_oihw, bdw, w2_oihw, b2)
    out_f32 = jax.block_until_ready(rgblock_forward(x_nhwc, p_f32))
    assert out_f32.shape == (N, HS, WS, COUT)
    err32 = float(jnp.max(jnp.abs(out_f32 - out_ref_nhwc)))
    assert jnp.allclose(out_f32, out_ref_nhwc, atol=1e-2, rtol=1e-2), err32

    # 2) bf16-matmul path (v6e/v7x MXU peak rate, f32 accumulation).
    p_bf16 = prepare_params(w1_oihw, b1, wdw_oihw, bdw, w2_oihw, b2,
                            matmul_dtype=jnp.bfloat16)
    out_bf16 = jax.block_until_ready(rgblock_forward(x_nhwc, p_bf16))
    err16 = float(jnp.max(jnp.abs(out_bf16 - out_ref_nhwc)))
    assert jnp.allclose(out_bf16, out_ref_nhwc, atol=5e-2, rtol=5e-2), err16

    print("KERNEL_OK")
</pallas_src>

<mosaic_0001>
module attributes {stable_mosaic.version = 11 : i64} {
  func.func @rgblock_kernel(%arg0: i32, %arg1: memref<2x16x16x12xf32, #tpu.memory_space<vmem>>, %arg2: memref<12x8xf32, #tpu.memory_space<vmem>>, %arg3: memref<12x8xf32, #tpu.memory_space<vmem>>, %arg4: memref<1x8xf32, #tpu.memory_space<vmem>>, %arg5: memref<1x8xf32, #tpu.memory_space<vmem>>, %arg6: memref<3x3x8xf32, #tpu.memory_space<vmem>>, %arg7: memref<1x8xf32, #tpu.memory_space<vmem>>, %arg8: memref<8x12xf32, #tpu.memory_space<vmem>>, %arg9: memref<1x12xf32, #tpu.memory_space<vmem>>, %arg10: memref<2x16x16x12xf32, #tpu.memory_space<vmem>>, %arg11: memref<2x18x25x8xf32, #tpu.memory_space<vmem>>) attributes {dimension_semantics = [#tpu.dimension_semantics<parallel>], iteration_bounds = array<i64: 1>, scalar_prefetch = 0 : i64, scratch_operands = 1 : i64, tpu.core_type = #tpu.core_type<tc>, window_params = [{transform_indices = @transform_0, window_bounds = array<i64: 2, 16, 16, 12>}, {pipeline_mode = #tpu.pipeline_mode<synchronous>, transform_indices = @transform_1, window_bounds = array<i64: 12, 8>}, {pipeline_mode = #tpu.pipeline_mode<synchronous>, transform_indices = @transform_2, window_bounds = array<i64: 12, 8>}, {pipeline_mode = #tpu.pipeline_mode<synchronous>, transform_indices = @transform_3, window_bounds = array<i64: 1, 8>}, {pipeline_mode = #tpu.pipeline_mode<synchronous>, transform_indices = @transform_4, window_bounds = array<i64: 1, 8>}, {pipeline_mode = #tpu.pipeline_mode<synchronous>, transform_indices = @transform_5, window_bounds = array<i64: 3, 3, 8>}, {pipeline_mode = #tpu.pipeline_mode<synchronous>, transform_indices = @transform_6, window_bounds = array<i64: 1, 8>}, {pipeline_mode = #tpu.pipeline_mode<synchronous>, transform_indices = @transform_7, window_bounds = array<i64: 8, 12>}, {pipeline_mode = #tpu.pipeline_mode<synchronous>, transform_indices = @transform_8, window_bounds = array<i64: 1, 12>}, {transform_indices = @transform_9, window_bounds = array<i64: 2, 16, 16, 12>}]} {
    %c0 = arith.constant 0 : index
    %c0_0 = arith.constant 0 : index
    %c0_1 = arith.constant 0 : index
    %c0_2 = arith.constant 0 : index
    %0 = vector.load %arg1[%c0, %c0_0, %c0_1, %c0_2] : memref<2x16x16x12xf32, #tpu.memory_space<vmem>>, vector<2x16x16x12xf32>
    %1 = vector.shape_cast %0 : vector<2x16x16x12xf32> to vector<512x12xf32>
    %c0_3 = arith.constant 0 : index
    %c0_4 = arith.constant 0 : index
    %2 = vector.load %arg2[%c0_3, %c0_4] : memref<12x8xf32, #tpu.memory_space<vmem>>, vector<12x8xf32>
    %cst = arith.constant dense<0.000000e+00> : vector<512x8xf32>
    %3 = tpu.matmul %1, %2, %cst {dimension_numbers = #tpu.dot_dimension_numbers<[1], [0], [0], [1], [0, 0, 1, 1], [], []>} : vector<512x12xf32>, vector<12x8xf32>, vector<512x8xf32> -> vector<512x8xf32>
    %c0_5 = arith.constant 0 : index
    %c0_6 = arith.constant 0 : index
    %4 = vector.load %arg4[%c0_5, %c0_6] : memref<1x8xf32, #tpu.memory_space<vmem>>, vector<1x8xf32>
    %5 = vector.broadcast %4 : vector<1x8xf32> to vector<512x8xf32>
    %6 = arith.addf %3, %5 : vector<512x8xf32>
    %c0_7 = arith.constant 0 : index
    %c0_8 = arith.constant 0 : index
    %7 = vector.load %arg3[%c0_7, %c0_8] : memref<12x8xf32, #tpu.memory_space<vmem>>, vector<12x8xf32>
    %cst_9 = arith.constant dense<0.000000e+00> : vector<512x8xf32>
    %8 = tpu.matmul %1, %7, %cst_9 {dimension_numbers = #tpu.dot_dimension_numbers<[1], [0], [0], [1], [0, 0, 1, 1], [], []>} : vector<512x12xf32>, vector<12x8xf32>, vector<512x8xf32> -> vector<512x8xf32>
    %c0_10 = arith.constant 0 : index
    %c0_11 = arith.constant 0 : index
    %9 = vector.load %arg5[%c0_10, %c0_11] : memref<1x8xf32, #tpu.memory_space<vmem>>, vector<1x8xf32>
    %10 = vector.broadcast %9 : vector<1x8xf32> to vector<512x8xf32>
    %11 = arith.addf %8, %10 : vector<512x8xf32>
    %12 = vector.shape_cast %6 : vector<512x8xf32> to vector<2x16x16x8xf32>
    %cst_12 = arith.constant 0.000000e+00 : f32
    %13 = vector.broadcast %cst_12 : f32 to vector<2x18x25x8xf32>
    %c0_13 = arith.constant 0 : index
    %c0_14 = arith.constant 0 : index
    %c0_15 = arith.constant 0 : index
    %c0_16 = arith.constant 0 : index
    %14 = vector.load %arg11[%c0_13, %c0_14, %c0_15, %c0_16] : memref<2x18x25x8xf32, #tpu.memory_space<vmem>>, vector<2x18x25x8xf32>
    tpu.vector_store %arg11[%c0_13, %c0_14, %c0_15, %c0_16], %13 {strides = array<i32>} : memref<2x18x25x8xf32, #tpu.memory_space<vmem>>, vector<2x18x25x8xf32>,
    %c0_17 = arith.constant 0 : index
    %c1 = arith.constant 1 : index
    %c8 = arith.constant 8 : index
    %c0_18 = arith.constant 0 : index
    %15 = vector.load %arg11[%c0_17, %c1, %c8, %c0_18] : memref<2x18x25x8xf32, #tpu.memory_space<vmem>>, vector<2x16x16x8xf32>
    tpu.vector_store %arg11[%c0_17, %c1, %c8, %c0_18], %12 {strides = array<i32>} : memref<2x18x25x8xf32, #tpu.memory_space<vmem>>, vector<2x16x16x8xf32>,
    %c0_19 = arith.constant 0 : index
    %c0_20 = arith.constant 0 : index
    %c0_21 = arith.constant 0 : index
    %16 = vector.load %arg6[%c0_19, %c0_20, %c0_21] : memref<3x3x8xf32, #tpu.memory_space<vmem>>, vector<3x3x8xf32>
    %cst_22 = arith.constant 0.000000e+00 : f32
    %17 = vector.broadcast %cst_22 : f32 to vector<2x16x16x8xf32>
    %c0_23 = arith.constant 0 : index
    %c0_24 = arith.constant 0 : index
    %c7 = arith.constant 7 : index
    %c0_25 = arith.constant 0 : index
    %18 = vector.load %arg11[%c0_23, %c0_24, %c7, %c0_25] : memref<2x18x25x8xf32, #tpu.memory_space<vmem>>, vector<2x16x16x8xf32>
    %19 = vector.extract_strided_slice %16 {offsets = [0, 0, 0], sizes = [1, 1, 8], strides = [1, 1, 1]} : vector<3x3x8xf32> to vector<1x1x8xf32>
    %20 = vector.shape_cast %19 : vector<1x1x8xf32> to vector<1x1x1x8xf32>
    %21 = vector.broadcast %20 : vector<1x1x1x8xf32> to vector<2x16x16x8xf32>
    %22 = arith.mulf %18, %21 : vector<2x16x16x8xf32>
    %23 = arith.addf %17, %22 : vector<2x16x16x8xf32>
    %c0_26 = arith.constant 0 : index
    %c0_27 = arith.constant 0 : index
    %c8_28 = arith.constant 8 : index
    %c0_29 = arith.constant 0 : index
    %24 = vector.load %arg11[%c0_26, %c0_27, %c8_28, %c0_29] : memref<2x18x25x8xf32, #tpu.memory_space<vmem>>, vector<2x16x16x8xf32>
    %25 = vector.extract_strided_slice %16 {offsets = [0, 1, 0], sizes = [1, 1, 8], strides = [1, 1, 1]} : vector<3x3x8xf32> to vector<1x1x8xf32>
    %26 = vector.shape_cast %25 : vector<1x1x8xf32> to vector<1x1x1x8xf32>
    %27 = vector.broadcast %26 : vector<1x1x1x8xf32> to vector<2x16x16x8xf32>
    %28 = arith.mulf %24, %27 : vector<2x16x16x8xf32>
    %29 = arith.addf %23, %28 : vector<2x16x16x8xf32>
    %c0_30 = arith.constant 0 : index
    %c0_31 = arith.constant 0 : index
    %c9 = arith.constant 9 : index
    %c0_32 = arith.constant 0 : index
    %30 = vector.load %arg11[%c0_30, %c0_31, %c9, %c0_32] : memref<2x18x25x8xf32, #tpu.memory_space<vmem>>, vector<2x16x16x8xf32>
    %31 = vector.extract_strided_slice %16 {offsets = [0, 2, 0], sizes = [1, 1, 8], strides = [1, 1, 1]} : vector<3x3x8xf32> to vector<1x1x8xf32>
    %32 = vector.shape_cast %31 : vector<1x1x8xf32> to vector<1x1x1x8xf32>
    %33 = vector.broadcast %32 : vector<1x1x1x8xf32> to vector<2x16x16x8xf32>
    %34 = arith.mulf %30, %33 : vector<2x16x16x8xf32>
    %35 = arith.addf %29, %34 : vector<2x16x16x8xf32>
    %c0_33 = arith.constant 0 : index
    %c1_34 = arith.constant 1 : index
    %c7_35 = arith.constant 7 : index
    %c0_36 = arith.constant 0 : index
    %36 = vector.load %arg11[%c0_33, %c1_34, %c7_35, %c0_36] : memref<2x18x25x8xf32, #tpu.memory_space<vmem>>, vector<2x16x16x8xf32>
    %37 = vector.extract_strided_slice %16 {offsets = [1, 0, 0], sizes = [1, 1, 8], strides = [1, 1, 1]} : vector<3x3x8xf32> to vector<1x1x8xf32>
    %38 = vector.shape_cast %37 : vector<1x1x8xf32> to vector<1x1x1x8xf32>
    %39 = vector.broadcast %38 : vector<1x1x1x8xf32> to vector<2x16x16x8xf32>
    %40 = arith.mulf %36, %39 : vector<2x16x16x8xf32>
    %41 = arith.addf %35, %40 : vector<2x16x16x8xf32>
    %c0_37 = arith.constant 0 : index
    %c1_38 = arith.constant 1 : index
    %c8_39 = arith.constant 8 : index
    %c0_40 = arith.constant 0 : index
    %42 = vector.load %arg11[%c0_37, %c1_38, %c8_39, %c0_40] : memref<2x18x25x8xf32, #tpu.memory_space<vmem>>, vector<2x16x16x8xf32>
    %43 = vector.extract_strided_slice %16 {offsets = [1, 1, 0], sizes = [1, 1, 8], strides = [1, 1, 1]} : vector<3x3x8xf32> to vector<1x1x8xf32>
    %44 = vector.shape_cast %43 : vector<1x1x8xf32> to vector<1x1x1x8xf32>
    %45 = vector.broadcast %44 : vector<1x1x1x8xf32> to vector<2x16x16x8xf32>
    %46 = arith.mulf %42, %45 : vector<2x16x16x8xf32>
    %47 = arith.addf %41, %46 : vector<2x16x16x8xf32>
    %c0_41 = arith.constant 0 : index
    %c1_42 = arith.constant 1 : index
    %c9_43 = arith.constant 9 : index
    %c0_44 = arith.constant 0 : index
    %48 = vector.load %arg11[%c0_41, %c1_42, %c9_43, %c0_44] : memref<2x18x25x8xf32, #tpu.memory_space<vmem>>, vector<2x16x16x8xf32>
    %49 = vector.extract_strided_slice %16 {offsets = [1, 2, 0], sizes = [1, 1, 8], strides = [1, 1, 1]} : vector<3x3x8xf32> to vector<1x1x8xf32>
    %50 = vector.shape_cast %49 : vector<1x1x8xf32> to vector<1x1x1x8xf32>
    %51 = vector.broadcast %50 : vector<1x1x1x8xf32> to vector<2x16x16x8xf32>
    %52 = arith.mulf %48, %51 : vector<2x16x16x8xf32>
    %53 = arith.addf %47, %52 : vector<2x16x16x8xf32>
    %c0_45 = arith.constant 0 : index
    %c2 = arith.constant 2 : index
    %c7_46 = arith.constant 7 : index
    %c0_47 = arith.constant 0 : index
    %54 = vector.load %arg11[%c0_45, %c2, %c7_46, %c0_47] : memref<2x18x25x8xf32, #tpu.memory_space<vmem>>, vector<2x16x16x8xf32>
    %55 = vector.extract_strided_slice %16 {offsets = [2, 0, 0], sizes = [1, 1, 8], strides = [1, 1, 1]} : vector<3x3x8xf32> to vector<1x1x8xf32>
    %56 = vector.shape_cast %55 : vector<1x1x8xf32> to vector<1x1x1x8xf32>
    %57 = vector.broadcast %56 : vector<1x1x1x8xf32> to vector<2x16x16x8xf32>
    %58 = arith.mulf %54, %57 : vector<2x16x16x8xf32>
    %59 = arith.addf %53, %58 : vector<2x16x16x8xf32>
    %c0_48 = arith.constant 0 : index
    %c2_49 = arith.constant 2 : index
    %c8_50 = arith.constant 8 : index
    %c0_51 = arith.constant 0 : index
    %60 = vector.load %arg11[%c0_48, %c2_49, %c8_50, %c0_51] : memref<2x18x25x8xf32, #tpu.memory_space<vmem>>, vector<2x16x16x8xf32>
    %61 = vector.extract_strided_slice %16 {offsets = [2, 1, 0], sizes = [1, 1, 8], strides = [1, 1, 1]} : vector<3x3x8xf32> to vector<1x1x8xf32>
    %62 = vector.shape_cast %61 : vector<1x1x8xf32> to vector<1x1x1x8xf32>
    %63 = vector.broadcast %62 : vector<1x1x1x8xf32> to vector<2x16x16x8xf32>
    %64 = arith.mulf %60, %63 : vector<2x16x16x8xf32>
    %65 = arith.addf %59, %64 : vector<2x16x16x8xf32>
    %c0_52 = arith.constant 0 : index
    %c2_53 = arith.constant 2 : index
    %c9_54 = arith.constant 9 : index
    %c0_55 = arith.constant 0 : index
    %66 = vector.load %arg11[%c0_52, %c2_53, %c9_54, %c0_55] : memref<2x18x25x8xf32, #tpu.memory_space<vmem>>, vector<2x16x16x8xf32>
    %67 = vector.extract_strided_slice %16 {offsets = [2, 2, 0], sizes = [1, 1, 8], strides = [1, 1, 1]} : vector<3x3x8xf32> to vector<1x1x8xf32>
    %68 = vector.shape_cast %67 : vector<1x1x8xf32> to vector<1x1x1x8xf32>
    %69 = vector.broadcast %68 : vector<1x1x1x8xf32> to vector<2x16x16x8xf32>
    %70 = arith.mulf %66, %69 : vector<2x16x16x8xf32>
    %71 = arith.addf %65, %70 : vector<2x16x16x8xf32>
    %c0_56 = arith.constant 0 : index
    %c0_57 = arith.constant 0 : index
    %72 = vector.load %arg7[%c0_56, %c0_57] : memref<1x8xf32, #tpu.memory_space<vmem>>, vector<1x8xf32>
    %73 = vector.shape_cast %72 : vector<1x8xf32> to vector<1x1x1x8xf32>
    %74 = vector.broadcast %73 : vector<1x1x1x8xf32> to vector<2x16x16x8xf32>
    %75 = arith.addf %71, %74 : vector<2x16x16x8xf32>
    %76 = arith.addf %75, %12 : vector<2x16x16x8xf32>
    %cst_58 = arith.constant 5.000000e-01 : f32
    %77 = vector.broadcast %cst_58 : f32 to vector<2x16x16x8xf32>
    %78 = arith.mulf %77, %76 : vector<2x16x16x8xf32>
    %cst_59 = arith.constant 0.707106769 : f32
    %79 = vector.broadcast %cst_59 : f32 to vector<2x16x16x8xf32>
    %80 = arith.mulf %76, %79 : vector<2x16x16x8xf32>
    %cst_60 = arith.constant 0.000000e+00 : f32
    %81 = vector.broadcast %cst_60 : f32 to vector<2x16x16x8xf32>
    %82 = arith.cmpf oge, %80, %81 : vector<2x16x16x8xf32>
    %cst_61 = arith.constant 1.000000e+00 : f32
    %cst_62 = arith.constant -1.000000e+00 : f32
    %83 = vector.broadcast %cst_61 : f32 to vector<2x16x16x8xf32>
    %84 = vector.broadcast %cst_62 : f32 to vector<2x16x16x8xf32>
    %85 = arith.select %82, %83, %84 : vector<2x16x16x8xi1>, vector<2x16x16x8xf32>
    %86 = math.absf %80 : vector<2x16x16x8xf32>
    %cst_63 = arith.constant 0.327591091 : f32
    %87 = vector.broadcast %cst_63 : f32 to vector<2x16x16x8xf32>
    %88 = arith.mulf %87, %86 : vector<2x16x16x8xf32>
    %cst_64 = arith.constant 1.000000e+00 : f32
    %89 = vector.broadcast %cst_64 : f32 to vector<2x16x16x8xf32>
    %90 = arith.addf %89, %88 : vector<2x16x16x8xf32>
    %91 = tpu.reciprocal %90 {approx = true} : vector<2x16x16x8xf32> -> vector<2x16x16x8xf32>
    %92 = arith.mulf %90, %91 : vector<2x16x16x8xf32>
    %cst_65 = arith.constant 2.000000e+00 : f32
    %93 = vector.broadcast %cst_65 : f32 to vector<2x16x16x8xf32>
    %94 = arith.subf %93, %92 : vector<2x16x16x8xf32>
    %95 = arith.mulf %91, %94 : vector<2x16x16x8xf32>
    %cst_66 = arith.constant 1.06140542 : f32
    %96 = vector.broadcast %cst_66 : f32 to vector<2x16x16x8xf32>
    %97 = arith.mulf %96, %95 : vector<2x16x16x8xf32>
    %cst_67 = arith.constant -1.45315206 : f32
    %98 = vector.broadcast %cst_67 : f32 to vector<2x16x16x8xf32>
    %99 = arith.addf %97, %98 : vector<2x16x16x8xf32>
    %100 = arith.mulf %99, %95 : vector<2x16x16x8xf32>
    %cst_68 = arith.constant 1.42141378 : f32
    %101 = vector.broadcast %cst_68 : f32 to vector<2x16x16x8xf32>
    %102 = arith.addf %100, %101 : vector<2x16x16x8xf32>
    %103 = arith.mulf %102, %95 : vector<2x16x16x8xf32>
    %cst_69 = arith.constant -0.284496725 : f32
    %104 = vector.broadcast %cst_69 : f32 to vector<2x16x16x8xf32>
    %105 = arith.addf %103, %104 : vector<2x16x16x8xf32>
    %106 = arith.mulf %105, %95 : vector<2x16x16x8xf32>
    %cst_70 = arith.constant 0.254829586 : f32
    %107 = vector.broadcast %cst_70 : f32 to vector<2x16x16x8xf32>
    %108 = arith.addf %106, %107 : vector<2x16x16x8xf32>
    %109 = arith.mulf %108, %95 : vector<2x16x16x8xf32>
    %cst_71 = arith.constant 0.000000e+00 : f32
    %110 = vector.broadcast %cst_71 : f32 to vector<2x16x16x8xf32>
    %111 = arith.subf %110, %86 : vector<2x16x16x8xf32>
    %112 = arith.mulf %111, %86 : vector<2x16x16x8xf32>
    %113 = math.exp %112 : vector<2x16x16x8xf32>
    %114 = arith.mulf %109, %113 : vector<2x16x16x8xf32>
    %cst_72 = arith.constant 1.000000e+00 : f32
    %115 = vector.broadcast %cst_72 : f32 to vector<2x16x16x8xf32>
    %116 = arith.subf %115, %114 : vector<2x16x16x8xf32>
    %117 = arith.mulf %85, %116 : vector<2x16x16x8xf32>
    %cst_73 = arith.constant 1.000000e+00 : f32
    %118 = vector.broadcast %cst_73 : f32 to vector<2x16x16x8xf32>
    %119 = arith.addf %118, %117 : vector<2x16x16x8xf32>
    %120 = arith.mulf %78, %119 : vector<2x16x16x8xf32>
    %121 = vector.shape_cast %11 : vector<512x8xf32> to vector<2x16x16x8xf32>
    %122 = arith.mulf %120, %121 : vector<2x16x16x8xf32>
    %123 = vector.shape_cast %122 : vector<2x16x16x8xf32> to vector<512x8xf32>
    %c0_74 = arith.constant 0 : index
    %c0_75 = arith.constant 0 : index
    %124 = vector.load %arg8[%c0_74, %c0_75] : memref<8x12xf32, #tpu.memory_space<vmem>>, vector<8x12xf32>
    %cst_76 = arith.constant dense<0.000000e+00> : vector<512x12xf32>
    %125 = tpu.matmul %123, %124, %cst_76 {dimension_numbers = #tpu.dot_dimension_numbers<[1], [0], [0], [1], [0, 0, 1, 1], [], []>} : vector<512x8xf32>, vector<8x12xf32>, vector<512x12xf32> -> vector<512x12xf32>
    %c0_77 = arith.constant 0 : index
    %c0_78 = arith.constant 0 : index
    %126 = vector.load %arg9[%c0_77, %c0_78] : memref<1x12xf32, #tpu.memory_space<vmem>>, vector<1x12xf32>
    %127 = vector.broadcast %126 : vector<1x12xf32> to vector<512x12xf32>
    %128 = arith.addf %125, %127 : vector<512x12xf32>
    %129 = vector.shape_cast %128 : vector<512x12xf32> to vector<2x16x16x12xf32>
    %c0_79 = arith.constant 0 : index
    %c0_80 = arith.constant 0 : index
    %c0_81 = arith.constant 0 : index
    %c0_82 = arith.constant 0 : index
    %130 = vector.load %arg10[%c0_79, %c0_80, %c0_81, %c0_82] : memref<2x16x16x12xf32, #tpu.memory_space<vmem>>, vector<2x16x16x12xf32>
    tpu.vector_store %arg10[%c0_79, %c0_80, %c0_81, %c0_82], %129 {strides = array<i32>} : memref<2x16x16x12xf32, #tpu.memory_space<vmem>>, vector<2x16x16x12xf32>,
    return
  }
  func.func @transform_0(%arg0: i32) -> (i32, i32, i32, i32) {
    %c0_i32 = arith.constant 0 : i32
    %c0_i32_0 = arith.constant 0 : i32
    %c0_i32_1 = arith.constant 0 : i32
    %c0_i32_2 = arith.constant 0 : i32
    return %arg0, %c0_i32, %c0_i32_0, %c0_i32_1 : i32, i32, i32, i32
  }
  func.func @transform_1(%arg0: i32) -> (i32, i32) {
    %c0_i32 = arith.constant 0 : i32
    %c0_i32_0 = arith.constant 0 : i32
    %c0_i32_1 = arith.constant 0 : i32
    return %c0_i32, %c0_i32_0 : i32, i32
  }
  func.func @transform_2(%arg0: i32) -> (i32, i32) {
    %c0_i32 = arith.constant 0 : i32
    %c0_i32_0 = arith.constant 0 : i32
    %c0_i32_1 = arith.constant 0 : i32
    return %c0_i32, %c0_i32_0 : i32, i32
  }
  func.func @transform_3(%arg0: i32) -> (i32, i32) {
    %c0_i32 = arith.constant 0 : i32
    %c0_i32_0 = arith.constant 0 : i32
    %c0_i32_1 = arith.constant 0 : i32
    return %c0_i32, %c0_i32_0 : i32, i32
  }
  func.func @transform_4(%arg0: i32) -> (i32, i32) {
    %c0_i32 = arith.constant 0 : i32
    %c0_i32_0 = arith.constant 0 : i32
    %c0_i32_1 = arith.constant 0 : i32
    return %c0_i32, %c0_i32_0 : i32, i32
  }
  func.func @transform_5(%arg0: i32) -> (i32, i32, i32) {
    %c0_i32 = arith.constant 0 : i32
    %c0_i32_0 = arith.constant 0 : i32
    %c0_i32_1 = arith.constant 0 : i32
    %c0_i32_2 = arith.constant 0 : i32
    return %c0_i32, %c0_i32_0, %c0_i32_1 : i32, i32, i32
  }
  func.func @transform_6(%arg0: i32) -> (i32, i32) {
    %c0_i32 = arith.constant 0 : i32
    %c0_i32_0 = arith.constant 0 : i32
    %c0_i32_1 = arith.constant 0 : i32
    return %c0_i32, %c0_i32_0 : i32, i32
  }
  func.func @transform_7(%arg0: i32) -> (i32, i32) {
    %c0_i32 = arith.constant 0 : i32
    %c0_i32_0 = arith.constant 0 : i32
    %c0_i32_1 = arith.constant 0 : i32
    return %c0_i32, %c0_i32_0 : i32, i32
  }
  func.func @transform_8(%arg0: i32) -> (i32, i32) {
    %c0_i32 = arith.constant 0 : i32
    %c0_i32_0 = arith.constant 0 : i32
    %c0_i32_1 = arith.constant 0 : i32
    return %c0_i32, %c0_i32_0 : i32, i32
  }
  func.func @transform_9(%arg0: i32) -> (i32, i32, i32, i32) {
    %c0_i32 = arith.constant 0 : i32
    %c0_i32_0 = arith.constant 0 : i32
    %c0_i32_1 = arith.constant 0 : i32
    %c0_i32_2 = arith.constant 0 : i32
    return %arg0, %c0_i32, %c0_i32_0, %c0_i32_1 : i32, i32, i32, i32
  }
}

</mosaic_0001>

<llo_original>
// kernel: tpu_custom_call.1
$region0: #{tpu_custom_call.1}
  #allocation0 [shape = 'u32[]', space=smem, size = 0x4, offset = 0x4, fixed_abs, tag = 'smem constant byte address 0x4 - core index']
  #allocation1 [shape = 'u32[144,128]{1,0:T(1,128)}', space=vmem, size = 0x12000, scoped, tag = 'internal scratch']
  #allocation2 [shape = 'f32[2,18,25,8]{3,2,1,0:T(8,128)}', space=vmem, size = 0x90000, scoped, tag = 'scratch operand']
  %s0 = inlined_call_operand.vmem [shape: f32[2,16,16,12], index: 0, kind: input, shape index: {}]
  %s1 = inlined_call_operand.vmem [shape: f32[12,8], index: 1, kind: input, shape index: {}]
  %s2 = inlined_call_operand.vmem [shape: f32[12,8], index: 2, kind: input, shape index: {}]
  %s3 = inlined_call_operand.vmem [shape: f32[1,8], index: 3, kind: input, shape index: {}]
  %s4 = inlined_call_operand.vmem [shape: f32[1,8], index: 4, kind: input, shape index: {}]
  %s5 = inlined_call_operand.vmem [shape: f32[3,3,8], index: 5, kind: input, shape index: {}]
  %s6 = inlined_call_operand.vmem [shape: f32[1,8], index: 6, kind: input, shape index: {}]
  %s7 = inlined_call_operand.vmem [shape: f32[8,12], index: 7, kind: input, shape index: {}]
  %s8 = inlined_call_operand.vmem [shape: f32[1,12], index: 8, kind: input, shape index: {}]
  %s9 = inlined_call_operand.vmem [shape: f32[2,16,16,12], index: 9, kind: output, shape index: {}]
  %s10 = sld [smem:[#allocation0]]
  $region46: #{tpu_custom_call.1} parent=0
    _
  %s12 = ssub.s32 1, %s10
  %s13 = scalar_select 0, %s12, %s10
  // Predicated region
  $region2: #{tpu_custom_call.1} parent=0 // pred_check
    _
  $region3: #{tpu_custom_call.1} parent=0 // pred_check_branch
    %15 = sbr.rel (0) target = $region5
  $region4: #{tpu_custom_call.1} parent=0 // pred_region
    _
  $region5: #{tpu_custom_call.1} parent=0 // pred_fallthru
    _
  // Predicated region
  $region6: #{tpu_custom_call.1} parent=0 // pred_check
    _
  $region7: #{tpu_custom_call.1} parent=0 // pred_check_branch
    %17 = sbr.rel (0) target = $region9
  $region8: #{tpu_custom_call.1} parent=0 // pred_region
    _
  $region9: #{tpu_custom_call.1} parent=0 // pred_fallthru
    _
  // Predicated region
  $region10: #{tpu_custom_call.1} parent=0 // pred_check
    _
  $region11: #{tpu_custom_call.1} parent=0 // pred_check_branch
    %19 = sbr.rel (0) target = $region13
  $region12: #{tpu_custom_call.1} parent=0 // pred_region
    _
  $region13: #{tpu_custom_call.1} parent=0 // pred_fallthru
    _
  // Predicated region
  $region14: #{tpu_custom_call.1} parent=0 // pred_check
    _
  $region15: #{tpu_custom_call.1} parent=0 // pred_check_branch
    %21 = sbr.rel (0) target = $region17
  $region16: #{tpu_custom_call.1} parent=0 // pred_region
    _
  $region17: #{tpu_custom_call.1} parent=0 // pred_fallthru
    _
  // Predicated region
  $region18: #{tpu_custom_call.1} parent=0 // pred_check
    _
  $region19: #{tpu_custom_call.1} parent=0 // pred_check_branch
    %23 = sbr.rel (0) target = $region21
  $region20: #{tpu_custom_call.1} parent=0 // pred_region
    _
  $region21: #{tpu_custom_call.1} parent=0 // pred_fallthru
    _
  // Predicated region
  $region22: #{tpu_custom_call.1} parent=0 // pred_check
    _
  $region23: #{tpu_custom_call.1} parent=0 // pred_check_branch
    %25 = sbr.rel (0) target = $region25
  $region24: #{tpu_custom_call.1} parent=0 // pred_region
    _
  $region25: #{tpu_custom_call.1} parent=0 // pred_fallthru
    _
  // Predicated region
  $region26: #{tpu_custom_call.1} parent=0 // pred_check
    _
  $region27: #{tpu_custom_call.1} parent=0 // pred_check_branch
    %27 = sbr.rel (0) target = $region29
  $region28: #{tpu_custom_call.1} parent=0 // pred_region
    _
  $region29: #{tpu_custom_call.1} parent=0 // pred_fallthru
    _
  // Predicated region
  $region30: #{tpu_custom_call.1} parent=0 // pred_check
    _
  $region31: #{tpu_custom_call.1} parent=0 // pred_check_branch
    %29 = sbr.rel (0) target = $region33
  $region32: #{tpu_custom_call.1} parent=0 // pred_region
    _
  $region33: #{tpu_custom_call.1} parent=0 // pred_fallthru
    _
  // Predicated region
  $region34: #{tpu_custom_call.1} parent=0 // pred_check
    _
  $region35: #{tpu_custom_call.1} parent=0 // pred_check_branch
    %31 = sbr.rel (0) target = $region37
  $region36: #{tpu_custom_call.1} parent=0 // pred_region
    _
  $region37: #{tpu_custom_call.1} parent=0 // pred_fallthru
    _
  %v32 = vld [vmem:[%s0] sm:$0xff]
  %v33 = vld [vmem:[%s0 + $0x8] sm:$0xff]
  %v34 = vld [vmem:[%s0 + $0x10] sm:$0xff]
  %v35 = vld [vmem:[%s0 + $0x18] sm:$0xff]
  %v36 = vld [vmem:[%s0 + $0x20] sm:$0xff]
  %v37 = vld [vmem:[%s0 + $0x28] sm:$0xff]
  %v38 = vld [vmem:[%s0 + $0x30] sm:$0xff]
  %v39 = vld [vmem:[%s0 + $0x38] sm:$0xff]
  %v40 = vld [vmem:[%s0 + $0x40] sm:$0xff]
  %v41 = vld [vmem:[%s0 + $0x48] sm:$0xff]
  %v42 = vld [vmem:[%s0 + $0x50] sm:$0xff]
  %v43 = vld [vmem:[%s0 + $0x58] sm:$0xff]
  %v44 = vld [vmem:[%s0 + $0x60] sm:$0xff]
  %v45 = vld [vmem:[%s0 + $0x68] sm:$0xff]
  %v46 = vld [vmem:[%s0 + $0x70] sm:$0xff]
  %v47 = vld [vmem:[%s0 + $0x78] sm:$0xff]
  %v48 = vld [vmem:[%s0 + $0x80] sm:$0xff]
  %v49 = vld [vmem:[%s0 + $0x88] sm:$0xff]
  %v50 = vld [vmem:[%s0 + $0x90] sm:$0xff]
  %v51 = vld [vmem:[%s0 + $0x98] sm:$0xff]
  %v52 = vld [vmem:[%s0 + $0xa0] sm:$0xff]
  %v53 = vld [vmem:[%s0 + $0xa8] sm:$0xff]
  %v54 = vld [vmem:[%s0 + $0xb0] sm:$0xff]
  %v55 = vld [vmem:[%s0 + $0xb8] sm:$0xff]
  %v56 = vld [vmem:[%s0 + $0xc0] sm:$0xff]
  %v57 = vld [vmem:[%s0 + $0xc8] sm:$0xff]
  %v58 = vld [vmem:[%s0 + $0xd0] sm:$0xff]
  %v59 = vld [vmem:[%s0 + $0xd8] sm:$0xff]
  %v60 = vld [vmem:[%s0 + $0xe0] sm:$0xff]
  %v61 = vld [vmem:[%s0 + $0xe8] sm:$0xff]
  %v62 = vld [vmem:[%s0 + $0xf0] sm:$0xff]
  %v63 = vld [vmem:[%s0 + $0xf8] sm:$0xff]
  %v64 = vld [vmem:[%s0 + $0x100] sm:$0xff]
  %v65 = vld [vmem:[%s0 + $0x108] sm:$0xff]
  %v66 = vld [vmem:[%s0 + $0x110] sm:$0xff]
  %v67 = vld [vmem:[%s0 + $0x118] sm:$0xff]
  %v68 = vld [vmem:[%s0 + $0x120] sm:$0xff]
  %v69 = vld [vmem:[%s0 + $0x128] sm:$0xff]
  %v70 = vld [vmem:[%s0 + $0x130] sm:$0xff]
  %v71 = vld [vmem:[%s0 + $0x138] sm:$0xff]
  %v72 = vld [vmem:[%s0 + $0x140] sm:$0xff]
  %v73 = vld [vmem:[%s0 + $0x148] sm:$0xff]
  %v74 = vld [vmem:[%s0 + $0x150] sm:$0xff]
  %v75 = vld [vmem:[%s0 + $0x158] sm:$0xff]
  %v76 = vld [vmem:[%s0 + $0x160] sm:$0xff]
  %v77 = vld [vmem:[%s0 + $0x168] sm:$0xff]
  %v78 = vld [vmem:[%s0 + $0x170] sm:$0xff]
  %v79 = vld [vmem:[%s0 + $0x178] sm:$0xff]
  %v80 = vld [vmem:[%s0 + $0x180] sm:$0xff]
  %v81 = vld [vmem:[%s0 + $0x188] sm:$0xff]
  %v82 = vld [vmem:[%s0 + $0x190] sm:$0xff]
  %v83 = vld [vmem:[%s0 + $0x198] sm:$0xff]
  %v84 = vld [vmem:[%s0 + $0x1a0] sm:$0xff]
  %v85 = vld [vmem:[%s0 + $0x1a8] sm:$0xff]
  %v86 = vld [vmem:[%s0 + $0x1b0] sm:$0xff]
  %v87 = vld [vmem:[%s0 + $0x1b8] sm:$0xff]
  %v88 = vld [vmem:[%s0 + $0x1c0] sm:$0xff]
  %v89 = vld [vmem:[%s0 + $0x1c8] sm:$0xff]
  %v90 = vld [vmem:[%s0 + $0x1d0] sm:$0xff]
  %v91 = vld [vmem:[%s0 + $0x1d8] sm:$0xff]
  %v92 = vld [vmem:[%s0 + $0x1e0] sm:$0xff]
  %v93 = vld [vmem:[%s0 + $0x1e8] sm:$0xff]
  %v94 = vld [vmem:[%s0 + $0x1f0] sm:$0xff]
  %v95 = vld [vmem:[%s0 + $0x1f8] sm:$0xff]
  %v96 = vld [vmem:[%s1] sm:$0xff]
  %v97 = vld [vmem:[%s1 + $0x8] sm:$0xf]
  %v98 = vld [vmem:[%s3] sm:$0x1]
  %v100 = vlaneseq
  %v101 = vshrl.u32 %v100, 7
  %v102 = vsub.s32 0, %v101
  %v103 = vrot.slane %v98, %v102
  %vm105 = vcmask 97280
  %v107 = vsel %vm105, %v32, 0
  %v110 = vsel %vm105, %v33, 0
  %v113 = vsel %vm105, %v34, 0
  %v116 = vsel %vm105, %v35, 0
  %v119 = vsel %vm105, %v36, 0
  %v122 = vsel %vm105, %v37, 0
  %v125 = vsel %vm105, %v38, 0
  %v128 = vsel %vm105, %v39, 0
  %v131 = vsel %vm105, %v40, 0
  %v134 = vsel %vm105, %v41, 0
  %v137 = vsel %vm105, %v42, 0
  %v140 = vsel %vm105, %v43, 0
  %v143 = vsel %vm105, %v44, 0
  %v146 = vsel %vm105, %v45, 0
  %v149 = vsel %vm105, %v46, 0
  %v152 = vsel %vm105, %v47, 0
  %v155 = vsel %vm105, %v48, 0
  %v158 = vsel %vm105, %v49, 0
  %v161 = vsel %vm105, %v50, 0
  %v164 = vsel %vm105, %v51, 0
  %v167 = vsel %vm105, %v52, 0
  %v170 = vsel %vm105, %v53, 0
  %v173 = vsel %vm105, %v54, 0
  %v176 = vsel %vm105, %v55, 0
  %v179 = vsel %vm105, %v56, 0
  %v182 = vsel %vm105, %v57, 0
  %v185 = vsel %vm105, %v58, 0
  %v188 = vsel %vm105, %v59, 0
  %v191 = vsel %vm105, %v60, 0
  %v194 = vsel %vm105, %v61, 0
  %v197 = vsel %vm105, %v62, 0
  %v200 = vsel %vm105, %v63, 0
  %v203 = vsel %vm105, %v64, 0
  %v206 = vsel %vm105, %v65, 0
  %v209 = vsel %vm105, %v66, 0
  %v212 = vsel %vm105, %v67, 0
  %v215 = vsel %vm105, %v68, 0
  %v218 = vsel %vm105, %v69, 0
  %v221 = vsel %vm105, %v70, 0
  %v224 = vsel %vm105, %v71, 0
  %v227 = vsel %vm105, %v72, 0
  %v230 = vsel %vm105, %v73, 0
  %v233 = vsel %vm105, %v74, 0
  %v236 = vsel %vm105, %v75, 0
  %v239 = vsel %vm105, %v76, 0
  %v242 = vsel %vm105, %v77, 0
  %v245 = vsel %vm105, %v78, 0
  %v248 = vsel %vm105, %v79, 0
  %v251 = vsel %vm105, %v80, 0
  %v254 = vsel %vm105, %v81, 0
  %v257 = vsel %vm105, %v82, 0
  %v260 = vsel %vm105, %v83, 0
  %v263 = vsel %vm105, %v84, 0
  %v266 = vsel %vm105, %v85, 0
  %v269 = vsel %vm105, %v86, 0
  %v272 = vsel %vm105, %v87, 0
  %v275 = vsel %vm105, %v88, 0
  %v278 = vsel %vm105, %v89, 0
  %v281 = vsel %vm105, %v90, 0
  %v284 = vsel %vm105, %v91, 0
  %v287 = vsel %vm105, %v92, 0
  %v290 = vsel %vm105, %v93, 0
  %v293 = vsel %vm105, %v94, 0
  %v296 = vsel %vm105, %v95, 0
  %vm298 = vcmask 1043456
  %v300 = vsel %vm298, %v97, 0
  %302 = vmatprep.subr.mxu0 0.0
  %303 = vmatpush1.msra.mxu0 %v96
  %304 = vmatprep.subr.mxu0 0.0
  %305 = vmatpush1.msra.mxu0 %v300
  %306 = vmatprep.subr.mxu0 0.0
  %307 = vmatpush1.msra.mxu0 0.0
  %308 = vmatprep.subr.mxu0 0.0
  %309 = vmatpush1.msra.mxu0 0.0
  %310 = vmatprep.subr.mxu0 0.0
  %311 = vmatpush1.msra.mxu0 0.0
  %312 = vmatprep.subr.mxu0 0.0
  %313 = vmatpush1.msra.mxu0 0.0
  %314 = vmatprep.subr.mxu0 0.0
  %315 = vmatpush1.msra.mxu0 0.0
  %316 = vmatprep.subr.mxu0 0.0
  %317 = vmatpush1.msra.mxu0 0.0
  %318 = vmatprep.subr.mxu0 0.0
  %319 = vmatpush1.msra.mxu0 0.0
  %320 = vmatprep.subr.mxu0 0.0
  %321 = vmatpush1.msra.mxu0 0.0
  %322 = vmatprep.subr.mxu0 0.0
  %323 = vmatpush1.msra.mxu0 0.0
  %324 = vmatprep.subr.mxu0 0.0
  %325 = vmatpush1.msra.mxu0 0.0
  %326 = vmatprep.subr.mxu0 0.0
  %327 = vmatpush1.msra.mxu0 0.0
  %328 = vmatprep.subr.mxu0 0.0
  %329 = vmatpush1.msra.mxu0 0.0
  %330 = vmatprep.subr.mxu0 0.0
  %331 = vmatpush1.msra.mxu0 0.0
  %332 = vmatprep.subr.mxu0 0.0
  %333 = vmatpush1.msra.mxu0 0.0
  %334 = vmatprep.subr.mxu0 0.0
  %335 = vmatpush1.msra.mxu0 0.0
  %336 = vmatprep.subr.mxu0 0.0
  %337 = vmatpush1.msra.mxu0 0.0
  %338 = vmatprep.subr.mxu0 0.0
  %339 = vmatpush1.msra.mxu0 0.0
  %340 = vmatprep.subr.mxu0 0.0
  %341 = vmatpush1.msra.mxu0 0.0
  %342 = vmatprep.subr.mxu0 0.0
  %343 = vmatpush1.msra.mxu0 0.0
  %344 = vmatprep.subr.mxu0 0.0
  %345 = vmatpush1.msra.mxu0 0.0
  %346 = vmatprep.subr.mxu0 0.0
  %347 = vmatpush1.msra.mxu0 0.0
  %348 = vmatprep.subr.mxu0 0.0
  %349 = vmatpush1.msra.mxu0 0.0
  %350 = vmatprep.subr.mxu0 0.0
  %351 = vmatpush1.msra.mxu0 0.0
  %352 = vmatprep.subr.mxu0 0.0
  %353 = vmatpush1.msra.mxu0 0.0
  %354 = vmatprep.subr.mxu0 0.0
  %355 = vmatpush1.msra.mxu0 0.0
  %356 = vmatprep.subr.mxu0 0.0
  %357 = vmatpush1.msra.mxu0 0.0
  %358 = vmatprep.subr.mxu0 0.0
  %359 = vmatpush1.msra.mxu0 0.0
  %360 = vmatprep.subr.mxu0 0.0
  %361 = vmatpush1.msra.mxu0 0.0
  %362 = vmatprep.subr.mxu0 0.0
  %363 = vmatpush1.msra.mxu0 0.0
  %364 = vmatprep.subr.mxu0 0.0
  %365 = vmatpush1.msra.mxu0 0.0
  %366 = vmatprep.mubr.f32.mxu0 0.0
  %367 = vmatmul.mubr.f32.gmra.mrb[0].mxu0 %v107
  %v368 = vpop.f32.mrb[0].mxu0
  %v369 = vadd.f32 %v103, %v368
  %v370 = vpop.f32.mrb[0].mxu0
  %371 = vmatprep.mubr.f32.mxu0 0.0
  %372 = vmatmul.mubr.f32.gmra.mrb[0].mxu0 %v110
  %v373 = vpop.f32.mrb[0].mxu0
  %v374 = vadd.f32 %v103, %v373
  %v375 = vpop.f32.mrb[0].mxu0
  %376 = vmatprep.mubr.f32.mxu0 0.0
  %377 = vmatmul.mubr.f32.gmra.mrb[0].mxu0 %v113
  %v378 = vpop.f32.mrb[0].mxu0
  %v379 = vadd.f32 %v103, %v378
  %v380 = vpop.f32.mrb[0].mxu0
  %381 = vmatprep.mubr.f32.mxu0 0.0
  %382 = vmatmul.mubr.f32.gmra.mrb[0].mxu0 %v116
  %v383 = vpop.f32.mrb[0].mxu0
  %v384 = vadd.f32 %v103, %v383
  %v385 = vpop.f32.mrb[0].mxu0
  %386 = vmatprep.mubr.f32.mxu0 0.0
  %387 = vmatmul.mubr.f32.gmra.mrb[0].mxu0 %v119
  %v388 = vpop.f32.mrb[0].mxu0
  %v389 = vadd.f32 %v103, %v388
  %v390 = vpop.f32.mrb[0].mxu0
  %391 = vmatprep.mubr.f32.mxu0 0.0
  %392 = vmatmul.mubr.f32.gmra.mrb[0].mxu0 %v122
  %v393 = vpop.f32.mrb[0].mxu0
  %v394 = vadd.f32 %v103, %v393
  %v395 = vpop.f32.mrb[0].mxu0
  %396 = vmatprep.mubr.f32.mxu0 0.0
  %397 = vmatmul.mubr.f32.gmra.mrb[0].mxu0 %v125
  %v398 = vpop.f32.mrb[0].mxu0
  %v399 = vadd.f32 %v103, %v398
  %v400 = vpop.f32.mrb[0].mxu0
  %401 = vmatprep.mubr.f32.mxu0 0.0
  %402 = vmatmul.mubr.f32.gmra.mrb[0].mxu0 %v128
  %v403 = vpop.f32.mrb[0].mxu0
  %v404 = vadd.f32 %v103, %v403
  %v405 = vpop.f32.mrb[0].mxu0
  %406 = vmatprep.mubr.f32.mxu0 0.0
  %407 = vmatmul.mubr.f32.gmra.mrb[0].mxu0 %v131
  %v408 = vpop.f32.mrb[0].mxu0
  %v409 = vadd.f32 %v103, %v408
  %v410 = vpop.f32.mrb[0].mxu0
  %411 = vmatprep.mubr.f32.mxu0 0.0
  %412 = vmatmul.mubr.f32.gmra.mrb[0].mxu0 %v134
  %v413 = vpop.f32.mrb[0].mxu0
  %v414 = vadd.f32 %v103, %v413
  %v415 = vpop.f32.mrb[0].mxu0
  %416 = vmatprep.mubr.f32.mxu0 0.0
  %417 = vmatmul.mubr.f32.gmra.mrb[0].mxu0 %v137
  %v418 = vpop.f32.mrb[0].mxu0
  %v419 = vadd.f32 %v103, %v418
  %v420 = vpop.f32.mrb[0].mxu0
  %421 = vmatprep.mubr.f32.mxu0 0.0
  %422 = vmatmul.mubr.f32.gmra.mrb[0].mxu0 %v140
  %v423 = vpop.f32.mrb[0].mxu0
  %v424 = vadd.f32 %v103, %v423
  %v425 = vpop.f32.mrb[0].mxu0
  %426 = vmatprep.mubr.f32.mxu0 0.0
  %427 = vmatmul.mubr.f32.gmra.mrb[0].mxu0 %v143
  %v428 = vpop.f32.mrb[0].mxu0
  %v429 = vadd.f32 %v103, %v428
  %v430 = vpop.f32.mrb[0].mxu0
  %431 = vmatprep.mubr.f32.mxu0 0.0
  %432 = vmatmul.mubr.f32.gmra.mrb[0].mxu0 %v146
  %v433 = vpop.f32.mrb[0].mxu0
  %v434 = vadd.f32 %v103, %v433
  %v435 = vpop.f32.mrb[0].mxu0
  %436 = vmatprep.mubr.f32.mxu0 0.0
  %437 = vmatmul.mubr.f32.gmra.mrb[0].mxu0 %v149
  %v438 = vpop.f32.mrb[0].mxu0
  %v439 = vadd.f32 %v103, %v438
  %v440 = vpop.f32.mrb[0].mxu0
  %441 = vmatprep.mubr.f32.mxu0 0.0
  %442 = vmatmul.mubr.f32.gmra.mrb[0].mxu0 %v152
  %v443 = vpop.f32.mrb[0].mxu0
  %v444 = vadd.f32 %v103, %v443
  %v445 = vpop.f32.mrb[0].mxu0
  %446 = vmatprep.mubr.f32.mxu0 0.0
  %447 = vmatmul.mubr.f32.gmra.mrb[0].mxu0 %v155
  %v448 = vpop.f32.mrb[0].mxu0
  %v449 = vadd.f32 %v103, %v448
  %v450 = vpop.f32.mrb[0].mxu0
  %451 = vmatprep.mubr.f32.mxu0 0.0
  %452 = vmatmul.mubr.f32.gmra.mrb[0].mxu0 %v158
  %v453 = vpop.f32.mrb[0].mxu0
  %v454 = vadd.f32 %v103, %v453
  %v455 = vpop.f32.mrb[0].mxu0
  %456 = vmatprep.mubr.f32.mxu0 0.0
  %457 = vmatmul.mubr.f32.gmra.mrb[0].mxu0 %v161
  %v458 = vpop.f32.mrb[0].mxu0
  %v459 = vadd.f32 %v103, %v458
  %v460 = vpop.f32.mrb[0].mxu0
  %461 = vmatprep.mubr.f32.mxu0 0.0
  %462 = vmatmul.mubr.f32.gmra.mrb[0].mxu0 %v164
  %v463 = vpop.f32.mrb[0].mxu0
  %v464 = vadd.f32 %v103, %v463
  %v465 = vpop.f32.mrb[0].mxu0
  %466 = vmatprep.mubr.f32.mxu0 0.0
  %467 = vmatmul.mubr.f32.gmra.mrb[0].mxu0 %v167
  %v468 = vpop.f32.mrb[0].mxu0
  %v469 = vadd.f32 %v103, %v468
  %v470 = vpop.f32.mrb[0].mxu0
  %471 = vmatprep.mubr.f32.mxu0 0.0
  %472 = vmatmul.mubr.f32.gmra.mrb[0].mxu0 %v170
  %v473 = vpop.f32.mrb[0].mxu0
  %v474 = vadd.f32 %v103, %v473
  %v475 = vpop.f32.mrb[0].mxu0
  %476 = vmatprep.mubr.f32.mxu0 0.0
  %477 = vmatmul.mubr.f32.gmra.mrb[0].mxu0 %v173
  %v478 = vpop.f32.mrb[0].mxu0
  %v479 = vadd.f32 %v103, %v478
  %v480 = vpop.f32.mrb[0].mxu0
  %481 = vmatprep.mubr.f32.mxu0 0.0
  %482 = vmatmul.mubr.f32.gmra.mrb[0].mxu0 %v176
  %v483 = vpop.f32.mrb[0].mxu0
  %v484 = vadd.f32 %v103, %v483
  %v485 = vpop.f32.mrb[0].mxu0
  %486 = vmatprep.mubr.f32.mxu0 0.0
  %487 = vmatmul.mubr.f32.gmra.mrb[0].mxu0 %v179
  %v488 = vpop.f32.mrb[0].mxu0
  %v489 = vadd.f32 %v103, %v488
  %v490 = vpop.f32.mrb[0].mxu0
  %491 = vmatprep.mubr.f32.mxu0 0.0
  %492 = vmatmul.mubr.f32.gmra.mrb[0].mxu0 %v182
  %v493 = vpop.f32.mrb[0].mxu0
  %v494 = vadd.f32 %v103, %v493
  %v495 = vpop.f32.mrb[0].mxu0
  %496 = vmatprep.mubr.f32.mxu0 0.0
  %497 = vmatmul.mubr.f32.gmra.mrb[0].mxu0 %v185
  %v498 = vpop.f32.mrb[0].mxu0
  %v499 = vadd.f32 %v103, %v498
  %v500 = vpop.f32.mrb[0].mxu0
  %501 = vmatprep.mubr.f32.mxu0 0.0
  %502 = vmatmul.mubr.f32.gmra.mrb[0].mxu0 %v188
  %v503 = vpop.f32.mrb[0].mxu0
  %v504 = vadd.f32 %v103, %v503
  %v505 = vpop.f32.mrb[0].mxu0
  %506 = vmatprep.mubr.f32.mxu0 0.0
  %507 = vmatmul.mubr.f32.gmra.mrb[0].mxu0 %v191
  %v508 = vpop.f32.mrb[0].mxu0
  %v509 = vadd.f32 %v103, %v508
  %v510 = vpop.f32.mrb[0].mxu0
  %511 = vmatprep.mubr.f32.mxu0 0.0
  %512 = vmatmul.mubr.f32.gmra.mrb[0].mxu0 %v194
  %v513 = vpop.f32.mrb[0].mxu0
  %v514 = vadd.f32 %v103, %v513
  %v515 = vpop.f32.mrb[0].mxu0
  %516 = vmatprep.mubr.f32.mxu0 0.0
  %517 = vmatmul.mubr.f32.gmra.mrb[0].mxu0 %v197
  %v518 = vpop.f32.mrb[0].mxu0
  %v519 = vadd.f32 %v103, %v518
  %v520 = vpop.f32.mrb[0].mxu0
  %521 = vmatprep.mubr.f32.mxu0 0.0
  %522 = vmatmul.mubr.f32.gmra.mrb[0].mxu0 %v200
  %v523 = vpop.f32.mrb[0].mxu0
  %v524 = vadd.f32 %v103, %v523
  %v525 = vpop.f32.mrb[0].mxu0
  %526 = vmatprep.mubr.f32.mxu0 0.0
  %527 = vmatmul.mubr.f32.gmra.mrb[0].mxu0 %v203
  %v528 = vpop.f32.mrb[0].mxu0
  %v529 = vadd.f32 %v103, %v528
  %v530 = vpop.f32.mrb[0].mxu0
  %531 = vmatprep.mubr.f32.mxu0 0.0
  %532 = vmatmul.mubr.f32.gmra.mrb[0].mxu0 %v206
  %v533 = vpop.f32.mrb[0].mxu0
  %v534 = vadd.f32 %v103, %v533
  %v535 = vpop.f32.mrb[0].mxu0
  %536 = vmatprep.mubr.f32.mxu0 0.0
  %537 = vmatmul.mubr.f32.gmra.mrb[0].mxu0 %v209
  %v538 = vpop.f32.mrb[0].mxu0
  %v539 = vadd.f32 %v103, %v538
  %v540 = vpop.f32.mrb[0].mxu0
  %541 = vmatprep.mubr.f32.mxu0 0.0
  %542 = vmatmul.mubr.f32.gmra.mrb[0].mxu0 %v212
  %v543 = vpop.f32.mrb[0].mxu0
  %v544 = vadd.f32 %v103, %v543
  %v545 = vpop.f32.mrb[0].mxu0
  %546 = vmatprep.mubr.f32.mxu0 0.0
  %547 = vmatmul.mubr.f32.gmra.mrb[0].mxu0 %v215
  %v548 = vpop.f32.mrb[0].mxu0
  %v549 = vadd.f32 %v103, %v548
  %v550 = vpop.f32.mrb[0].mxu0
  %551 = vmatprep.mubr.f32.mxu0 0.0
  %552 = vmatmul.mubr.f32.gmra.mrb[0].mxu0 %v218
  %v553 = vpop.f32.mrb[0].mxu0
  %v554 = vadd.f32 %v103, %v553
  %v555 = vpop.f32.mrb[0].mxu0
  %556 = vmatprep.mubr.f32.mxu0 0.0
  %557 = vmatmul.mubr.f32.gmra.mrb[0].mxu0 %v221
  %v558 = vpop.f32.mrb[0].mxu0
  %v559 = vadd.f32 %v103, %v558
  %v560 = vpop.f32.mrb[0].mxu0
  %561 = vmatprep.mubr.f32.mxu0 0.0
  %562 = vmatmul.mubr.f32.gmra.mrb[0].mxu0 %v224
  %v563 = vpop.f32.mrb[0].mxu0
  %v564 = vadd.f32 %v103, %v563
  %v565 = vpop.f32.mrb[0].mxu0
  %566 = vmatprep.mubr.f32.mxu0 0.0
  %567 = vmatmul.mubr.f32.gmra.mrb[0].mxu0 %v227
  %v568 = vpop.f32.mrb[0].mxu0
  %v569 = vadd.f32 %v103, %v568
  %v570 = vpop.f32.mrb[0].mxu0
  %571 = vmatprep.mubr.f32.mxu0 0.0
  %572 = vmatmul.mubr.f32.gmra.mrb[0].mxu0 %v230
  %v573 = vpop.f32.mrb[0].mxu0
  %v574 = vadd.f32 %v103, %v573
  %v575 = vpop.f32.mrb[0].mxu0
  %576 = vmatprep.mubr.f32.mxu0 0.0
  %577 = vmatmul.mubr.f32.gmra.mrb[0].mxu0 %v233
  %v578 = vpop.f32.mrb[0].mxu0
  %v579 = vadd.f32 %v103, %v578
  %v580 = vpop.f32.mrb[0].mxu0
  %581 = vmatprep.mubr.f32.mxu0 0.0
  %582 = vmatmul.mubr.f32.gmra.mrb[0].mxu0 %v236
  %v583 = vpop.f32.mrb[0].mxu0
  %v584 = vadd.f32 %v103, %v583
  %v585 = vpop.f32.mrb[0].mxu0
  %586 = vmatprep.mubr.f32.mxu0 0.0
  %587 = vmatmul.mubr.f32.gmra.mrb[0].mxu0 %v239
  %v588 = vpop.f32.mrb[0].mxu0
  %v589 = vadd.f32 %v103, %v588
  %v590 = vpop.f32.mrb[0].mxu0
  %591 = vmatprep.mubr.f32.mxu0 0.0
  %592 = vmatmul.mubr.f32.gmra.mrb[0].mxu0 %v242
  %v593 = vpop.f32.mrb[0].mxu0
  %v594 = vadd.f32 %v103, %v593
  %v595 = vpop.f32.mrb[0].mxu0
  %596 = vmatprep.mubr.f32.mxu0 0.0
  %597 = vmatmul.mubr.f32.gmra.mrb[0].mxu0 %v245
  %v598 = vpop.f32.mrb[0].mxu0
  %v599 = vadd.f32 %v103, %v598
  %v600 = vpop.f32.mrb[0].mxu0
  %601 = vmatprep.mubr.f32.mxu0 0.0
  %602 = vmatmul.mubr.f32.gmra.mrb[0].mxu0 %v248
  %v603 = vpop.f32.mrb[0].mxu0
  %v604 = vadd.f32 %v103, %v603
  %v605 = vpop.f32.mrb[0].mxu0
  %606 = vmatprep.mubr.f32.mxu0 0.0
  %607 = vmatmul.mubr.f32.gmra.mrb[0].mxu0 %v251
  %v608 = vpop.f32.mrb[0].mxu0
  %v609 = vadd.f32 %v103, %v608
  %v610 = vpop.f32.mrb[0].mxu0
  %611 = vmatprep.mubr.f32.mxu0 0.0
  %612 = vmatmul.mubr.f32.gmra.mrb[0].mxu0 %v254
  %v613 = vpop.f32.mrb[0].mxu0
  %v614 = vadd.f32 %v103, %v613
  %v615 = vpop.f32.mrb[0].mxu0
  %616 = vmatprep.mubr.f32.mxu0 0.0
  %617 = vmatmul.mubr.f32.gmra.mrb[0].mxu0 %v257
  %v618 = vpop.f32.mrb[0].mxu0
  %v619 = vadd.f32 %v103, %v618
  %v620 = vpop.f32.mrb[0].mxu0
  %621 = vmatprep.mubr.f32.mxu0 0.0
  %622 = vmatmul.mubr.f32.gmra.mrb[0].mxu0 %v260
  %v623 = vpop.f32.mrb[0].mxu0
  %v624 = vadd.f32 %v103, %v623
  %v625 = vpop.f32.mrb[0].mxu0
  %626 = vmatprep.mubr.f32.mxu0 0.0
  %627 = vmatmul.mubr.f32.gmra.mrb[0].mxu0 %v263
  %v628 = vpop.f32.mrb[0].mxu0
  %v629 = vadd.f32 %v103, %v628
  %v630 = vpop.f32.mrb[0].mxu0
  %631 = vmatprep.mubr.f32.mxu0 0.0
  %632 = vmatmul.mubr.f32.gmra.mrb[0].mxu0 %v266
  %v633 = vpop.f32.mrb[0].mxu0
  %v634 = vadd.f32 %v103, %v633
  %v635 = vpop.f32.mrb[0].mxu0
  %636 = vmatprep.mubr.f32.mxu0 0.0
  %637 = vmatmul.mubr.f32.gmra.mrb[0].mxu0 %v269
  %v638 = vpop.f32.mrb[0].mxu0
  %v639 = vadd.f32 %v103, %v638
  %v640 = vpop.f32.mrb[0].mxu0
  %641 = vmatprep.mubr.f32.mxu0 0.0
  %642 = vmatmul.mubr.f32.gmra.mrb[0].mxu0 %v272
  %v643 = vpop.f32.mrb[0].mxu0
  %v644 = vadd.f32 %v103, %v643
  %v645 = vpop.f32.mrb[0].mxu0
  %646 = vmatprep.mubr.f32.mxu0 0.0
  %647 = vmatmul.mubr.f32.gmra.mrb[0].mxu0 %v275
  %v648 = vpop.f32.mrb[0].mxu0
  %v649 = vadd.f32 %v103, %v648
  %v650 = vpop.f32.mrb[0].mxu0
  %651 = vmatprep.mubr.f32.mxu0 0.0
  %652 = vmatmul.mubr.f32.gmra.mrb[0].mxu0 %v278
  %v653 = vpop.f32.mrb[0].mxu0
  %v654 = vadd.f32 %v103, %v653
  %v655 = vpop.f32.mrb[0].mxu0
  %656 = vmatprep.mubr.f32.mxu0 0.0
  %657 = vmatmul.mubr.f32.gmra.mrb[0].mxu0 %v281
  %v658 = vpop.f32.mrb[0].mxu0
  %v659 = vadd.f32 %v103, %v658
  %v660 = vpop.f32.mrb[0].mxu0
  %661 = vmatprep.mubr.f32.mxu0 0.0
  %662 = vmatmul.mubr.f32.gmra.mrb[0].mxu0 %v284
  %v663 = vpop.f32.mrb[0].mxu0
  %v664 = vadd.f32 %v103, %v663
  %v665 = vpop.f32.mrb[0].mxu0
  %666 = vmatprep.mubr.f32.mxu0 0.0
  %667 = vmatmul.mubr.f32.gmra.mrb[0].mxu0 %v287
  %v668 = vpop.f32.mrb[0].mxu0
  %v669 = vadd.f32 %v103, %v668
  %v670 = vpop.f32.mrb[0].mxu0
  %671 = vmatprep.mubr.f32.mxu0 0.0
  %672 = vmatmul.mubr.f32.gmra.mrb[0].mxu0 %v290
  %v673 = vpop.f32.mrb[0].mxu0
  %v674 = vadd.f32 %v103, %v673
  %v675 = vpop.f32.mrb[0].mxu0
  %676 = vmatprep.mubr.f32.mxu0 0.0
  %677 = vmatmul.mubr.f32.gmra.mrb[0].mxu0 %v293
  %v678 = vpop.f32.mrb[0].mxu0
  %v679 = vadd.f32 %v103, %v678
  %v680 = vpop.f32.mrb[0].mxu0
  %681 = vmatprep.mubr.f32.mxu0 0.0
  %682 = vmatmul.mubr.f32.gmra.mrb[0].mxu0 %v296
  %v683 = vpop.f32.mrb[0].mxu0
  %v684 = vadd.f32 %v103, %v683
  %v685 = vpop.f32.mrb[0].mxu0
  %686 = vdwg.mxu0
  %v687 = vld [vmem:[%s2] sm:$0xff]
  %v688 = vld [vmem:[%s2 + $0x8] sm:$0xf]
  %v689 = vld [vmem:[%s4] sm:$0x1]
  %v691 = vlaneseq
  %v692 = vshrl.u32 %v691, 7
  %v693 = vsub.s32 0, %v692
  %v694 = vrot.slane %v689, %v693
  %v697 = vsel %vm298, %v688, 0
  %699 = vmatprep.subr.mxu0 0.0
  %700 = vmatpush1.msra.mxu0 %v687
  %701 = vmatprep.subr.mxu0 0.0
  %702 = vmatpush1.msra.mxu0 %v697
  %703 = vmatprep.subr.mxu0 0.0
  %704 = vmatpush1.msra.mxu0 0.0
  %705 = vmatprep.subr.mxu0 0.0
  %706 = vmatpush1.msra.mxu0 0.0
  %707 = vmatprep.subr.mxu0 0.0
  %708 = vmatpush1.msra.mxu0 0.0
  %709 = vmatprep.subr.mxu0 0.0
  %710 = vmatpush1.msra.mxu0 0.0
  %711 = vmatprep.subr.mxu0 0.0
  %712 = vmatpush1.msra.mxu0 0.0
  %713 = vmatprep.subr.mxu0 0.0
  %714 = vmatpush1.msra.mxu0 0.0
  %715 = vmatprep.subr.mxu0 0.0
  %716 = vmatpush1.msra.mxu0 0.0
  %717 = vmatprep.subr.mxu0 0.0
  %718 = vmatpush1.msra.mxu0 0.0
  %719 = vmatprep.subr.mxu0 0.0
  %720 = vmatpush1.msra.mxu0 0.0
  %721 = vmatprep.subr.mxu0 0.0
  %722 = vmatpush1.msra.mxu0 0.0
  %723 = vmatprep.subr.mxu0 0.0
  %724 = vmatpush1.msra.mxu0 0.0
  %725 = vmatprep.subr.mxu0 0.0
  %726 = vmatpush1.msra.mxu0 0.0
  %727 = vmatprep.subr.mxu0 0.0
  %728 = vmatpush1.msra.mxu0 0.0
  %729 = vmatprep.subr.mxu0 0.0
  %730 = vmatpush1.msra.mxu0 0.0
  %731 = vmatprep.subr.mxu0 0.0
  %732 = vmatpush1.msra.mxu0 0.0
  %733 = vmatprep.subr.mxu0 0.0
  %734 = vmatpush1.msra.mxu0 0.0
  %735 = vmatprep.subr.mxu0 0.0
  %736 = vmatpush1.msra.mxu0 0.0
  %737 = vmatprep.subr.mxu0 0.0
  %738 = vmatpush1.msra.mxu0 0.0
  %739 = vmatprep.subr.mxu0 0.0
  %740 = vmatpush1.msra.mxu0 0.0
  %741 = vmatprep.subr.mxu0 0.0
  %742 = vmatpush1.msra.mxu0 0.0
  %743 = vmatprep.subr.mxu0 0.0
  %744 = vmatpush1.msra.mxu0 0.0
  %745 = vmatprep.subr.mxu0 0.0
  %746 = vmatpush1.msra.mxu0 0.0
  %747 = vmatprep.subr.mxu0 0.0
  %748 = vmatpush1.msra.mxu0 0.0
  %749 = vmatprep.subr.mxu0 0.0
  %750 = vmatpush1.msra.mxu0 0.0
  %751 = vmatprep.subr.mxu0 0.0
  %752 = vmatpush1.msra.mxu0 0.0
  %753 = vmatprep.subr.mxu0 0.0
  %754 = vmatpush1.msra.mxu0 0.0
  %755 = vmatprep.subr.mxu0 0.0
  %756 = vmatpush1.msra.mxu0 0.0
  %757 = vmatprep.subr.mxu0 0.0
  %758 = vmatpush1.msra.mxu0 0.0
  %759 = vmatprep.subr.mxu0 0.0
  %760 = vmatpush1.msra.mxu0 0.0
  %761 = vmatprep.subr.mxu0 0.0
  %762 = vmatpush1.msra.mxu0 0.0
  %763 = vmatprep.mubr.f32.mxu0 0.0
  %764 = vmatmul.mubr.f32.gmra.mrb[0].mxu0 %v107
  %v765 = vpop.f32.mrb[0].mxu0
  %v766 = vadd.f32 %v694, %v765
  %v767 = vpop.f32.mrb[0].mxu0
  %768 = vmatprep.mubr.f32.mxu0 0.0
  %769 = vmatmul.mubr.f32.gmra.mrb[0].mxu0 %v110
  %v770 = vpop.f32.mrb[0].mxu0
  %v771 = vadd.f32 %v694, %v770
  %v772 = vpop.f32.mrb[0].mxu0
  %773 = vmatprep.mubr.f32.mxu0 0.0
  %774 = vmatmul.mubr.f32.gmra.mrb[0].mxu0 %v113
  %v775 = vpop.f32.mrb[0].mxu0
  %v776 = vadd.f32 %v694, %v775
  %v777 = vpop.f32.mrb[0].mxu0
  %778 = vmatprep.mubr.f32.mxu0 0.0
  %779 = vmatmul.mubr.f32.gmra.mrb[0].mxu0 %v116
  %v780 = vpop.f32.mrb[0].mxu0
  %v781 = vadd.f32 %v694, %v780
  %v782 = vpop.f32.mrb[0].mxu0
  %783 = vmatprep.mubr.f32.mxu0 0.0
  %784 = vmatmul.mubr.f32.gmra.mrb[0].mxu0 %v119
  %v785 = vpop.f32.mrb[0].mxu0
  %v786 = vadd.f32 %v694, %v785
  %v787 = vpop.f32.mrb[0].mxu0
  %788 = vmatprep.mubr.f32.mxu0 0.0
  %789 = vmatmul.mubr.f32.gmra.mrb[0].mxu0 %v122
  %v790 = vpop.f32.mrb[0].mxu0
  %v791 = vadd.f32 %v694, %v790
  %v792 = vpop.f32.mrb[0].mxu0
  %793 = vmatprep.mubr.f32.mxu0 0.0
  %794 = vmatmul.mubr.f32.gmra.mrb[0].mxu0 %v125
  %v795 = vpop.f32.mrb[0].mxu0
  %v796 = vadd.f32 %v694, %v795
  %v797 = vpop.f32.mrb[0].mxu0
  %798 = vmatprep.mubr.f32.mxu0 0.0
  %799 = vmatmul.mubr.f32.gmra.mrb[0].mxu0 %v128
  %v800 = vpop.f32.mrb[0].mxu0
  %v801 = vadd.f32 %v694, %v800
  %v802 = vpop.f32.mrb[0].mxu0
  %803 = vmatprep.mubr.f32.mxu0 0.0
  %804 = vmatmul.mubr.f32.gmra.mrb[0].mxu0 %v131
  %v805 = vpop.f32.mrb[0].mxu0
  %v806 = vadd.f32 %v694, %v805
  %v807 = vpop.f32.mrb[0].mxu0
  %808 = vmatprep.mubr.f32.mxu0 0.0
  %809 = vmatmul.mubr.f32.gmra.mrb[0].mxu0 %v134
  %v810 = vpop.f32.mrb[0].mxu0
  %v811 = vadd.f32 %v694, %v810
  %v812 = vpop.f32.mrb[0].mxu0
  %813 = vmatprep.mubr.f32.mxu0 0.0
  %814 = vmatmul.mubr.f32.gmra.mrb[0].mxu0 %v137
  %v815 = vpop.f32.mrb[0].mxu0
  %v816 = vadd.f32 %v694, %v815
  %v817 = vpop.f32.mrb[0].mxu0
  %818 = vmatprep.mubr.f32.mxu0 0.0
  %819 = vmatmul.mubr.f32.gmra.mrb[0].mxu0 %v140
  %v820 = vpop.f32.mrb[0].mxu0
  %v821 = vadd.f32 %v694, %v820
  %v822 = vpop.f32.mrb[0].mxu0
  %823 = vmatprep.mubr.f32.mxu0 0.0
  %824 = vmatmul.mubr.f32.gmra.mrb[0].mxu0 %v143
  %v825 = vpop.f32.mrb[0].mxu0
  %v826 = vadd.f32 %v694, %v825
  %v827 = vpop.f32.mrb[0].mxu0
  %828 = vmatprep.mubr.f32.mxu0 0.0
  %829 = vmatmul.mubr.f32.gmra.mrb[0].mxu0 %v146
  %v830 = vpop.f32.mrb[0].mxu0
  %v831 = vadd.f32 %v694, %v830
  %v832 = vpop.f32.mrb[0].mxu0
  %833 = vmatprep.mubr.f32.mxu0 0.0
  %834 = vmatmul.mubr.f32.gmra.mrb[0].mxu0 %v149
  %v835 = vpop.f32.mrb[0].mxu0
  %v836 = vadd.f32 %v694, %v835
  %v837 = vpop.f32.mrb[0].mxu0
  %838 = vmatprep.mubr.f32.mxu0 0.0
  %839 = vmatmul.mubr.f32.gmra.mrb[0].mxu0 %v152
  %v840 = vpop.f32.mrb[0].mxu0
  %v841 = vadd.f32 %v694, %v840
  %v842 = vpop.f32.mrb[0].mxu0
  %843 = vmatprep.mubr.f32.mxu0 0.0
  %844 = vmatmul.mubr.f32.gmra.mrb[0].mxu0 %v155
  %v845 = vpop.f32.mrb[0].mxu0
  %v846 = vadd.f32 %v694, %v845
  %v847 = vpop.f32.mrb[0].mxu0
  %848 = vmatprep.mubr.f32.mxu0 0.0
  %849 = vmatmul.mubr.f32.gmra.mrb[0].mxu0 %v158
  %v850 = vpop.f32.mrb[0].mxu0
  %v851 = vadd.f32 %v694, %v850
  %v852 = vpop.f32.mrb[0].mxu0
  %853 = vmatprep.mubr.f32.mxu0 0.0
  %854 = vmatmul.mubr.f32.gmra.mrb[0].mxu0 %v161
  %v855 = vpop.f32.mrb[0].mxu0
  %v856 = vadd.f32 %v694, %v855
  %v857 = vpop.f32.mrb[0].mxu0
  %858 = vmatprep.mubr.f32.mxu0 0.0
  %859 = vmatmul.mubr.f32.gmra.mrb[0].mxu0 %v164
  %v860 = vpop.f32.mrb[0].mxu0
  %v861 = vadd.f32 %v694, %v860
  %v862 = vpop.f32.mrb[0].mxu0
  %863 = vmatprep.mubr.f32.mxu0 0.0
  %864 = vmatmul.mubr.f32.gmra.mrb[0].mxu0 %v167
  %v865 = vpop.f32.mrb[0].mxu0
  %v866 = vadd.f32 %v694, %v865
  %v867 = vpop.f32.mrb[0].mxu0
  %868 = vmatprep.mubr.f32.mxu0 0.0
  %869 = vmatmul.mubr.f32.gmra.mrb[0].mxu0 %v170
  %v870 = vpop.f32.mrb[0].mxu0
  %v871 = vadd.f32 %v694, %v870
  %v872 = vpop.f32.mrb[0].mxu0
  %873 = vmatprep.mubr.f32.mxu0 0.0
  %874 = vmatmul.mubr.f32.gmra.mrb[0].mxu0 %v173
  %v875 = vpop.f32.mrb[0].mxu0
  %v876 = vadd.f32 %v694, %v875
  %v877 = vpop.f32.mrb[0].mxu0
  %878 = vmatprep.mubr.f32.mxu0 0.0
  %879 = vmatmul.mubr.f32.gmra.mrb[0].mxu0 %v176
  %v880 = vpop.f32.mrb[0].mxu0
  %v881 = vadd.f32 %v694, %v880
  %v882 = vpop.f32.mrb[0].mxu0
  %883 = vmatprep.mubr.f32.mxu0 0.0
  %884 = vmatmul.mubr.f32.gmra.mrb[0].mxu0 %v179
  %v885 = vpop.f32.mrb[0].mxu0
  %v886 = vadd.f32 %v694, %v885
  %v887 = vpop.f32.mrb[0].mxu0
  %888 = vmatprep.mubr.f32.mxu0 0.0
  %889 = vmatmul.mubr.f32.gmra.mrb[0].mxu0 %v182
  %v890 = vpop.f32.mrb[0].mxu0
  %v891 = vadd.f32 %v694, %v890
  %v892 = vpop.f32.mrb[0].mxu0
  %893 = vmatprep.mubr.f32.mxu0 0.0
  %894 = vmatmul.mubr.f32.gmra.mrb[0].mxu0 %v185
  %v895 = vpop.f32.mrb[0].mxu0
  %v896 = vadd.f32 %v694, %v895
  %v897 = vpop.f32.mrb[0].mxu0
  %898 = vmatprep.mubr.f32.mxu0 0.0
  %899 = vmatmul.mubr.f32.gmra.mrb[0].mxu0 %v188
  %v900 = vpop.f32.mrb[0].mxu0
  %v901 = vadd.f32 %v694, %v900
  %v902 = vpop.f32.mrb[0].mxu0
  %903 = vmatprep.mubr.f32.mxu0 0.0
  %904 = vmatmul.mubr.f32.gmra.mrb[0].mxu0 %v191
  %v905 = vpop.f32.mrb[0].mxu0
  %v906 = vadd.f32 %v694, %v905
  %v907 = vpop.f32.mrb[0].mxu0
  %908 = vmatprep.mubr.f32.mxu0 0.0
  %909 = vmatmul.mubr.f32.gmra.mrb[0].mxu0 %v194
  %v910 = vpop.f32.mrb[0].mxu0
  %v911 = vadd.f32 %v694, %v910
  %v912 = vpop.f32.mrb[0].mxu0
  %913 = vmatprep.mubr.f32.mxu0 0.0
  %914 = vmatmul.mubr.f32.gmra.mrb[0].mxu0 %v197
  %v915 = vpop.f32.mrb[0].mxu0
  %v916 = vadd.f32 %v694, %v915
  %v917 = vpop.f32.mrb[0].mxu0
  %918 = vmatprep.mubr.f32.mxu0 0.0
  %919 = vmatmul.mubr.f32.gmra.mrb[0].mxu0 %v200
  %v920 = vpop.f32.mrb[0].mxu0
  %v921 = vadd.f32 %v694, %v920
  %v922 = vpop.f32.mrb[0].mxu0
  %923 = vmatprep.mubr.f32.mxu0 0.0
  %924 = vmatmul.mubr.f32.gmra.mrb[0].mxu0 %v203
  %v925 = vpop.f32.mrb[0].mxu0
  %v926 = vadd.f32 %v694, %v925
  %v927 = vpop.f32.mrb[0].mxu0
  %928 = vmatprep.mubr.f32.mxu0 0.0
  %929 = vmatmul.mubr.f32.gmra.mrb[0].mxu0 %v206
  %v930 = vpop.f32.mrb[0].mxu0
  %v931 = vadd.f32 %v694, %v930
  %v932 = vpop.f32.mrb[0].mxu0
  %933 = vmatprep.mubr.f32.mxu0 0.0
  %934 = vmatmul.mubr.f32.gmra.mrb[0].mxu0 %v209
  %v935 = vpop.f32.mrb[0].mxu0
  %v936 = vadd.f32 %v694, %v935
  %v937 = vpop.f32.mrb[0].mxu0
  %938 = vmatprep.mubr.f32.mxu0 0.0
  %939 = vmatmul.mubr.f32.gmra.mrb[0].mxu0 %v212
  %v940 = vpop.f32.mrb[0].mxu0
  %v941 = vadd.f32 %v694, %v940
  %v942 = vpop.f32.mrb[0].mxu0
  %943 = vmatprep.mubr.f32.mxu0 0.0
  %944 = vmatmul.mubr.f32.gmra.mrb[0].mxu0 %v215
  %v945 = vpop.f32.mrb[0].mxu0
  %v946 = vadd.f32 %v694, %v945
  %v947 = vpop.f32.mrb[0].mxu0
  %948 = vmatprep.mubr.f32.mxu0 0.0
  %949 = vmatmul.mubr.f32.gmra.mrb[0].mxu0 %v218
  %v950 = vpop.f32.mrb[0].mxu0
  %v951 = vadd.f32 %v694, %v950
  %v952 = vpop.f32.mrb[0].mxu0
  %953 = vmatprep.mubr.f32.mxu0 0.0
  %954 = vmatmul.mubr.f32.gmra.mrb[0].mxu0 %v221
  %v955 = vpop.f32.mrb[0].mxu0
  %v956 = vadd.f32 %v694, %v955
  %v957 = vpop.f32.mrb[0].mxu0
  %958 = vmatprep.mubr.f32.mxu0 0.0
  %959 = vmatmul.mubr.f32.gmra.mrb[0].mxu0 %v224
  %v960 = vpop.f32.mrb[0].mxu0
  %v961 = vadd.f32 %v694, %v960
  %v962 = vpop.f32.mrb[0].mxu0
  %963 = vmatprep.mubr.f32.mxu0 0.0
  %964 = vmatmul.mubr.f32.gmra.mrb[0].mxu0 %v227
  %v965 = vpop.f32.mrb[0].mxu0
  %v966 = vadd.f32 %v694, %v965
  %v967 = vpop.f32.mrb[0].mxu0
  %968 = vmatprep.mubr.f32.mxu0 0.0
  %969 = vmatmul.mubr.f32.gmra.mrb[0].mxu0 %v230
  %v970 = vpop.f32.mrb[0].mxu0
  %v971 = vadd.f32 %v694, %v970
  %v972 = vpop.f32.mrb[0].mxu0
  %973 = vmatprep.mubr.f32.mxu0 0.0
  %974 = vmatmul.mubr.f32.gmra.mrb[0].mxu0 %v233
  %v975 = vpop.f32.mrb[0].mxu0
  %v976 = vadd.f32 %v694, %v975
  %v977 = vpop.f32.mrb[0].mxu0
  %978 = vmatprep.mubr.f32.mxu0 0.0
  %979 = vmatmul.mubr.f32.gmra.mrb[0].mxu0 %v236
  %v980 = vpop.f32.mrb[0].mxu0
  %v981 = vadd.f32 %v694, %v980
  %v982 = vpop.f32.mrb[0].mxu0
  %983 = vmatprep.mubr.f32.mxu0 0.0
  %984 = vmatmul.mubr.f32.gmra.mrb[0].mxu0 %v239
  %v985 = vpop.f32.mrb[0].mxu0
  %v986 = vadd.f32 %v694, %v985
  %v987 = vpop.f32.mrb[0].mxu0
  %988 = vmatprep.mubr.f32.mxu0 0.0
  %989 = vmatmul.mubr.f32.gmra.mrb[0].mxu0 %v242
  %v990 = vpop.f32.mrb[0].mxu0
  %v991 = vadd.f32 %v694, %v990
  %v992 = vpop.f32.mrb[0].mxu0
  %993 = vmatprep.mubr.f32.mxu0 0.0
  %994 = vmatmul.mubr.f32.gmra.mrb[0].mxu0 %v245
  %v995 = vpop.f32.mrb[0].mxu0
  %v996 = vadd.f32 %v694, %v995
  %v997 = vpop.f32.mrb[0].mxu0
  %998 = vmatprep.mubr.f32.mxu0 0.0
  %999 = vmatmul.mubr.f32.gmra.mrb[0].mxu0 %v248
  %v1000 = vpop.f32.mrb[0].mxu0
  %v1001 = vadd.f32 %v694, %v1000
  %v1002 = vpop.f32.mrb[0].mxu0
  %1003 = vmatprep.mubr.f32.mxu0 0.0
  %1004 = vmatmul.mubr.f32.gmra.mrb[0].mxu0 %v251
  %v1005 = vpop.f32.mrb[0].mxu0
  %v1006 = vadd.f32 %v694, %v1005
  %v1007 = vpop.f32.mrb[0].mxu0
  %1008 = vmatprep.mubr.f32.mxu0 0.0
  %1009 = vmatmul.mubr.f32.gmra.mrb[0].mxu0 %v254
  %v1010 = vpop.f32.mrb[0].mxu0
  %v1011 = vadd.f32 %v694, %v1010
  %v1012 = vpop.f32.mrb[0].mxu0
  %1013 = vmatprep.mubr.f32.mxu0 0.0
  %1014 = vmatmul.mubr.f32.gmra.mrb[0].mxu0 %v257
  %v1015 = vpop.f32.mrb[0].mxu0
  %v1016 = vadd.f32 %v694, %v1015
  %v1017 = vpop.f32.mrb[0].mxu0
  %1018 = vmatprep.mubr.f32.mxu0 0.0
  %1019 = vmatmul.mubr.f32.gmra.mrb[0].mxu0 %v260
  %v1020 = vpop.f32.mrb[0].mxu0
  %v1021 = vadd.f32 %v694, %v1020
  %v1022 = vpop.f32.mrb[0].mxu0
  %1023 = vmatprep.mubr.f32.mxu0 0.0
  %1024 = vmatmul.mubr.f32.gmra.mrb[0].mxu0 %v263
  %v1025 = vpop.f32.mrb[0].mxu0
  %v1026 = vadd.f32 %v694, %v1025
  %v1027 = vpop.f32.mrb[0].mxu0
  %1028 = vmatprep.mubr.f32.mxu0 0.0
  %1029 = vmatmul.mubr.f32.gmra.mrb[0].mxu0 %v266
  %v1030 = vpop.f32.mrb[0].mxu0
  %v1031 = vadd.f32 %v694, %v1030
  %v1032 = vpop.f32.mrb[0].mxu0
  %1033 = vmatprep.mubr.f32.mxu0 0.0
  %1034 = vmatmul.mubr.f32.gmra.mrb[0].mxu0 %v269
  %v1035 = vpop.f32.mrb[0].mxu0
  %v1036 = vadd.f32 %v694, %v1035
  %v1037 = vpop.f32.mrb[0].mxu0
  %1038 = vmatprep.mubr.f32.mxu0 0.0
  %1039 = vmatmul.mubr.f32.gmra.mrb[0].mxu0 %v272
  %v1040 = vpop.f32.mrb[0].mxu0
  %v1041 = vadd.f32 %v694, %v1040
  %v1042 = vpop.f32.mrb[0].mxu0
  %1043 = vmatprep.mubr.f32.mxu0 0.0
  %1044 = vmatmul.mubr.f32.gmra.mrb[0].mxu0 %v275
  %v1045 = vpop.f32.mrb[0].mxu0
  %v1046 = vadd.f32 %v694, %v1045
  %v1047 = vpop.f32.mrb[0].mxu0
  %1048 = vmatprep.mubr.f32.mxu0 0.0
  %1049 = vmatmul.mubr.f32.gmra.mrb[0].mxu0 %v278
  %v1050 = vpop.f32.mrb[0].mxu0
  %v1051 = vadd.f32 %v694, %v1050
  %v1052 = vpop.f32.mrb[0].mxu0
  %1053 = vmatprep.mubr.f32.mxu0 0.0
  %1054 = vmatmul.mubr.f32.gmra.mrb[0].mxu0 %v281
  %v1055 = vpop.f32.mrb[0].mxu0
  %v1056 = vadd.f32 %v694, %v1055
  %v1057 = vpop.f32.mrb[0].mxu0
  %1058 = vmatprep.mubr.f32.mxu0 0.0
  %1059 = vmatmul.mubr.f32.gmra.mrb[0].mxu0 %v284
  %v1060 = vpop.f32.mrb[0].mxu0
  %v1061 = vadd.f32 %v694, %v1060
  %v1062 = vpop.f32.mrb[0].mxu0
  %1063 = vmatprep.mubr.f32.mxu0 0.0
  %1064 = vmatmul.mubr.f32.gmra.mrb[0].mxu0 %v287
  %v1065 = vpop.f32.mrb[0].mxu0
  %v1066 = vadd.f32 %v694, %v1065
  %v1067 = vpop.f32.mrb[0].mxu0
  %1068 = vmatprep.mubr.f32.mxu0 0.0
  %1069 = vmatmul.mubr.f32.gmra.mrb[0].mxu0 %v290
  %v1070 = vpop.f32.mrb[0].mxu0
  %v1071 = vadd.f32 %v694, %v1070
  %v1072 = vpop.f32.mrb[0].mxu0
  %1073 = vmatprep.mubr.f32.mxu0 0.0
  %1074 = vmatmul.mubr.f32.gmra.mrb[0].mxu0 %v293
  %v1075 = vpop.f32.mrb[0].mxu0
  %v1076 = vadd.f32 %v694, %v1075
  %v1077 = vpop.f32.mrb[0].mxu0
  %1078 = vmatprep.mubr.f32.mxu0 0.0
  %1079 = vmatmul.mubr.f32.gmra.mrb[0].mxu0 %v296
  %v1080 = vpop.f32.mrb[0].mxu0
  %v1081 = vadd.f32 %v694, %v1080
  %v1082 = vpop.f32.mrb[0].mxu0
  %1083 = vdwg.mxu0
  %vm1084 = vcmask 64512
  %1085 = vst.msk [vmem:[#allocation2] sm:$0xff] %vm1084, 0.0
  %1086 = vst.msk [vmem:[#allocation2 + $0x8] sm:$0xff] %vm1084, 0.0
  %1087 = vst.msk [vmem:[#allocation2 + $0x10] sm:$0xff] %vm1084, 0.0
  %vm1088 = vcmask 57344
  %1089 = vst.msk [vmem:[#allocation2 + $0x18] sm:$0x1] %vm1088, 0.0
  %1090 = vst.msk [vmem:[#allocation2 + $0x20] sm:$0xff] %vm1084, 0.0
  %1091 = vst.msk [vmem:[#allocation2 + $0x28] sm:$0xff] %vm1084, 0.0
  %1092 = vst.msk [vmem:[#allocation2 + $0x30] sm:$0xff] %vm1084, 0.0
  %1093 = vst.msk [vmem:[#allocation2 + $0x38] sm:$0x1] %vm1088, 0.0
  %1094 = vst.msk [vmem:[#allocation2 + $0x40] sm:$0xff] %vm1084, 0.0
  %1095 = vst.msk [vmem:[#allocation2 + $0x48] sm:$0xff] %vm1084, 0.0
  %1096 = vst.msk [vmem:[#allocation2 + $0x50] sm:$0xff] %vm1084, 0.0
  %1097 = vst.msk [vmem:[#allocation2 + $0x58] sm:$0x1] %vm1088, 0.0
  %1098 = vst.msk [vmem:[#allocation2 + $0x60] sm:$0xff] %vm1084, 0.0
  %1099 = vst.msk [vmem:[#allocation2 + $0x68] sm:$0xff] %vm1084, 0.0
  %1100 = vst.msk [vmem:[#allocation2 + $0x70] sm:$0xff] %vm1084, 0.0
  %1101 = vst.msk [vmem:[#allocation2 + $0x78] sm:$0x1] %vm1088, 0.0
  %1102 = vst.msk [vmem:[#allocation2 + $0x80] sm:$0xff] %vm1084, 0.0
  %1103 = vst.msk [vmem:[#allocation2 + $0x88] sm:$0xff] %vm1084, 0.0
  %1104 = vst.msk [vmem:[#allocation2 + $0x90] sm:$0xff] %vm1084, 0.0
  %1105 = vst.msk [vmem:[#allocation2 + $0x98] sm:$0x1] %vm1088, 0.0
  %1106 = vst.msk [vmem:[#allocation2 + $0xa0] sm:$0xff] %vm1084, 0.0
  %1107 = vst.msk [vmem:[#allocation2 + $0xa8] sm:$0xff] %vm1084, 0.0
  %1108 = vst.msk [vmem:[#allocation2 + $0xb0] sm:$0xff] %vm1084, 0.0
  %1109 = vst.msk [vmem:[#allocation2 + $0xb8] sm:$0x1] %vm1088, 0.0
  %1110 = vst.msk [vmem:[#allocation2 + $0xc0] sm:$0xff] %vm1084, 0.0
  %1111 = vst.msk [vmem:[#allocation2 + $0xc8] sm:$0xff] %vm1084, 0.0
  %1112 = vst.msk [vmem:[#allocation2 + $0xd0] sm:$0xff] %vm1084, 0.0
  %1113 = vst.msk [vmem:[#allocation2 + $0xd8] sm:$0x1] %vm1088, 0.0
  %1114 = vst.msk [vmem:[#allocation2 + $0xe0] sm:$0xff] %vm1084, 0.0
  %1115 = vst.msk [vmem:[#allocation2 + $0xe8] sm:$0xff] %vm1084, 0.0
  %1116 = vst.msk [vmem:[#allocation2 + $0xf0] sm:$0xff] %vm1084, 0.0
  %1117 = vst.msk [vmem:[#allocation2 + $0xf8] sm:$0x1] %vm1088, 0.0
  %1118 = vst.msk [vmem:[#allocation2 + $0x100] sm:$0xff] %vm1084, 0.0
  %1119 = vst.msk [vmem:[#allocation2 + $0x108] sm:$0xff] %vm1084, 0.0
  %1120 = vst.msk [vmem:[#allocation2 + $0x110] sm:$0xff] %vm1084, 0.0
  %1121 = vst.msk [vmem:[#allocation2 + $0x118] sm:$0x1] %vm1088, 0.0
  %1122 = vst.msk [vmem:[#allocation2 + $0x120] sm:$0xff] %vm1084, 0.0
  %1123 = vst.msk [vmem:[#allocation2 + $0x128] sm:$0xff] %vm1084, 0.0
  %1124 = vst.msk [vmem:[#allocation2 + $0x130] sm:$0xff] %vm1084, 0.0
  %1125 = vst.msk [vmem:[#allocation2 + $0x138] sm:$0x1] %vm1088, 0.0
  %1126 = vst.msk [vmem:[#allocation2 + $0x140] sm:$0xff] %vm1084, 0.0
  %1127 = vst.msk [vmem:[#allocation2 + $0x148] sm:$0xff] %vm1084, 0.0
  %1128 = vst.msk [vmem:[#allocation2 + $0x150] sm:$0xff] %vm1084, 0.0
  %1129 = vst.msk [vmem:[#allocation2 + $0x158] sm:$0x1] %vm1088, 0.0
  %1130 = vst.msk [vmem:[#allocation2 + $0x160] sm:$0xff] %vm1084, 0.0
  %1131 = vst.msk [vmem:[#allocation2 + $0x168] sm:$0xff] %vm1084, 0.0
  %1132 = vst.msk [vmem:[#allocation2 + $0x170] sm:$0xff] %vm1084, 0.0
  %1133 = vst.msk [vmem:[#allocation2 + $0x178] sm:$0x1] %vm1088, 0.0
  %1134 = vst.msk [vmem:[#allocation2 + $0x180] sm:$0xff] %vm1084, 0.0
  %1135 = vst.msk [vmem:[#allocation2 + $0x188] sm:$0xff] %vm1084, 0.0
  %1136 = vst.msk [vmem:[#allocation2 + $0x190] sm:$0xff] %vm1084, 0.0
  %1137 = vst.msk [vmem:[#allocation2 + $0x198] sm:$0x1] %vm1088, 0.0
  %1138 = vst.msk [vmem:[#allocation2 + $0x1a0] sm:$0xff] %vm1084, 0.0
  %1139 = vst.msk [vmem:[#allocation2 + $0x1a8] sm:$0xff] %vm1084, 0.0
  %1140 = vst.msk [vmem:[#allocation2 + $0x1b0] sm:$0xff] %vm1084, 0.0
  %1141 = vst.msk [vmem:[#allocation2 + $0x1b8] sm:$0x1] %vm1088, 0.0
  %1142 = vst.msk [vmem:[#allocation2 + $0x1c0] sm:$0xff] %vm1084, 0.0
  %1143 = vst.msk [vmem:[#allocation2 + $0x1c8] sm:$0xff] %vm1084, 0.0
  %1144 = vst.msk [vmem:[#allocation2 + $0x1d0] sm:$0xff] %vm1084, 0.0
  %1145 = vst.msk [vmem:[#allocation2 + $0x1d8] sm:$0x1] %vm1088, 0.0
  %1146 = vst.msk [vmem:[#allocation2 + $0x1e0] sm:$0xff] %vm1084, 0.0
  %1147 = vst.msk [vmem:[#allocation2 + $0x1e8] sm:$0xff] %vm1084, 0.0
  %1148 = vst.msk [vmem:[#allocation2 + $0x1f0] sm:$0xff] %vm1084, 0.0
  %1149 = vst.msk [vmem:[#allocation2 + $0x1f8] sm:$0x1] %vm1088, 0.0
  %1150 = vst.msk [vmem:[#allocation2 + $0x200] sm:$0xff] %vm1084, 0.0
  %1151 = vst.msk [vmem:[#allocation2 + $0x208] sm:$0xff] %vm1084, 0.0
  %1152 = vst.msk [vmem:[#allocation2 + $0x210] sm:$0xff] %vm1084, 0.0
  %1153 = vst.msk [vmem:[#allocation2 + $0x218] sm:$0x1] %vm1088, 0.0
  %1154 = vst.msk [vmem:[#allocation2 + $0x220] sm:$0xff] %vm1084, 0.0
  %1155 = vst.msk [vmem:[#allocation2 + $0x228] sm:$0xff] %vm1084, 0.0
  %1156 = vst.msk [vmem:[#allocation2 + $0x230] sm:$0xff] %vm1084, 0.0
  %1157 = vst.msk [vmem:[#allocation2 + $0x238] sm:$0x1] %vm1088, 0.0
  %1158 = vst.msk [vmem:[#allocation2 + $0x240] sm:$0xff] %vm1084, 0.0
  %1159 = vst.msk [vmem:[#allocation2 + $0x248] sm:$0xff] %vm1084, 0.0
  %1160 = vst.msk [vmem:[#allocation2 + $0x250] sm:$0xff] %vm1084, 0.0
  %1161 = vst.msk [vmem:[#allocation2 + $0x258] sm:$0x1] %vm1088, 0.0
  %1162 = vst.msk [vmem:[#allocation2 + $0x260] sm:$0xff] %vm1084, 0.0
  %1163 = vst.msk [vmem:[#allocation2 + $0x268] sm:$0xff] %vm1084, 0.0
  %1164 = vst.msk [vmem:[#allocation2 + $0x270] sm:$0xff] %vm1084, 0.0
  %1165 = vst.msk [vmem:[#allocation2 + $0x278] sm:$0x1] %vm1088, 0.0
  %1166 = vst.msk [vmem:[#allocation2 + $0x280] sm:$0xff] %vm1084, 0.0
  %1167 = vst.msk [vmem:[#allocation2 + $0x288] sm:$0xff] %vm1084, 0.0
  %1168 = vst.msk [vmem:[#allocation2 + $0x290] sm:$0xff] %vm1084, 0.0
  %1169 = vst.msk [vmem:[#allocation2 + $0x298] sm:$0x1] %vm1088, 0.0
  %1170 = vst.msk [vmem:[#allocation2 + $0x2a0] sm:$0xff] %vm1084, 0.0
  %1171 = vst.msk [vmem:[#allocation2 + $0x2a8] sm:$0xff] %vm1084, 0.0
  %1172 = vst.msk [vmem:[#allocation2 + $0x2b0] sm:$0xff] %vm1084, 0.0
  %1173 = vst.msk [vmem:[#allocation2 + $0x2b8] sm:$0x1] %vm1088, 0.0
  %1174 = vst.msk [vmem:[#allocation2 + $0x2c0] sm:$0xff] %vm1084, 0.0
  %1175 = vst.msk [vmem:[#allocation2 + $0x2c8] sm:$0xff] %vm1084, 0.0
  %1176 = vst.msk [vmem:[#allocation2 + $0x2d0] sm:$0xff] %vm1084, 0.0
  %1177 = vst.msk [vmem:[#allocation2 + $0x2d8] sm:$0x1] %vm1088, 0.0
  %1178 = vst.msk [vmem:[#allocation2 + $0x2e0] sm:$0xff] %vm1084, 0.0
  %1179 = vst.msk [vmem:[#allocation2 + $0x2e8] sm:$0xff] %vm1084, 0.0
  %1180 = vst.msk [vmem:[#allocation2 + $0x2f0] sm:$0xff] %vm1084, 0.0
  %1181 = vst.msk [vmem:[#allocation2 + $0x2f8] sm:$0x1] %vm1088, 0.0
  %1182 = vst.msk [vmem:[#allocation2 + $0x300] sm:$0xff] %vm1084, 0.0
  %1183 = vst.msk [vmem:[#allocation2 + $0x308] sm:$0xff] %vm1084, 0.0
  %1184 = vst.msk [vmem:[#allocation2 + $0x310] sm:$0xff] %vm1084, 0.0
  %1185 = vst.msk [vmem:[#allocation2 + $0x318] sm:$0x1] %vm1088, 0.0
  %1186 = vst.msk [vmem:[#allocation2 + $0x320] sm:$0xff] %vm1084, 0.0
  %1187 = vst.msk [vmem:[#allocation2 + $0x328] sm:$0xff] %vm1084, 0.0
  %1188 = vst.msk [vmem:[#allocation2 + $0x330] sm:$0xff] %vm1084, 0.0
  %1189 = vst.msk [vmem:[#allocation2 + $0x338] sm:$0x1] %vm1088, 0.0
  %1190 = vst.msk [vmem:[#allocation2 + $0x340] sm:$0xff] %vm1084, 0.0
  %1191 = vst.msk [vmem:[#allocation2 + $0x348] sm:$0xff] %vm1084, 0.0
  %1192 = vst.msk [vmem:[#allocation2 + $0x350] sm:$0xff] %vm1084, 0.0
  %1193 = vst.msk [vmem:[#allocation2 + $0x358] sm:$0x1] %vm1088, 0.0
  %1194 = vst.msk [vmem:[#allocation2 + $0x360] sm:$0xff] %vm1084, 0.0
  %1195 = vst.msk [vmem:[#allocation2 + $0x368] sm:$0xff] %vm1084, 0.0
  %1196 = vst.msk [vmem:[#allocation2 + $0x370] sm:$0xff] %vm1084, 0.0
  %1197 = vst.msk [vmem:[#allocation2 + $0x378] sm:$0x1] %vm1088, 0.0
  %1198 = vst.msk [vmem:[#allocation2 + $0x380] sm:$0xff] %vm1084, 0.0
  %1199 = vst.msk [vmem:[#allocation2 + $0x388] sm:$0xff] %vm1084, 0.0
  %1200 = vst.msk [vmem:[#allocation2 + $0x390] sm:$0xff] %vm1084, 0.0
  %1201 = vst.msk [vmem:[#allocation2 + $0x398] sm:$0x1] %vm1088, 0.0
  %1202 = vst.msk [vmem:[#allocation2 + $0x3a0] sm:$0xff] %vm1084, 0.0
  %1203 = vst.msk [vmem:[#allocation2 + $0x3a8] sm:$0xff] %vm1084, 0.0
  %1204 = vst.msk [vmem:[#allocation2 + $0x3b0] sm:$0xff] %vm1084, 0.0
  %1205 = vst.msk [vmem:[#allocation2 + $0x3b8] sm:$0x1] %vm1088, 0.0
  %1206 = vst.msk [vmem:[#allocation2 + $0x3c0] sm:$0xff] %vm1084, 0.0
  %1207 = vst.msk [vmem:[#allocation2 + $0x3c8] sm:$0xff] %vm1084, 0.0
  %1208 = vst.msk [vmem:[#allocation2 + $0x3d0] sm:$0xff] %vm1084, 0.0
  %1209 = vst.msk [vmem:[#allocation2 + $0x3d8] sm:$0x1] %vm1088, 0.0
  %1210 = vst.msk [vmem:[#allocation2 + $0x3e0] sm:$0xff] %vm1084, 0.0
  %1211 = vst.msk [vmem:[#allocation2 + $0x3e8] sm:$0xff] %vm1084, 0.0
  %1212 = vst.msk [vmem:[#allocation2 + $0x3f0] sm:$0xff] %vm1084, 0.0
  %1213 = vst.msk [vmem:[#allocation2 + $0x3f8] sm:$0x1] %vm1088, 0.0
  %1214 = vst.msk [vmem:[#allocation2 + $0x400] sm:$0xff] %vm1084, 0.0
  %1215 = vst.msk [vmem:[#allocation2 + $0x408] sm:$0xff] %vm1084, 0.0
  %1216 = vst.msk [vmem:[#allocation2 + $0x410] sm:$0xff] %vm1084, 0.0
  %1217 = vst.msk [vmem:[#allocation2 + $0x418] sm:$0x1] %vm1088, 0.0
  %1218 = vst.msk [vmem:[#allocation2 + $0x420] sm:$0xff] %vm1084, 0.0
  %1219 = vst.msk [vmem:[#allocation2 + $0x428] sm:$0xff] %vm1084, 0.0
  %1220 = vst.msk [vmem:[#allocation2 + $0x430] sm:$0xff] %vm1084, 0.0
  %1221 = vst.msk [vmem:[#allocation2 + $0x438] sm:$0x1] %vm1088, 0.0
  %1222 = vst.msk [vmem:[#allocation2 + $0x440] sm:$0xff] %vm1084, 0.0
  %1223 = vst.msk [vmem:[#allocation2 + $0x448] sm:$0xff] %vm1084, 0.0
  %1224 = vst.msk [vmem:[#allocation2 + $0x450] sm:$0xff] %vm1084, 0.0
  %1225 = vst.msk [vmem:[#allocation2 + $0x458] sm:$0x1] %vm1088, 0.0
  %1226 = vst.msk [vmem:[#allocation2 + $0x460] sm:$0xff] %vm1084, 0.0
  %1227 = vst.msk [vmem:[#allocation2 + $0x468] sm:$0xff] %vm1084, 0.0
  %1228 = vst.msk [vmem:[#allocation2 + $0x470] sm:$0xff] %vm1084, 0.0
  %1229 = vst.msk [vmem:[#allocation2 + $0x478] sm:$0x1] %vm1088, 0.0
  %s1230 = scalar_lea.vmem [#allocation2], 32
  %1231 = vst.msk [vmem:[%s1230 + $0x8] sm:$0xff] %vm1084, %v369
  %1232 = vst.msk [vmem:[%s1230 + $0x10] sm:$0xff] %vm1084, %v374
  %1233 = vst.msk [vmem:[%s1230 + $0x28] sm:$0xff] %vm1084, %v379
  %1234 = vst.msk [vmem:[%s1230 + $0x30] sm:$0xff] %vm1084, %v384
  %1235 = vst.msk [vmem:[%s1230 + $0x48] sm:$0xff] %vm1084, %v389
  %1236 = vst.msk [vmem:[%s1230 + $0x50] sm:$0xff] %vm1084, %v394
  %1237 = vst.msk [vmem:[%s1230 + $0x68] sm:$0xff] %vm1084, %v399
  %1238 = vst.msk [vmem:[%s1230 + $0x70] sm:$0xff] %vm1084, %v404
  %1239 = vst.msk [vmem:[%s1230 + $0x88] sm:$0xff] %vm1084, %v409
  %1240 = vst.msk [vmem:[%s1230 + $0x90] sm:$0xff] %vm1084, %v414
  %1241 = vst.msk [vmem:[%s1230 + $0xa8] sm:$0xff] %vm1084, %v419
  %1242 = vst.msk [vmem:[%s1230 + $0xb0] sm:$0xff] %vm1084, %v424
  %1243 = vst.msk [vmem:[%s1230 + $0xc8] sm:$0xff] %vm1084, %v429
  %1244 = vst.msk [vmem:[%s1230 + $0xd0] sm:$0xff] %vm1084, %v434
  %1245 = vst.msk [vmem:[%s1230 + $0xe8] sm:$0xff] %vm1084, %v439
  %1246 = vst.msk [vmem:[%s1230 + $0xf0] sm:$0xff] %vm1084, %v444
  %1247 = vst.msk [vmem:[%s1230 + $0x108] sm:$0xff] %vm1084, %v449
  %1248 = vst.msk [vmem:[%s1230 + $0x110] sm:$0xff] %vm1084, %v454
  %1249 = vst.msk [vmem:[%s1230 + $0x128] sm:$0xff] %vm1084, %v459
  %1250 = vst.msk [vmem:[%s1230 + $0x130] sm:$0xff] %vm1084, %v464
  %1251 = vst.msk [vmem:[%s1230 + $0x148] sm:$0xff] %vm1084, %v469
  %1252 = vst.msk [vmem:[%s1230 + $0x150] sm:$0xff] %vm1084, %v474
  %1253 = vst.msk [vmem:[%s1230 + $0x168] sm:$0xff] %vm1084, %v479
  %1254 = vst.msk [vmem:[%s1230 + $0x170] sm:$0xff] %vm1084, %v484
  %1255 = vst.msk [vmem:[%s1230 + $0x188] sm:$0xff] %vm1084, %v489
  %1256 = vst.msk [vmem:[%s1230 + $0x190] sm:$0xff] %vm1084, %v494
  %1257 = vst.msk [vmem:[%s1230 + $0x1a8] sm:$0xff] %vm1084, %v499
  %1258 = vst.msk [vmem:[%s1230 + $0x1b0] sm:$0xff] %vm1084, %v504
  %1259 = vst.msk [vmem:[%s1230 + $0x1c8] sm:$0xff] %vm1084, %v509
  %1260 = vst.msk [vmem:[%s1230 + $0x1d0] sm:$0xff] %vm1084, %v514
  %1261 = vst.msk [vmem:[%s1230 + $0x1e8] sm:$0xff] %vm1084, %v519
  %1262 = vst.msk [vmem:[%s1230 + $0x1f0] sm:$0xff] %vm1084, %v524
  %1263 = vst.msk [vmem:[%s1230 + $0x248] sm:$0xff] %vm1084, %v529
  %1264 = vst.msk [vmem:[%s1230 + $0x250] sm:$0xff] %vm1084, %v534
  %1265 = vst.msk [vmem:[%s1230 + $0x268] sm:$0xff] %vm1084, %v539
  %1266 = vst.msk [vmem:[%s1230 + $0x270] sm:$0xff] %vm1084, %v544
  %1267 = vst.msk [vmem:[%s1230 + $0x288] sm:$0xff] %vm1084, %v549
  %1268 = vst.msk [vmem:[%s1230 + $0x290] sm:$0xff] %vm1084, %v554
  %1269 = vst.msk [vmem:[%s1230 + $0x2a8] sm:$0xff] %vm1084, %v559
  %1270 = vst.msk [vmem:[%s1230 + $0x2b0] sm:$0xff] %vm1084, %v564
  %1271 = vst.msk [vmem:[%s1230 + $0x2c8] sm:$0xff] %vm1084, %v569
  %1272 = vst.msk [vmem:[%s1230 + $0x2d0] sm:$0xff] %vm1084, %v574
  %1273 = vst.msk [vmem:[%s1230 + $0x2e8] sm:$0xff] %vm1084, %v579
  %1274 = vst.msk [vmem:[%s1230 + $0x2f0] sm:$0xff] %vm1084, %v584
  %1275 = vst.msk [vmem:[%s1230 + $0x308] sm:$0xff] %vm1084, %v589
  %1276 = vst.msk [vmem:[%s1230 + $0x310] sm:$0xff] %vm1084, %v594
  %1277 = vst.msk [vmem:[%s1230 + $0x328] sm:$0xff] %vm1084, %v599
  %1278 = vst.msk [vmem:[%s1230 + $0x330] sm:$0xff] %vm1084, %v604
  %1279 = vst.msk [vmem:[%s1230 + $0x348] sm:$0xff] %vm1084, %v609
  %1280 = vst.msk [vmem:[%s1230 + $0x350] sm:$0xff] %vm1084, %v614
  %1281 = vst.msk [vmem:[%s1230 + $0x368] sm:$0xff] %vm1084, %v619
  %1282 = vst.msk [vmem:[%s1230 + $0x370] sm:$0xff] %vm1084, %v624
  %1283 = vst.msk [vmem:[%s1230 + $0x388] sm:$0xff] %vm1084, %v629
  %1284 = vst.msk [vmem:[%s1230 + $0x390] sm:$0xff] %vm1084, %v634
  %1285 = vst.msk [vmem:[%s1230 + $0x3a8] sm:$0xff] %vm1084, %v639
  %1286 = vst.msk [vmem:[%s1230 + $0x3b0] sm:$0xff] %vm1084, %v644
  %1287 = vst.msk [vmem:[%s1230 + $0x3c8] sm:$0xff] %vm1084, %v649
  %1288 = vst.msk [vmem:[%s1230 + $0x3d0] sm:$0xff] %vm1084, %v654
  %1289 = vst.msk [vmem:[%s1230 + $0x3e8] sm:$0xff] %vm1084, %v659
  %1290 = vst.msk [vmem:[%s1230 + $0x3f0] sm:$0xff] %vm1084, %v664
  %1291 = vst.msk [vmem:[%s1230 + $0x408] sm:$0xff] %vm1084, %v669
  %1292 = vst.msk [vmem:[%s1230 + $0x410] sm:$0xff] %vm1084, %v674
  %1293 = vst.msk [vmem:[%s1230 + $0x428] sm:$0xff] %vm1084, %v679
  %1294 = vst.msk [vmem:[%s1230 + $0x430] sm:$0xff] %vm1084, %v684
  %v1295 = vld [vmem:[%s5] sm:$0x7]
  %v1296 = vld [vmem:[%s5 + $0x4] sm:$0x7]
  %v1297 = vld [vmem:[%s5 + $0x8] sm:$0x7]
  %v1298 = vld [vmem:[#allocation2 + $0x7] sm:$0xff]
  %v1299 = vld [vmem:[#allocation2 + $0xf] sm:$0xff]
  %v1300 = vld [vmem:[#allocation2 + $0x27] sm:$0xff]
  %v1301 = vld [vmem:[#allocation2 + $0x2f] sm:$0xff]
  %v1302 = vld [vmem:[#allocation2 + $0x47] sm:$0xff]
  %v1303 = vld [vmem:[#allocation2 + $0x4f] sm:$0xff]
  %v1304 = vld [vmem:[#allocation2 + $0x67] sm:$0xff]
  %v1305 = vld [vmem:[#allocation2 + $0x6f] sm:$0xff]
  %v1306 = vld [vmem:[#allocation2 + $0x87] sm:$0xff]
  %v1307 = vld [vmem:[#allocation2 + $0x8f] sm:$0xff]
  %v1308 = vld [vmem:[#allocation2 + $0xa7] sm:$0xff]
  %v1309 = vld [vmem:[#allocation2 + $0xaf] sm:$0xff]
  %v1310 = vld [vmem:[#allocation2 + $0xc7] sm:$0xff]
  %v1311 = vld [vmem:[#allocation2 + $0xcf] sm:$0xff]
  %v1312 = vld [vmem:[#allocation2 + $0xe7] sm:$0xff]
  %v1313 = vld [vmem:[#allocation2 + $0xef] sm:$0xff]
  %v1314 = vld [vmem:[#allocation2 + $0x107] sm:$0xff]
  %v1315 = vld [vmem:[#allocation2 + $0x10f] sm:$0xff]
  %v1316 = vld [vmem:[#allocation2 + $0x127] sm:$0xff]
  %v1317 = vld [vmem:[#allocation2 + $0x12f] sm:$0xff]
  %v1318 = vld [vmem:[#allocation2 + $0x147] sm:$0xff]
  %v1319 = vld [vmem:[#allocation2 + $0x14f] sm:$0xff]
  %v1320 = vld [vmem:[#allocation2 + $0x167] sm:$0xff]
  %v1321 = vld [vmem:[#allocation2 + $0x16f] sm:$0xff]
  %v1322 = vld [vmem:[#allocation2 + $0x187] sm:$0xff]
  %v1323 = vld [vmem:[#allocation2 + $0x18f] sm:$0xff]
  %v1324 = vld [vmem:[#allocation2 + $0x1a7] sm:$0xff]
  %v1325 = vld [vmem:[#allocation2 + $0x1af] sm:$0xff]
  %v1326 = vld [vmem:[#allocation2 + $0x1c7] sm:$0xff]
  %v1327 = vld [vmem:[#allocation2 + $0x1cf] sm:$0xff]
  %v1328 = vld [vmem:[#allocation2 + $0x1e7] sm:$0xff]
  %v1329 = vld [vmem:[#allocation2 + $0x1ef] sm:$0xff]
  %v1330 = vld [vmem:[#allocation2 + $0x247] sm:$0xff]
  %v1331 = vld [vmem:[#allocation2 + $0x24f] sm:$0xff]
  %v1332 = vld [vmem:[#allocation2 + $0x267] sm:$0xff]
  %v1333 = vld [vmem:[#allocation2 + $0x26f] sm:$0xff]
  %v1334 = vld [vmem:[#allocation2 + $0x287] sm:$0xff]
  %v1335 = vld [vmem:[#allocation2 + $0x28f] sm:$0xff]
  %v1336 = vld [vmem:[#allocation2 + $0x2a7] sm:$0xff]
  %v1337 = vld [vmem:[#allocation2 + $0x2af] sm:$0xff]
  %v1338 = vld [vmem:[#allocation2 + $0x2c7] sm:$0xff]
  %v1339 = vld [vmem:[#allocation2 + $0x2cf] sm:$0xff]
  %v1340 = vld [vmem:[#allocation2 + $0x2e7] sm:$0xff]
  %v1341 = vld [vmem:[#allocation2 + $0x2ef] sm:$0xff]
  %v1342 = vld [vmem:[#allocation2 + $0x307] sm:$0xff]
  %v1343 = vld [vmem:[#allocation2 + $0x30f] sm:$0xff]
  %v1344 = vld [vmem:[#allocation2 + $0x327] sm:$0xff]
  %v1345 = vld [vmem:[#allocation2 + $0x32f] sm:$0xff]
  %v1346 = vld [vmem:[#allocation2 + $0x347] sm:$0xff]
  %v1347 = vld [vmem:[#allocation2 + $0x34f] sm:$0xff]
  %v1348 = vld [vmem:[#allocation2 + $0x367] sm:$0xff]
  %v1349 = vld [vmem:[#allocation2 + $0x36f] sm:$0xff]
  %v1350 = vld [vmem:[#allocation2 + $0x387] sm:$0xff]
  %v1351 = vld [vmem:[#allocation2 + $0x38f] sm:$0xff]
  %v1352 = vld [vmem:[#allocation2 + $0x3a7] sm:$0xff]
  %v1353 = vld [vmem:[#allocation2 + $0x3af] sm:$0xff]
  %v1354 = vld [vmem:[#allocation2 + $0x3c7] sm:$0xff]
  %v1355 = vld [vmem:[#allocation2 + $0x3cf] sm:$0xff]
  %v1356 = vld [vmem:[#allocation2 + $0x3e7] sm:$0xff]
  %v1357 = vld [vmem:[#allocation2 + $0x3ef] sm:$0xff]
  %v1358 = vld [vmem:[#allocation2 + $0x407] sm:$0xff]
  %v1359 = vld [vmem:[#allocation2 + $0x40f] sm:$0xff]
  %v1360 = vld [vmem:[#allocation2 + $0x427] sm:$0xff]
  %v1361 = vld [vmem:[#allocation2 + $0x42f] sm:$0xff]
  %v1362 = vlaneseq
  %v1363 = vshrl.u32 %v1362, 7
  %v1364 = vsub.s32 0, %v1363
  %v1365 = vrot.slane %v1295, %v1364
  %v1366 = vmul.f32 %v1298, %v1365
  %v1367 = vmul.f32 %v1299, %v1365
  %v1368 = vmul.f32 %v1300, %v1365
  %v1369 = vmul.f32 %v1301, %v1365
  %v1370 = vmul.f32 %v1302, %v1365
  %v1371 = vmul.f32 %v1303, %v1365
  %v1372 = vmul.f32 %v1304, %v1365
  %v1373 = vmul.f32 %v1305, %v1365
  %v1374 = vmul.f32 %v1306, %v1365
  %v1375 = vmul.f32 %v1307, %v1365
  %v1376 = vmul.f32 %v1308, %v1365
  %v1377 = vmul.f32 %v1309, %v1365
  %v1378 = vmul.f32 %v1310, %v1365
  %v1379 = vmul.f32 %v1311, %v1365
  %v1380 = vmul.f32 %v1312, %v1365
  %v1381 = vmul.f32 %v1313, %v1365
  %v1382 = vmul.f32 %v1314, %v1365
  %v1383 = vmul.f32 %v1315, %v1365
  %v1384 = vmul.f32 %v1316, %v1365
  %v1385 = vmul.f32 %v1317, %v1365
  %v1386 = vmul.f32 %v1318, %v1365
  %v1387 = vmul.f32 %v1319, %v1365
  %v1388 = vmul.f32 %v1320, %v1365
  %v1389 = vmul.f32 %v1321, %v1365
  %v1390 = vmul.f32 %v1322, %v1365
  %v1391 = vmul.f32 %v1323, %v1365
  %v1392 = vmul.f32 %v1324, %v1365
  %v1393 = vmul.f32 %v1325, %v1365
  %v1394 = vmul.f32 %v1326, %v1365
  %v1395 = vmul.f32 %v1327, %v1365
  %v1396 = vmul.f32 %v1328, %v1365
  %v1397 = vmul.f32 %v1329, %v1365
  %v1398 = vmul.f32 %v1330, %v1365
  %v1399 = vmul.f32 %v1331, %v1365
  %v1400 = vmul.f32 %v1332, %v1365
  %v1401 = vmul.f32 %v1333, %v1365
  %v1402 = vmul.f32 %v1334, %v1365
  %v1403 = vmul.f32 %v1335, %v1365
  %v1404 = vmul.f32 %v1336, %v1365
  %v1405 = vmul.f32 %v1337, %v1365
  %v1406 = vmul.f32 %v1338, %v1365
  %v1407 = vmul.f32 %v1339, %v1365
  %v1408 = vmul.f32 %v1340, %v1365
  %v1409 = vmul.f32 %v1341, %v1365
  %v1410 = vmul.f32 %v1342, %v1365
  %v1411 = vmul.f32 %v1343, %v1365
  %v1412 = vmul.f32 %v1344, %v1365
  %v1413 = vmul.f32 %v1345, %v1365
  %v1414 = vmul.f32 %v1346, %v1365
  %v1415 = vmul.f32 %v1347, %v1365
  %v1416 = vmul.f32 %v1348, %v1365
  %v1417 = vmul.f32 %v1349, %v1365
  %v1418 = vmul.f32 %v1350, %v1365
  %v1419 = vmul.f32 %v1351, %v1365
  %v1420 = vmul.f32 %v1352, %v1365
  %v1421 = vmul.f32 %v1353, %v1365
  %v1422 = vmul.f32 %v1354, %v1365
  %v1423 = vmul.f32 %v1355, %v1365
  %v1424 = vmul.f32 %v1356, %v1365
  %v1425 = vmul.f32 %v1357, %v1365
  %v1426 = vmul.f32 %v1358, %v1365
  %v1427 = vmul.f32 %v1359, %v1365
  %v1428 = vmul.f32 %v1360, %v1365
  %v1429 = vmul.f32 %v1361, %v1365
  %v1430 = vadd.f32 %v1366, 0.0
  %v1431 = vadd.f32 %v1367, 0.0
  %v1432 = vadd.f32 %v1368, 0.0
  %v1433 = vadd.f32 %v1369, 0.0
  %v1434 = vadd.f32 %v1370, 0.0
  %v1435 = vadd.f32 %v1371, 0.0
  %v1436 = vadd.f32 %v1372, 0.0
  %v1437 = vadd.f32 %v1373, 0.0
  %v1438 = vadd.f32 %v1374, 0.0
  %v1439 = vadd.f32 %v1375, 0.0
  %v1440 = vadd.f32 %v1376, 0.0
  %v1441 = vadd.f32 %v1377, 0.0
  %v1442 = vadd.f32 %v1378, 0.0
  %v1443 = vadd.f32 %v1379, 0.0
  %v1444 = vadd.f32 %v1380, 0.0
  %v1445 = vadd.f32 %v1381, 0.0
  %v1446 = vadd.f32 %v1382, 0.0
  %v1447 = vadd.f32 %v1383, 0.0
  %v1448 = vadd.f32 %v1384, 0.0
  %v1449 = vadd.f32 %v1385, 0.0
  %v1450 = vadd.f32 %v1386, 0.0
  %v1451 = vadd.f32 %v1387, 0.0
  %v1452 = vadd.f32 %v1388, 0.0
  %v1453 = vadd.f32 %v1389, 0.0
  %v1454 = vadd.f32 %v1390, 0.0
  %v1455 = vadd.f32 %v1391, 0.0
  %v1456 = vadd.f32 %v1392, 0.0
  %v1457 = vadd.f32 %v1393, 0.0
  %v1458 = vadd.f32 %v1394, 0.0
  %v1459 = vadd.f32 %v1395, 0.0
  %v1460 = vadd.f32 %v1396, 0.0
  %v1461 = vadd.f32 %v1397, 0.0
  %v1462 = vadd.f32 %v1398, 0.0
  %v1463 = vadd.f32 %v1399, 0.0
  %v1464 = vadd.f32 %v1400, 0.0
  %v1465 = vadd.f32 %v1401, 0.0
  %v1466 = vadd.f32 %v1402, 0.0
  %v1467 = vadd.f32 %v1403, 0.0
  %v1468 = vadd.f32 %v1404, 0.0
  %v1469 = vadd.f32 %v1405, 0.0
  %v1470 = vadd.f32 %v1406, 0.0
  %v1471 = vadd.f32 %v1407, 0.0
  %v1472 = vadd.f32 %v1408, 0.0
  %v1473 = vadd.f32 %v1409, 0.0
  %v1474 = vadd.f32 %v1410, 0.0
  %v1475 = vadd.f32 %v1411, 0.0
  %v1476 = vadd.f32 %v1412, 0.0
  %v1477 = vadd.f32 %v1413, 0.0
  %v1478 = vadd.f32 %v1414, 0.0
  %v1479 = vadd.f32 %v1415, 0.0
  %v1480 = vadd.f32 %v1416, 0.0
  %v1481 = vadd.f32 %v1417, 0.0
  %v1482 = vadd.f32 %v1418, 0.0
  %v1483 = vadd.f32 %v1419, 0.0
  %v1484 = vadd.f32 %v1420, 0.0
  %v1485 = vadd.f32 %v1421, 0.0
  %v1486 = vadd.f32 %v1422, 0.0
  %v1487 = vadd.f32 %v1423, 0.0
  %v1488 = vadd.f32 %v1424, 0.0
  %v1489 = vadd.f32 %v1425, 0.0
  %v1490 = vadd.f32 %v1426, 0.0
  %v1491 = vadd.f32 %v1427, 0.0
  %v1492 = vadd.f32 %v1428, 0.0
  %v1493 = vadd.f32 %v1429, 0.0
  %v1494 = vld [vmem:[#allocation2 + $0x8] sm:$0xff]
  %v1495 = vld [vmem:[#allocation2 + $0x10] sm:$0xff]
  %v1496 = vld [vmem:[#allocation2 + $0x28] sm:$0xff]
  %v1497 = vld [vmem:[#allocation2 + $0x30] sm:$0xff]
  %v1498 = vld [vmem:[#allocation2 + $0x48] sm:$0xff]
  %v1499 = vld [vmem:[#allocation2 + $0x50] sm:$0xff]
  %v1500 = vld [vmem:[#allocation2 + $0x68] sm:$0xff]
  %v1501 = vld [vmem:[#allocation2 + $0x70] sm:$0xff]
  %v1502 = vld [vmem:[#allocation2 + $0x88] sm:$0xff]
  %v1503 = vld [vmem:[#allocation2 + $0x90] sm:$0xff]
  %v1504 = vld [vmem:[#allocation2 + $0xa8] sm:$0xff]
  %v1505 = vld [vmem:[#allocation2 + $0xb0] sm:$0xff]
  %v1506 = vld [vmem:[#allocation2 + $0xc8] sm:$0xff]
  %v1507 = vld [vmem:[#allocation2 + $0xd0] sm:$0xff]
  %v1508 = vld [vmem:[#allocation2 + $0xe8] sm:$0xff]
  %v1509 = vld [vmem:[#allocation2 + $0xf0] sm:$0xff]
  %v1510 = vld [vmem:[#allocation2 + $0x108] sm:$0xff]
  %v1511 = vld [vmem:[#allocation2 + $0x110] sm:$0xff]
  %v1512 = vld [vmem:[#allocation2 + $0x128] sm:$0xff]
  %v1513 = vld [vmem:[#allocation2 + $0x130] sm:$0xff]
  %v1514 = vld [vmem:[#allocation2 + $0x148] sm:$0xff]
  %v1515 = vld [vmem:[#allocation2 + $0x150] sm:$0xff]
  %v1516 = vld [vmem:[#allocation2 + $0x168] sm:$0xff]
  %v1517 = vld [vmem:[#allocation2 + $0x170] sm:$0xff]
  %v1518 = vld [vmem:[#allocation2 + $0x188] sm:$0xff]
  %v1519 = vld [vmem:[#allocation2 + $0x190] sm:$0xff]
  %v1520 = vld [vmem:[#allocation2 + $0x1a8] sm:$0xff]
  %v1521 = vld [vmem:[#allocation2 + $0x1b0] sm:$0xff]
  %v1522 = vld [vmem:[#allocation2 + $0x1c8] sm:$0xff]
  %v1523 = vld [vmem:[#allocation2 + $0x1d0] sm:$0xff]
  %v1524 = vld [vmem:[#allocation2 + $0x1e8] sm:$0xff]
  %v1525 = vld [vmem:[#allocation2 + $0x1f0] sm:$0xff]
  %v1526 = vld [vmem:[#allocation2 + $0x248] sm:$0xff]
  %v1527 = vld [vmem:[#allocation2 + $0x250] sm:$0xff]
  %v1528 = vld [vmem:[#allocation2 + $0x268] sm:$0xff]
  %v1529 = vld [vmem:[#allocation2 + $0x270] sm:$0xff]
  %v1530 = vld [vmem:[#allocation2 + $0x288] sm:$0xff]
  %v1531 = vld [vmem:[#allocation2 + $0x290] sm:$0xff]
  %v1532 = vld [vmem:[#allocation2 + $0x2a8] sm:$0xff]
  %v1533 = vld [vmem:[#allocation2 + $0x2b0] sm:$0xff]
  %v1534 = vld [vmem:[#allocation2 + $0x2c8] sm:$0xff]
  %v1535 = vld [vmem:[#allocation2 + $0x2d0] sm:$0xff]
  %v1536 = vld [vmem:[#allocation2 + $0x2e8] sm:$0xff]
  %v1537 = vld [vmem:[#allocation2 + $0x2f0] sm:$0xff]
  %v1538 = vld [vmem:[#allocation2 + $0x308] sm:$0xff]
  %v1539 = vld [vmem:[#allocation2 + $0x310] sm:$0xff]
  %v1540 = vld [vmem:[#allocation2 + $0x328] sm:$0xff]
  %v1541 = vld [vmem:[#allocation2 + $0x330] sm:$0xff]
  %v1542 = vld [vmem:[#allocation2 + $0x348] sm:$0xff]
  %v1543 = vld [vmem:[#allocation2 + $0x350] sm:$0xff]
  %v1544 = vld [vmem:[#allocation2 + $0x368] sm:$0xff]
  %v1545 = vld [vmem:[#allocation2 + $0x370] sm:$0xff]
  %v1546 = vld [vmem:[#allocation2 + $0x388] sm:$0xff]
  %v1547 = vld [vmem:[#allocation2 + $0x390] sm:$0xff]
  %v1548 = vld [vmem:[#allocation2 + $0x3a8] sm:$0xff]
  %v1549 = vld [vmem:[#allocation2 + $0x3b0] sm:$0xff]
  %v1550 = vld [vmem:[#allocation2 + $0x3c8] sm:$0xff]
  %v1551 = vld [vmem:[#allocation2 + $0x3d0] sm:$0xff]
  %v1552 = vld [vmem:[#allocation2 + $0x3e8] sm:$0xff]
  %v1553 = vld [vmem:[#allocation2 + $0x3f0] sm:$0xff]
  %v1554 = vld [vmem:[#allocation2 + $0x408] sm:$0xff]
  %v1555 = vld [vmem:[#allocation2 + $0x410] sm:$0xff]
  %v1556 = vld [vmem:[#allocation2 + $0x428] sm:$0xff]
  %v1557 = vld [vmem:[#allocation2 + $0x430] sm:$0xff]
  %v1558 = vlaneseq
  %v1559 = vshrl.u32 %v1558, 7
  %v1560 = vsub.s32 1, %v1559
  %v1561 = vrot.slane %v1295, %v1560
  %v1562 = vmul.f32 %v1494, %v1561
  %v1563 = vmul.f32 %v1495, %v1561
  %v1564 = vmul.f32 %v1496, %v1561
  %v1565 = vmul.f32 %v1497, %v1561
  %v1566 = vmul.f32 %v1498, %v1561
  %v1567 = vmul.f32 %v1499, %v1561
  %v1568 = vmul.f32 %v1500, %v1561
  %v1569 = vmul.f32 %v1501, %v1561
  %v1570 = vmul.f32 %v1502, %v1561
  %v1571 = vmul.f32 %v1503, %v1561
  %v1572 = vmul.f32 %v1504, %v1561
  %v1573 = vmul.f32 %v1505, %v1561
  %v1574 = vmul.f32 %v1506, %v1561
  %v1575 = vmul.f32 %v1507, %v1561
  %v1576 = vmul.f32 %v1508, %v1561
  %v1577 = vmul.f32 %v1509, %v1561
  %v1578 = vmul.f32 %v1510, %v1561
  %v1579 = vmul.f32 %v1511, %v1561
  %v1580 = vmul.f32 %v1512, %v1561
  %v1581 = vmul.f32 %v1513, %v1561
  %v1582 = vmul.f32 %v1514, %v1561
  %v1583 = vmul.f32 %v1515, %v1561
  %v1584 = vmul.f32 %v1516, %v1561
  %v1585 = vmul.f32 %v1517, %v1561
  %v1586 = vmul.f32 %v1518, %v1561
  %v1587 = vmul.f32 %v1519, %v1561
  %v1588 = vmul.f32 %v1520, %v1561
  %v1589 = vmul.f32 %v1521, %v1561
  %v1590 = vmul.f32 %v1522, %v1561
  %v1591 = vmul.f32 %v1523, %v1561
  %v1592 = vmul.f32 %v1524, %v1561
  %v1593 = vmul.f32 %v1525, %v1561
  %v1594 = vmul.f32 %v1526, %v1561
  %v1595 = vmul.f32 %v1527, %v1561
  %v1596 = vmul.f32 %v1528, %v1561
  %v1597 = vmul.f32 %v1529, %v1561
  %v1598 = vmul.f32 %v1530, %v1561
  %v1599 = vmul.f32 %v1531, %v1561
  %v1600 = vmul.f32 %v1532, %v1561
  %v1601 = vmul.f32 %v1533, %v1561
  %v1602 = vmul.f32 %v1534, %v1561
  %v1603 = vmul.f32 %v1535, %v1561
  %v1604 = vmul.f32 %v1536, %v1561
  %v1605 = vmul.f32 %v1537, %v1561
  %v1606 = vmul.f32 %v1538, %v1561
  %v1607 = vmul.f32 %v1539, %v1561
  %v1608 = vmul.f32 %v1540, %v1561
  %v1609 = vmul.f32 %v1541, %v1561
  %v1610 = vmul.f32 %v1542, %v1561
  %v1611 = vmul.f32 %v1543, %v1561
  %v1612 = vmul.f32 %v1544, %v1561
  %v1613 = vmul.f32 %v1545, %v1561
  %v1614 = vmul.f32 %v1546, %v1561
  %v1615 = vmul.f32 %v1547, %v1561
  %v1616 = vmul.f32 %v1548, %v1561
  %v1617 = vmul.f32 %v1549, %v1561
  %v1618 = vmul.f32 %v1550, %v1561
  %v1619 = vmul.f32 %v1551, %v1561
  %v1620 = vmul.f32 %v1552, %v1561
  %v1621 = vmul.f32 %v1553, %v1561
  %v1622 = vmul.f32 %v1554, %v1561
  %v1623 = vmul.f32 %v1555, %v1561
  %v1624 = vmul.f32 %v1556, %v1561
  %v1625 = vmul.f32 %v1557, %v1561
  %v1626 = vadd.f32 %v1430, %v1562
  %v1627 = vadd.f32 %v1431, %v1563
  %v1628 = vadd.f32 %v1432, %v1564
  %v1629 = vadd.f32 %v1433, %v1565
  %v1630 = vadd.f32 %v1434, %v1566
  %v1631 = vadd.f32 %v1435, %v1567
  %v1632 = vadd.f32 %v1436, %v1568
  %v1633 = vadd.f32 %v1437, %v1569
  %v1634 = vadd.f32 %v1438, %v1570
  %v1635 = vadd.f32 %v1439, %v1571
  %v1636 = vadd.f32 %v1440, %v1572
  %v1637 = vadd.f32 %v1441, %v1573
  %v1638 = vadd.f32 %v1442, %v1574
  %v1639 = vadd.f32 %v1443, %v1575
  %v1640 = vadd.f32 %v1444, %v1576
  %v1641 = vadd.f32 %v1445, %v1577
  %v1642 = vadd.f32 %v1446, %v1578
  %v1643 = vadd.f32 %v1447, %v1579
  %v1644 = vadd.f32 %v1448, %v1580
  %v1645 = vadd.f32 %v1449, %v1581
  %v1646 = vadd.f32 %v1450, %v1582
  %v1647 = vadd.f32 %v1451, %v1583
  %v1648 = vadd.f32 %v1452, %v1584
  %v1649 = vadd.f32 %v1453, %v1585
  %v1650 = vadd.f32 %v1454, %v1586
  %v1651 = vadd.f32 %v1455, %v1587
  %v1652 = vadd.f32 %v1456, %v1588
  %v1653 = vadd.f32 %v1457, %v1589
  %v1654 = vadd.f32 %v1458, %v1590
  %v1655 = vadd.f32 %v1459, %v1591
  %v1656 = vadd.f32 %v1460, %v1592
  %v1657 = vadd.f32 %v1461, %v1593
  %v1658 = vadd.f32 %v1462, %v1594
  %v1659 = vadd.f32 %v1463, %v1595
  %v1660 = vadd.f32 %v1464, %v1596
  %v1661 = vadd.f32 %v1465, %v1597
  %v1662 = vadd.f32 %v1466, %v1598
  %v1663 = vadd.f32 %v1467, %v1599
  %v1664 = vadd.f32 %v1468, %v1600
  %v1665 = vadd.f32 %v1469, %v1601
  %v1666 = vadd.f32 %v1470, %v1602
  %v1667 = vadd.f32 %v1471, %v1603
  %v1668 = vadd.f32 %v1472, %v1604
  %v1669 = vadd.f32 %v1473, %v1605
  %v1670 = vadd.f32 %v1474, %v1606
  %v1671 = vadd.f32 %v1475, %v1607
  %v1672 = vadd.f32 %v1476, %v1608
  %v1673 = vadd.f32 %v1477, %v1609
  %v1674 = vadd.f32 %v1478, %v1610
  %v1675 = vadd.f32 %v1479, %v1611
  %v1676 = vadd.f32 %v1480, %v1612
  %v1677 = vadd.f32 %v1481, %v1613
  %v1678 = vadd.f32 %v1482, %v1614
  %v1679 = vadd.f32 %v1483, %v1615
  %v1680 = vadd.f32 %v1484, %v1616
  %v1681 = vadd.f32 %v1485, %v1617
  %v1682 = vadd.f32 %v1486, %v1618
  %v1683 = vadd.f32 %v1487, %v1619
  %v1684 = vadd.f32 %v1488, %v1620
  %v1685 = vadd.f32 %v1489, %v1621
  %v1686 = vadd.f32 %v1490, %v1622
  %v1687 = vadd.f32 %v1491, %v1623
  %v1688 = vadd.f32 %v1492, %v1624
  %v1689 = vadd.f32 %v1493, %v1625
  %v1690 = vld [vmem:[#allocation2 + $0x9] sm:$0xff]
  %v1691 = vld [vmem:[#allocation2 + $0x11] sm:$0xff]
  %v1692 = vld [vmem:[#allocation2 + $0x29] sm:$0xff]
  %v1693 = vld [vmem:[#allocation2 + $0x31] sm:$0xff]
  %v1694 = vld [vmem:[#allocation2 + $0x49] sm:$0xff]
  %v1695 = vld [vmem:[#allocation2 + $0x51] sm:$0xff]
  %v1696 = vld [vmem:[#allocation2 + $0x69] sm:$0xff]
  %v1697 = vld [vmem:[#allocation2 + $0x71] sm:$0xff]
  %v1698 = vld [vmem:[#allocation2 + $0x89] sm:$0xff]
  %v1699 = vld [vmem:[#allocation2 + $0x91] sm:$0xff]
  %v1700 = vld [vmem:[#allocation2 + $0xa9] sm:$0xff]
  %v1701 = vld [vmem:[#allocation2 + $0xb1] sm:$0xff]
  %v1702 = vld [vmem:[#allocation2 + $0xc9] sm:$0xff]
  %v1703 = vld [vmem:[#allocation2 + $0xd1] sm:$0xff]
  %v1704 = vld [vmem:[#allocation2 + $0xe9] sm:$0xff]
  %v1705 = vld [vmem:[#allocation2 + $0xf1] sm:$0xff]
  %v1706 = vld [vmem:[#allocation2 + $0x109] sm:$0xff]
  %v1707 = vld [vmem:[#allocation2 + $0x111] sm:$0xff]
  %v1708 = vld [vmem:[#allocation2 + $0x129] sm:$0xff]
  %v1709 = vld [vmem:[#allocation2 + $0x131] sm:$0xff]
  %v1710 = vld [vmem:[#allocation2 + $0x149] sm:$0xff]
  %v1711 = vld [vmem:[#allocation2 + $0x151] sm:$0xff]
  %v1712 = vld [vmem:[#allocation2 + $0x169] sm:$0xff]
  %v1713 = vld [vmem:[#allocation2 + $0x171] sm:$0xff]
  %v1714 = vld [vmem:[#allocation2 + $0x189] sm:$0xff]
  %v1715 = vld [vmem:[#allocation2 + $0x191] sm:$0xff]
  %v1716 = vld [vmem:[#allocation2 + $0x1a9] sm:$0xff]
  %v1717 = vld [vmem:[#allocation2 + $0x1b1] sm:$0xff]
  %v1718 = vld [vmem:[#allocation2 + $0x1c9] sm:$0xff]
  %v1719 = vld [vmem:[#allocation2 + $0x1d1] sm:$0xff]
  %v1720 = vld [vmem:[#allocation2 + $0x1e9] sm:$0xff]
  %v1721 = vld [vmem:[#allocation2 + $0x1f1] sm:$0xff]
  %v1722 = vld [vmem:[#allocation2 + $0x249] sm:$0xff]
  %v1723 = vld [vmem:[#allocation2 + $0x251] sm:$0xff]
  %v1724 = vld [vmem:[#allocation2 + $0x269] sm:$0xff]
  %v1725 = vld [vmem:[#allocation2 + $0x271] sm:$0xff]
  %v1726 = vld [vmem:[#allocation2 + $0x289] sm:$0xff]
  %v1727 = vld [vmem:[#allocation2 + $0x291] sm:$0xff]
  %v1728 = vld [vmem:[#allocation2 + $0x2a9] sm:$0xff]
  %v1729 = vld [vmem:[#allocation2 + $0x2b1] sm:$0xff]
  %v1730 = vld [vmem:[#allocation2 + $0x2c9] sm:$0xff]
  %v1731 = vld [vmem:[#allocation2 + $0x2d1] sm:$0xff]
  %v1732 = vld [vmem:[#allocation2 + $0x2e9] sm:$0xff]
  %v1733 = vld [vmem:[#allocation2 + $0x2f1] sm:$0xff]
  %v1734 = vld [vmem:[#allocation2 + $0x309] sm:$0xff]
  %v1735 = vld [vmem:[#allocation2 + $0x311] sm:$0xff]
  %v1736 = vld [vmem:[#allocation2 + $0x329] sm:$0xff]
  %v1737 = vld [vmem:[#allocation2 + $0x331] sm:$0xff]
  %v1738 = vld [vmem:[#allocation2 + $0x349] sm:$0xff]
  %v1739 = vld [vmem:[#allocation2 + $0x351] sm:$0xff]
  %v1740 = vld [vmem:[#allocation2 + $0x369] sm:$0xff]
  %v1741 = vld [vmem:[#allocation2 + $0x371] sm:$0xff]
  %v1742 = vld [vmem:[#allocation2 + $0x389] sm:$0xff]
  %v1743 = vld [vmem:[#allocation2 + $0x391] sm:$0xff]
  %v1744 = vld [vmem:[#allocation2 + $0x3a9] sm:$0xff]
  %v1745 = vld [vmem:[#allocation2 + $0x3b1] sm:$0xff]
  %v1746 = vld [vmem:[#allocation2 + $0x3c9] sm:$0xff]
  %v1747 = vld [vmem:[#allocation2 + $0x3d1] sm:$0xff]
  %v1748 = vld [vmem:[#allocation2 + $0x3e9] sm:$0xff]
  %v1749 = vld [vmem:[#allocation2 + $0x3f1] sm:$0xff]
  %v1750 = vld [vmem:[#allocation2 + $0x409] sm:$0xff]
  %v1751 = vld [vmem:[#allocation2 + $0x411] sm:$0xff]
  %v1752 = vld [vmem:[#allocation2 + $0x429] sm:$0xff]
  %v1753 = vld [vmem:[#allocation2 + $0x431] sm:$0xff]
  %v1754 = vlaneseq
  %v1755 = vshrl.u32 %v1754, 7
  %v1756 = vsub.s32 2, %v1755
  %v1757 = vrot.slane %v1295, %v1756
  %v1758 = vmul.f32 %v1690, %v1757
  %v1759 = vmul.f32 %v1691, %v1757
  %v1760 = vmul.f32 %v1692, %v1757
  %v1761 = vmul.f32 %v1693, %v1757
  %v1762 = vmul.f32 %v1694, %v1757
  %v1763 = vmul.f32 %v1695, %v1757
  %v1764 = vmul.f32 %v1696, %v1757
  %v1765 = vmul.f32 %v1697, %v1757
  %v1766 = vmul.f32 %v1698, %v1757
  %v1767 = vmul.f32 %v1699, %v1757
  %v1768 = vmul.f32 %v1700, %v1757
  %v1769 = vmul.f32 %v1701, %v1757
  %v1770 = vmul.f32 %v1702, %v1757
  %v1771 = vmul.f32 %v1703, %v1757
  %v1772 = vmul.f32 %v1704, %v1757
  %v1773 = vmul.f32 %v1705, %v1757
  %v1774 = vmul.f32 %v1706, %v1757
  %v1775 = vmul.f32 %v1707, %v1757
  %v1776 = vmul.f32 %v1708, %v1757
  %v1777 = vmul.f32 %v1709, %v1757
  %v1778 = vmul.f32 %v1710, %v1757
  %v1779 = vmul.f32 %v1711, %v1757
  %v1780 = vmul.f32 %v1712, %v1757
  %v1781 = vmul.f32 %v1713, %v1757
  %v1782 = vmul.f32 %v1714, %v1757
  %v1783 = vmul.f32 %v1715, %v1757
  %v1784 = vmul.f32 %v1716, %v1757
  %v1785 = vmul.f32 %v1717, %v1757
  %v1786 = vmul.f32 %v1718, %v1757
  %v1787 = vmul.f32 %v1719, %v1757
  %v1788 = vmul.f32 %v1720, %v1757
  %v1789 = vmul.f32 %v1721, %v1757
  %v1790 = vmul.f32 %v1722, %v1757
  %v1791 = vmul.f32 %v1723, %v1757
  %v1792 = vmul.f32 %v1724, %v1757
  %v1793 = vmul.f32 %v1725, %v1757
  %v1794 = vmul.f32 %v1726, %v1757
  %v1795 = vmul.f32 %v1727, %v1757
  %v1796 = vmul.f32 %v1728, %v1757
  %v1797 = vmul.f32 %v1729, %v1757
  %v1798 = vmul.f32 %v1730, %v1757
  %v1799 = vmul.f32 %v1731, %v1757
  %v1800 = vmul.f32 %v1732, %v1757
  %v1801 = vmul.f32 %v1733, %v1757
  %v1802 = vmul.f32 %v1734, %v1757
  %v1803 = vmul.f32 %v1735, %v1757
  %v1804 = vmul.f32 %v1736, %v1757
  %v1805 = vmul.f32 %v1737, %v1757
  %v1806 = vmul.f32 %v1738, %v1757
  %v1807 = vmul.f32 %v1739, %v1757
  %v1808 = vmul.f32 %v1740, %v1757
  %v1809 = vmul.f32 %v1741, %v1757
  %v1810 = vmul.f32 %v1742, %v1757
  %v1811 = vmul.f32 %v1743, %v1757
  %v1812 = vmul.f32 %v1744, %v1757
  %v1813 = vmul.f32 %v1745, %v1757
  %v1814 = vmul.f32 %v1746, %v1757
  %v1815 = vmul.f32 %v1747, %v1757
  %v1816 = vmul.f32 %v1748, %v1757
  %v1817 = vmul.f32 %v1749, %v1757
  %v1818 = vmul.f32 %v1750, %v1757
  %v1819 = vmul.f32 %v1751, %v1757
  %v1820 = vmul.f32 %v1752, %v1757
  %v1821 = vmul.f32 %v1753, %v1757
  %v1822 = vadd.f32 %v1626, %v1758
  %v1823 = vadd.f32 %v1627, %v1759
  %v1824 = vadd.f32 %v1628, %v1760
  %v1825 = vadd.f32 %v1629, %v1761
  %v1826 = vadd.f32 %v1630, %v1762
  %v1827 = vadd.f32 %v1631, %v1763
  %v1828 = vadd.f32 %v1632, %v1764
  %v1829 = vadd.f32 %v1633, %v1765
  %v1830 = vadd.f32 %v1634, %v1766
  %v1831 = vadd.f32 %v1635, %v1767
  %v1832 = vadd.f32 %v1636, %v1768
  %v1833 = vadd.f32 %v1637, %v1769
  %v1834 = vadd.f32 %v1638, %v1770
  %v1835 = vadd.f32 %v1639, %v1771
  %v1836 = vadd.f32 %v1640, %v1772
  %v1837 = vadd.f32 %v1641, %v1773
  %v1838 = vadd.f32 %v1642, %v1774
  %v1839 = vadd.f32 %v1643, %v1775
  %v1840 = vadd.f32 %v1644, %v1776
  %v1841 = vadd.f32 %v1645, %v1777
  %v1842 = vadd.f32 %v1646, %v1778
  %v1843 = vadd.f32 %v1647, %v1779
  %v1844 = vadd.f32 %v1648, %v1780
  %v1845 = vadd.f32 %v1649, %v1781
  %v1846 = vadd.f32 %v1650, %v1782
  %v1847 = vadd.f32 %v1651, %v1783
  %v1848 = vadd.f32 %v1652, %v1784
  %v1849 = vadd.f32 %v1653, %v1785
  %v1850 = vadd.f32 %v1654, %v1786
  %v1851 = vadd.f32 %v1655, %v1787
  %v1852 = vadd.f32 %v1656, %v1788
  %v1853 = vadd.f32 %v1657, %v1789
  %v1854 = vadd.f32 %v1658, %v1790
  %v1855 = vadd.f32 %v1659, %v1791
  %v1856 = vadd.f32 %v1660, %v1792
  %v1857 = vadd.f32 %v1661, %v1793
  %v1858 = vadd.f32 %v1662, %v1794
  %v1859 = vadd.f32 %v1663, %v1795
  %v1860 = vadd.f32 %v1664, %v1796
  %v1861 = vadd.f32 %v1665, %v1797
  %v1862 = vadd.f32 %v1666, %v1798
  %v1863 = vadd.f32 %v1667, %v1799
  %v1864 = vadd.f32 %v1668, %v1800
  %v1865 = vadd.f32 %v1669, %v1801
  %v1866 = vadd.f32 %v1670, %v1802
  %v1867 = vadd.f32 %v1671, %v1803
  %v1868 = vadd.f32 %v1672, %v1804
  %v1869 = vadd.f32 %v1673, %v1805
  %v1870 = vadd.f32 %v1674, %v1806
  %v1871 = vadd.f32 %v1675, %v1807
  %v1872 = vadd.f32 %v1676, %v1808
  %v1873 = vadd.f32 %v1677, %v1809
  %v1874 = vadd.f32 %v1678, %v1810
  %v1875 = vadd.f32 %v1679, %v1811
  %v1876 = vadd.f32 %v1680, %v1812
  %v1877 = vadd.f32 %v1681, %v1813
  %v1878 = vadd.f32 %v1682, %v1814
  %v1879 = vadd.f32 %v1683, %v1815
  %v1880 = vadd.f32 %v1684, %v1816
  %v1881 = vadd.f32 %v1685, %v1817
  %v1882 = vadd.f32 %v1686, %v1818
  %v1883 = vadd.f32 %v1687, %v1819
  %v1884 = vadd.f32 %v1688, %v1820
  %v1885 = vadd.f32 %v1689, %v1821
  %v1886 = vld [vmem:[%s1230 + $0x7] sm:$0xff]
  %v1887 = vld [vmem:[%s1230 + $0xf] sm:$0xff]
  %v1888 = vld [vmem:[%s1230 + $0x27] sm:$0xff]
  %v1889 = vld [vmem:[%s1230 + $0x2f] sm:$0xff]
  %v1890 = vld [vmem:[%s1230 + $0x47] sm:$0xff]
  %v1891 = vld [vmem:[%s1230 + $0x4f] sm:$0xff]
  %v1892 = vld [vmem:[%s1230 + $0x67] sm:$0xff]
  %v1893 = vld [vmem:[%s1230 + $0x6f] sm:$0xff]
  %v1894 = vld [vmem:[%s1230 + $0x87] sm:$0xff]
  %v1895 = vld [vmem:[%s1230 + $0x8f] sm:$0xff]
  %v1896 = vld [vmem:[%s1230 + $0xa7] sm:$0xff]
  %v1897 = vld [vmem:[%s1230 + $0xaf] sm:$0xff]
  %v1898 = vld [vmem:[%s1230 + $0xc7] sm:$0xff]
  %v1899 = vld [vmem:[%s1230 + $0xcf] sm:$0xff]
  %v1900 = vld [vmem:[%s1230 + $0xe7] sm:$0xff]
  %v1901 = vld [vmem:[%s1230 + $0xef] sm:$0xff]
  %v1902 = vld [vmem:[%s1230 + $0x107] sm:$0xff]
  %v1903 = vld [vmem:[%s1230 + $0x10f] sm:$0xff]
  %v1904 = vld [vmem:[%s1230 + $0x127] sm:$0xff]
  %v1905 = vld [vmem:[%s1230 + $0x12f] sm:$0xff]
  %v1906 = vld [vmem:[%s1230 + $0x147] sm:$0xff]
  %v1907 = vld [vmem:[%s1230 + $0x14f] sm:$0xff]
  %v1908 = vld [vmem:[%s1230 + $0x167] sm:$0xff]
  %v1909 = vld [vmem:[%s1230 + $0x16f] sm:$0xff]
  %v1910 = vld [vmem:[%s1230 + $0x187] sm:$0xff]
  %v1911 = vld [vmem:[%s1230 + $0x18f] sm:$0xff]
  %v1912 = vld [vmem:[%s1230 + $0x1a7] sm:$0xff]
  %v1913 = vld [vmem:[%s1230 + $0x1af] sm:$0xff]
  %v1914 = vld [vmem:[%s1230 + $0x1c7] sm:$0xff]
  %v1915 = vld [vmem:[%s1230 + $0x1cf] sm:$0xff]
  %v1916 = vld [vmem:[%s1230 + $0x1e7] sm:$0xff]
  %v1917 = vld [vmem:[%s1230 + $0x1ef] sm:$0xff]
  %v1918 = vld [vmem:[%s1230 + $0x247] sm:$0xff]
  %v1919 = vld [vmem:[%s1230 + $0x24f] sm:$0xff]
  %v1920 = vld [vmem:[%s1230 + $0x267] sm:$0xff]
  %v1921 = vld [vmem:[%s1230 + $0x26f] sm:$0xff]
  %v1922 = vld [vmem:[%s1230 + $0x287] sm:$0xff]
  %v1923 = vld [vmem:[%s1230 + $0x28f] sm:$0xff]
  %v1924 = vld [vmem:[%s1230 + $0x2a7] sm:$0xff]
  %v1925 = vld [vmem:[%s1230 + $0x2af] sm:$0xff]
  %v1926 = vld [vmem:[%s1230 + $0x2c7] sm:$0xff]
  %v1927 = vld [vmem:[%s1230 + $0x2cf] sm:$0xff]
  %v1928 = vld [vmem:[%s1230 + $0x2e7] sm:$0xff]
  %v1929 = vld [vmem:[%s1230 + $0x2ef] sm:$0xff]
  %v1930 = vld [vmem:[%s1230 + $0x307] sm:$0xff]
  %v1931 = vld [vmem:[%s1230 + $0x30f] sm:$0xff]
  %v1932 = vld [vmem:[%s1230 + $0x327] sm:$0xff]
  %v1933 = vld [vmem:[%s1230 + $0x32f] sm:$0xff]
  %v1934 = vld [vmem:[%s1230 + $0x347] sm:$0xff]
  %v1935 = vld [vmem:[%s1230 + $0x34f] sm:$0xff]
  %v1936 = vld [vmem:[%s1230 + $0x367] sm:$0xff]
  %v1937 = vld [vmem:[%s1230 + $0x36f] sm:$0xff]
  %v1938 = vld [vmem:[%s1230 + $0x387] sm:$0xff]
  %v1939 = vld [vmem:[%s1230 + $0x38f] sm:$0xff]
  %v1940 = vld [vmem:[%s1230 + $0x3a7] sm:$0xff]
  %v1941 = vld [vmem:[%s1230 + $0x3af] sm:$0xff]
  %v1942 = vld [vmem:[%s1230 + $0x3c7] sm:$0xff]
  %v1943 = vld [vmem:[%s1230 + $0x3cf] sm:$0xff]
  %v1944 = vld [vmem:[%s1230 + $0x3e7] sm:$0xff]
  %v1945 = vld [vmem:[%s1230 + $0x3ef] sm:$0xff]
  %v1946 = vld [vmem:[%s1230 + $0x407] sm:$0xff]
  %v1947 = vld [vmem:[%s1230 + $0x40f] sm:$0xff]
  %v1948 = vld [vmem:[%s1230 + $0x427] sm:$0xff]
  %v1949 = vld [vmem:[%s1230 + $0x42f] sm:$0xff]
  %v1950 = vlaneseq
  %v1951 = vshrl.u32 %v1950, 7
  %v1952 = vsub.s32 0, %v1951
  %v1953 = vrot.slane %v1296, %v1952
  %v1954 = vmul.f32 %v1886, %v1953
  %v1955 = vmul.f32 %v1887, %v1953
  %v1956 = vmul.f32 %v1888, %v1953
  %v1957 = vmul.f32 %v1889, %v1953
  %v1958 = vmul.f32 %v1890, %v1953
  %v1959 = vmul.f32 %v1891, %v1953
  %v1960 = vmul.f32 %v1892, %v1953
  %v1961 = vmul.f32 %v1893, %v1953
  %v1962 = vmul.f32 %v1894, %v1953
  %v1963 = vmul.f32 %v1895, %v1953
  %v1964 = vmul.f32 %v1896, %v1953
  %v1965 = vmul.f32 %v1897, %v1953
  %v1966 = vmul.f32 %v1898, %v1953
  %v1967 = vmul.f32 %v1899, %v1953
  %v1968 = vmul.f32 %v1900, %v1953
  %v1969 = vmul.f32 %v1901, %v1953
  %v1970 = vmul.f32 %v1902, %v1953
  %v1971 = vmul.f32 %v1903, %v1953
  %v1972 = vmul.f32 %v1904, %v1953
  %v1973 = vmul.f32 %v1905, %v1953
  %v1974 = vmul.f32 %v1906, %v1953
  %v1975 = vmul.f32 %v1907, %v1953
  %v1976 = vmul.f32 %v1908, %v1953
  %v1977 = vmul.f32 %v1909, %v1953
  %v1978 = vmul.f32 %v1910, %v1953
  %v1979 = vmul.f32 %v1911, %v1953
  %v1980 = vmul.f32 %v1912, %v1953
  %v1981 = vmul.f32 %v1913, %v1953
  %v1982 = vmul.f32 %v1914, %v1953
  %v1983 = vmul.f32 %v1915, %v1953
  %v1984 = vmul.f32 %v1916, %v1953
  %v1985 = vmul.f32 %v1917, %v1953
  %v1986 = vmul.f32 %v1918, %v1953
  %v1987 = vmul.f32 %v1919, %v1953
  %v1988 = vmul.f32 %v1920, %v1953
  %v1989 = vmul.f32 %v1921, %v1953
  %v1990 = vmul.f32 %v1922, %v1953
  %v1991 = vmul.f32 %v1923, %v1953
  %v1992 = vmul.f32 %v1924, %v1953
  %v1993 = vmul.f32 %v1925, %v1953
  %v1994 = vmul.f32 %v1926, %v1953
  %v1995 = vmul.f32 %v1927, %v1953
  %v1996 = vmul.f32 %v1928, %v1953
  %v1997 = vmul.f32 %v1929, %v1953
  %v1998 = vmul.f32 %v1930, %v1953
  %v1999 = vmul.f32 %v1931, %v1953
  %v2000 = vmul.f32 %v1932, %v1953
  %v2001 = vmul.f32 %v1933, %v1953
  %v2002 = vmul.f32 %v1934, %v1953
  %v2003 = vmul.f32 %v1935, %v1953
  %v2004 = vmul.f32 %v1936, %v1953
  %v2005 = vmul.f32 %v1937, %v1953
  %v2006 = vmul.f32 %v1938, %v1953
  %v2007 = vmul.f32 %v1939, %v1953
  %v2008 = vmul.f32 %v1940, %v1953
  %v2009 = vmul.f32 %v1941, %v1953
  %v2010 = vmul.f32 %v1942, %v1953
  %v2011 = vmul.f32 %v1943, %v1953
  %v2012 = vmul.f32 %v1944, %v1953
  %v2013 = vmul.f32 %v1945, %v1953
  %v2014 = vmul.f32 %v1946, %v1953
  %v2015 = vmul.f32 %v1947, %v1953
  %v2016 = vmul.f32 %v1948, %v1953
  %v2017 = vmul.f32 %v1949, %v1953
  %v2018 = vadd.f32 %v1822, %v1954
  %v2019 = vadd.f32 %v1823, %v1955
  %v2020 = vadd.f32 %v1824, %v1956
  %v2021 = vadd.f32 %v1825, %v1957
  %v2022 = vadd.f32 %v1826, %v1958
  %v2023 = vadd.f32 %v1827, %v1959
  %v2024 = vadd.f32 %v1828, %v1960
  %v2025 = vadd.f32 %v1829, %v1961
  %v2026 = vadd.f32 %v1830, %v1962
  %v2027 = vadd.f32 %v1831, %v1963
  %v2028 = vadd.f32 %v1832, %v1964
  %v2029 = vadd.f32 %v1833, %v1965
  %v2030 = vadd.f32 %v1834, %v1966
  %v2031 = vadd.f32 %v1835, %v1967
  %v2032 = vadd.f32 %v1836, %v1968
  %v2033 = vadd.f32 %v1837, %v1969
  %v2034 = vadd.f32 %v1838, %v1970
  %v2035 = vadd.f32 %v1839, %v1971
  %v2036 = vadd.f32 %v1840, %v1972
  %v2037 = vadd.f32 %v1841, %v1973
  %v2038 = vadd.f32 %v1842, %v1974
  %v2039 = vadd.f32 %v1843, %v1975
  %v2040 = vadd.f32 %v1844, %v1976
  %v2041 = vadd.f32 %v1845, %v1977
  %v2042 = vadd.f32 %v1846, %v1978
  %v2043 = vadd.f32 %v1847, %v1979
  %v2044 = vadd.f32 %v1848, %v1980
  %v2045 = vadd.f32 %v1849, %v1981
  %v2046 = vadd.f32 %v1850, %v1982
  %v2047 = vadd.f32 %v1851, %v1983
  %v2048 = vadd.f32 %v1852, %v1984
  %v2049 = vadd.f32 %v1853, %v1985
  %v2050 = vadd.f32 %v1854, %v1986
  %v2051 = vadd.f32 %v1855, %v1987
  %v2052 = vadd.f32 %v1856, %v1988
  %v2053 = vadd.f32 %v1857, %v1989
  %v2054 = vadd.f32 %v1858, %v1990
  %v2055 = vadd.f32 %v1859, %v1991
  %v2056 = vadd.f32 %v1860, %v1992
  %v2057 = vadd.f32 %v1861, %v1993
  %v2058 = vadd.f32 %v1862, %v1994
  %v2059 = vadd.f32 %v1863, %v1995
  %v2060 = vadd.f32 %v1864, %v1996
  %v2061 = vadd.f32 %v1865, %v1997
  %v2062 = vadd.f32 %v1866, %v1998
  %v2063 = vadd.f32 %v1867, %v1999
  %v2064 = vadd.f32 %v1868, %v2000
  %v2065 = vadd.f32 %v1869, %v2001
  %v2066 = vadd.f32 %v1870, %v2002
  %v2067 = vadd.f32 %v1871, %v2003
  %v2068 = vadd.f32 %v1872, %v2004
  %v2069 = vadd.f32 %v1873, %v2005
  %v2070 = vadd.f32 %v1874, %v2006
  %v2071 = vadd.f32 %v1875, %v2007
  %v2072 = vadd.f32 %v1876, %v2008
  %v2073 = vadd.f32 %v1877, %v2009
  %v2074 = vadd.f32 %v1878, %v2010
  %v2075 = vadd.f32 %v1879, %v2011
  %v2076 = vadd.f32 %v1880, %v2012
  %v2077 = vadd.f32 %v1881, %v2013
  %v2078 = vadd.f32 %v1882, %v2014
  %v2079 = vadd.f32 %v1883, %v2015
  %v2080 = vadd.f32 %v1884, %v2016
  %v2081 = vadd.f32 %v1885, %v2017
  %v2082 = vld [vmem:[%s1230 + $0x8] sm:$0xff]
  %v2083 = vld [vmem:[%s1230 + $0x10] sm:$0xff]
  %v2084 = vld [vmem:[%s1230 + $0x28] sm:$0xff]
  %v2085 = vld [vmem:[%s1230 + $0x30] sm:$0xff]
  %v2086 = vld [vmem:[%s1230 + $0x48] sm:$0xff]
  %v2087 = vld [vmem:[%s1230 + $0x50] sm:$0xff]
  %v2088 = vld [vmem:[%s1230 + $0x68] sm:$0xff]
  %v2089 = vld [vmem:[%s1230 + $0x70] sm:$0xff]
  %v2090 = vld [vmem:[%s1230 + $0x88] sm:$0xff]
  %v2091 = vld [vmem:[%s1230 + $0x90] sm:$0xff]
  %v2092 = vld [vmem:[%s1230 + $0xa8] sm:$0xff]
  %v2093 = vld [vmem:[%s1230 + $0xb0] sm:$0xff]
  %v2094 = vld [vmem:[%s1230 + $0xc8] sm:$0xff]
  %v2095 = vld [vmem:[%s1230 + $0xd0] sm:$0xff]
  %v2096 = vld [vmem:[%s1230 + $0xe8] sm:$0xff]
  %v2097 = vld [vmem:[%s1230 + $0xf0] sm:$0xff]
  %v2098 = vld [vmem:[%s1230 + $0x108] sm:$0xff]
  %v2099 = vld [vmem:[%s1230 + $0x110] sm:$0xff]
  %v2100 = vld [vmem:[%s1230 + $0x128] sm:$0xff]
  %v2101 = vld [vmem:[%s1230 + $0x130] sm:$0xff]
  %v2102 = vld [vmem:[%s1230 + $0x148] sm:$0xff]
  %v2103 = vld [vmem:[%s1230 + $0x150] sm:$0xff]
  %v2104 = vld [vmem:[%s1230 + $0x168] sm:$0xff]
  %v2105 = vld [vmem:[%s1230 + $0x170] sm:$0xff]
  %v2106 = vld [vmem:[%s1230 + $0x188] sm:$0xff]
  %v2107 = vld [vmem:[%s1230 + $0x190] sm:$0xff]
  %v2108 = vld [vmem:[%s1230 + $0x1a8] sm:$0xff]
  %v2109 = vld [vmem:[%s1230 + $0x1b0] sm:$0xff]
  %v2110 = vld [vmem:[%s1230 + $0x1c8] sm:$0xff]
  %v2111 = vld [vmem:[%s1230 + $0x1d0] sm:$0xff]
  %v2112 = vld [vmem:[%s1230 + $0x1e8] sm:$0xff]
  %v2113 = vld [vmem:[%s1230 + $0x1f0] sm:$0xff]
  %v2114 = vld [vmem:[%s1230 + $0x248] sm:$0xff]
  %v2115 = vld [vmem:[%s1230 + $0x250] sm:$0xff]
  %v2116 = vld [vmem:[%s1230 + $0x268] sm:$0xff]
  %v2117 = vld [vmem:[%s1230 + $0x270] sm:$0xff]
  %v2118 = vld [vmem:[%s1230 + $0x288] sm:$0xff]
  %v2119 = vld [vmem:[%s1230 + $0x290] sm:$0xff]
  %v2120 = vld [vmem:[%s1230 + $0x2a8] sm:$0xff]
  %v2121 = vld [vmem:[%s1230 + $0x2b0] sm:$0xff]
  %v2122 = vld [vmem:[%s1230 + $0x2c8] sm:$0xff]
  %v2123 = vld [vmem:[%s1230 + $0x2d0] sm:$0xff]
  %v2124 = vld [vmem:[%s1230 + $0x2e8] sm:$0xff]
  %v2125 = vld [vmem:[%s1230 + $0x2f0] sm:$0xff]
  %v2126 = vld [vmem:[%s1230 + $0x308] sm:$0xff]
  %v2127 = vld [vmem:[%s1230 + $0x310] sm:$0xff]
  %v2128 = vld [vmem:[%s1230 + $0x328] sm:$0xff]
  %v2129 = vld [vmem:[%s1230 + $0x330] sm:$0xff]
  %v2130 = vld [vmem:[%s1230 + $0x348] sm:$0xff]
  %v2131 = vld [vmem:[%s1230 + $0x350] sm:$0xff]
  %v2132 = vld [vmem:[%s1230 + $0x368] sm:$0xff]
  %v2133 = vld [vmem:[%s1230 + $0x370] sm:$0xff]
  %v2134 = vld [vmem:[%s1230 + $0x388] sm:$0xff]
  %v2135 = vld [vmem:[%s1230 + $0x390] sm:$0xff]
  %v2136 = vld [vmem:[%s1230 + $0x3a8] sm:$0xff]
  %v2137 = vld [vmem:[%s1230 + $0x3b0] sm:$0xff]
  %v2138 = vld [vmem:[%s1230 + $0x3c8] sm:$0xff]
  %v2139 = vld [vmem:[%s1230 + $0x3d0] sm:$0xff]
  %v2140 = vld [vmem:[%s1230 + $0x3e8] sm:$0xff]
  %v2141 = vld [vmem:[%s1230 + $0x3f0] sm:$0xff]
  %v2142 = vld [vmem:[%s1230 + $0x408] sm:$0xff]
  %v2143 = vld [vmem:[%s1230 + $0x410] sm:$0xff]
  %v2144 = vld [vmem:[%s1230 + $0x428] sm:$0xff]
  %v2145 = vld [vmem:[%s1230 + $0x430] sm:$0xff]
  %v2146 = vlaneseq
  %v2147 = vshrl.u32 %v2146, 7
  %v2148 = vsub.s32 1, %v2147
  %v2149 = vrot.slane %v1296, %v2148
  %v2150 = vmul.f32 %v2082, %v2149
  %v2151 = vmul.f32 %v2083, %v2149
  %v2152 = vmul.f32 %v2084, %v2149
  %v2153 = vmul.f32 %v2085, %v2149
  %v2154 = vmul.f32 %v2086, %v2149
  %v2155 = vmul.f32 %v2087, %v2149
  %v2156 = vmul.f32 %v2088, %v2149
  %v2157 = vmul.f32 %v2089, %v2149
  %v2158 = vmul.f32 %v2090, %v2149
  %v2159 = vmul.f32 %v2091, %v2149
  %v2160 = vmul.f32 %v2092, %v2149
  %v2161 = vmul.f32 %v2093, %v2149
  %v2162 = vmul.f32 %v2094, %v2149
  %v2163 = vmul.f32 %v2095, %v2149
  %v2164 = vmul.f32 %v2096, %v2149
  %v2165 = vmul.f32 %v2097, %v2149
  %v2166 = vmul.f32 %v2098, %v2149
  %v2167 = vmul.f32 %v2099, %v2149
  %v2168 = vmul.f32 %v2100, %v2149
  %v2169 = vmul.f32 %v2101, %v2149
  %v2170 = vmul.f32 %v2102, %v2149
  %v2171 = vmul.f32 %v2103, %v2149
  %v2172 = vmul.f32 %v2104, %v2149
  %v2173 = vmul.f32 %v2105, %v2149
  %v2174 = vmul.f32 %v2106, %v2149
  %v2175 = vmul.f32 %v2107, %v2149
  %v2176 = vmul.f32 %v2108, %v2149
  %v2177 = vmul.f32 %v2109, %v2149
  %v2178 = vmul.f32 %v2110, %v2149
  %v2179 = vmul.f32 %v2111, %v2149
  %v2180 = vmul.f32 %v2112, %v2149
  %v2181 = vmul.f32 %v2113, %v2149
  %v2182 = vmul.f32 %v2114, %v2149
  %v2183 = vmul.f32 %v2115, %v2149
  %v2184 = vmul.f32 %v2116, %v2149
  %v2185 = vmul.f32 %v2117, %v2149
  %v2186 = vmul.f32 %v2118, %v2149
  %v2187 = vmul.f32 %v2119, %v2149
  %v2188 = vmul.f32 %v2120, %v2149
  %v2189 = vmul.f32 %v2121, %v2149
  %v2190 = vmul.f32 %v2122, %v2149
  %v2191 = vmul.f32 %v2123, %v2149
  %v2192 = vmul.f32 %v2124, %v2149
  %v2193 = vmul.f32 %v2125, %v2149
  %v2194 = vmul.f32 %v2126, %v2149
  %v2195 = vmul.f32 %v2127, %v2149
  %v2196 = vmul.f32 %v2128, %v2149
  %v2197 = vmul.f32 %v2129, %v2149
  %v2198 = vmul.f32 %v2130, %v2149
  %v2199 = vmul.f32 %v2131, %v2149
  %v2200 = vmul.f32 %v2132, %v2149
  %v2201 = vmul.f32 %v2133, %v2149
  %v2202 = vmul.f32 %v2134, %v2149
  %v2203 = vmul.f32 %v2135, %v2149
  %v2204 = vmul.f32 %v2136, %v2149
  %v2205 = vmul.f32 %v2137, %v2149
  %v2206 = vmul.f32 %v2138, %v2149
  %v2207 = vmul.f32 %v2139, %v2149
  %v2208 = vmul.f32 %v2140, %v2149
  %v2209 = vmul.f32 %v2141, %v2149
  %v2210 = vmul.f32 %v2142, %v2149
  %v2211 = vmul.f32 %v2143, %v2149
  %v2212 = vmul.f32 %v2144, %v2149
  %v2213 = vmul.f32 %v2145, %v2149
  %v2214 = vadd.f32 %v2018, %v2150
  %v2215 = vadd.f32 %v2019, %v2151
  %v2216 = vadd.f32 %v2020, %v2152
  %v2217 = vadd.f32 %v2021, %v2153
  %v2218 = vadd.f32 %v2022, %v2154
  %v2219 = vadd.f32 %v2023, %v2155
  %v2220 = vadd.f32 %v2024, %v2156
  %v2221 = vadd.f32 %v2025, %v2157
  %v2222 = vadd.f32 %v2026, %v2158
  %v2223 = vadd.f32 %v2027, %v2159
  %v2224 = vadd.f32 %v2028, %v2160
  %v2225 = vadd.f32 %v2029, %v2161
  %v2226 = vadd.f32 %v2030, %v2162
  %v2227 = vadd.f32 %v2031, %v2163
  %v2228 = vadd.f32 %v2032, %v2164
  %v2229 = vadd.f32 %v2033, %v2165
  %v2230 = vadd.f32 %v2034, %v2166
  %v2231 = vadd.f32 %v2035, %v2167
  %v2232 = vadd.f32 %v2036, %v2168
  %v2233 = vadd.f32 %v2037, %v2169
  %v2234 = vadd.f32 %v2038, %v2170
  %v2235 = vadd.f32 %v2039, %v2171
  %v2236 = vadd.f32 %v2040, %v2172
  %v2237 = vadd.f32 %v2041, %v2173
  %v2238 = vadd.f32 %v2042, %v2174
  %v2239 = vadd.f32 %v2043, %v2175
  %v2240 = vadd.f32 %v2044, %v2176
  %v2241 = vadd.f32 %v2045, %v2177
  %v2242 = vadd.f32 %v2046, %v2178
  %v2243 = vadd.f32 %v2047, %v2179
  %v2244 = vadd.f32 %v2048, %v2180
  %v2245 = vadd.f32 %v2049, %v2181
  %v2246 = vadd.f32 %v2050, %v2182
  %v2247 = vadd.f32 %v2051, %v2183
  %v2248 = vadd.f32 %v2052, %v2184
  %v2249 = vadd.f32 %v2053, %v2185
  %v2250 = vadd.f32 %v2054, %v2186
  %v2251 = vadd.f32 %v2055, %v2187
  %v2252 = vadd.f32 %v2056, %v2188
  %v2253 = vadd.f32 %v2057, %v2189
  %v2254 = vadd.f32 %v2058, %v2190
  %v2255 = vadd.f32 %v2059, %v2191
  %v2256 = vadd.f32 %v2060, %v2192
  %v2257 = vadd.f32 %v2061, %v2193
  %v2258 = vadd.f32 %v2062, %v2194
  %v2259 = vadd.f32 %v2063, %v2195
  %v2260 = vadd.f32 %v2064, %v2196
  %v2261 = vadd.f32 %v2065, %v2197
  %v2262 = vadd.f32 %v2066, %v2198
  %v2263 = vadd.f32 %v2067, %v2199
  %v2264 = vadd.f32 %v2068, %v2200
  %v2265 = vadd.f32 %v2069, %v2201
  %v2266 = vadd.f32 %v2070, %v2202
  %v2267 = vadd.f32 %v2071, %v2203
  %v2268 = vadd.f32 %v2072, %v2204
  %v2269 = vadd.f32 %v2073, %v2205
  %v2270 = vadd.f32 %v2074, %v2206
  %v2271 = vadd.f32 %v2075, %v2207
  %v2272 = vadd.f32 %v2076, %v2208
  %v2273 = vadd.f32 %v2077, %v2209
  %v2274 = vadd.f32 %v2078, %v2210
  %v2275 = vadd.f32 %v2079, %v2211
  %v2276 = vadd.f32 %v2080, %v2212
  %v2277 = vadd.f32 %v2081, %v2213
  %v2278 = vld [vmem:[%s1230 + $0x9] sm:$0xff]
  %v2279 = vld [vmem:[%s1230 + $0x11] sm:$0xff]
  %v2280 = vld [vmem:[%s1230 + $0x29] sm:$0xff]
  %v2281 = vld [vmem:[%s1230 + $0x31] sm:$0xff]
  %v2282 = vld [vmem:[%s1230 + $0x49] sm:$0xff]
  %v2283 = vld [vmem:[%s1230 + $0x51] sm:$0xff]
  %v2284 = vld [vmem:[%s1230 + $0x69] sm:$0xff]
  %v2285 = vld [vmem:[%s1230 + $0x71] sm:$0xff]
  %v2286 = vld [vmem:[%s1230 + $0x89] sm:$0xff]
  %v2287 = vld [vmem:[%s1230 + $0x91] sm:$0xff]
  %v2288 = vld [vmem:[%s1230 + $0xa9] sm:$0xff]
  %v2289 = vld [vmem:[%s1230 + $0xb1] sm:$0xff]
  %v2290 = vld [vmem:[%s1230 + $0xc9] sm:$0xff]
  %v2291 = vld [vmem:[%s1230 + $0xd1] sm:$0xff]
  %v2292 = vld [vmem:[%s1230 + $0xe9] sm:$0xff]
  %v2293 = vld [vmem:[%s1230 + $0xf1] sm:$0xff]
  %v2294 = vld [vmem:[%s1230 + $0x109] sm:$0xff]
  %v2295 = vld [vmem:[%s1230 + $0x111] sm:$0xff]
  %v2296 = vld [vmem:[%s1230 + $0x129] sm:$0xff]
  %v2297 = vld [vmem:[%s1230 + $0x131] sm:$0xff]
  %v2298 = vld [vmem:[%s1230 + $0x149] sm:$0xff]
  %v2299 = vld [vmem:[%s1230 + $0x151] sm:$0xff]
  %v2300 = vld [vmem:[%s1230 + $0x169] sm:$0xff]
  %v2301 = vld [vmem:[%s1230 + $0x171] sm:$0xff]
  %v2302 = vld [vmem:[%s1230 + $0x189] sm:$0xff]
  %v2303 = vld [vmem:[%s1230 + $0x191] sm:$0xff]
  %v2304 = vld [vmem:[%s1230 + $0x1a9] sm:$0xff]
  %v2305 = vld [vmem:[%s1230 + $0x1b1] sm:$0xff]
  %v2306 = vld [vmem:[%s1230 + $0x1c9] sm:$0xff]
  %v2307 = vld [vmem:[%s1230 + $0x1d1] sm:$0xff]
  %v2308 = vld [vmem:[%s1230 + $0x1e9] sm:$0xff]
  %v2309 = vld [vmem:[%s1230 + $0x1f1] sm:$0xff]
  %v2310 = vld [vmem:[%s1230 + $0x249] sm:$0xff]
  %v2311 = vld [vmem:[%s1230 + $0x251] sm:$0xff]
  %v2312 = vld [vmem:[%s1230 + $0x269] sm:$0xff]
  %v2313 = vld [vmem:[%s1230 + $0x271] sm:$0xff]
  %v2314 = vld [vmem:[%s1230 + $0x289] sm:$0xff]
  %v2315 = vld [vmem:[%s1230 + $0x291] sm:$0xff]
  %v2316 = vld [vmem:[%s1230 + $0x2a9] sm:$0xff]
  %v2317 = vld [vmem:[%s1230 + $0x2b1] sm:$0xff]
  %v2318 = vld [vmem:[%s1230 + $0x2c9] sm:$0xff]
  %v2319 = vld [vmem:[%s1230 + $0x2d1] sm:$0xff]
  %v2320 = vld [vmem:[%s1230 + $0x2e9] sm:$0xff]
  %v2321 = vld [vmem:[%s1230 + $0x2f1] sm:$0xff]
  %v2322 = vld [vmem:[%s1230 + $0x309] sm:$0xff]
  %v2323 = vld [vmem:[%s1230 + $0x311] sm:$0xff]
  %v2324 = vld [vmem:[%s1230 + $0x329] sm:$0xff]
  %v2325 = vld [vmem:[%s1230 + $0x331] sm:$0xff]
  %v2326 = vld [vmem:[%s1230 + $0x349] sm:$0xff]
  %v2327 = vld [vmem:[%s1230 + $0x351] sm:$0xff]
  %v2328 = vld [vmem:[%s1230 + $0x369] sm:$0xff]
  %v2329 = vld [vmem:[%s1230 + $0x371] sm:$0xff]
  %v2330 = vld [vmem:[%s1230 + $0x389] sm:$0xff]
  %v2331 = vld [vmem:[%s1230 + $0x391] sm:$0xff]
  %v2332 = vld [vmem:[%s1230 + $0x3a9] sm:$0xff]
  %v2333 = vld [vmem:[%s1230 + $0x3b1] sm:$0xff]
  %v2334 = vld [vmem:[%s1230 + $0x3c9] sm:$0xff]
  %v2335 = vld [vmem:[%s1230 + $0x3d1] sm:$0xff]
  %v2336 = vld [vmem:[%s1230 + $0x3e9] sm:$0xff]
  %v2337 = vld [vmem:[%s1230 + $0x3f1] sm:$0xff]
  %v2338 = vld [vmem:[%s1230 + $0x409] sm:$0xff]
  %v2339 = vld [vmem:[%s1230 + $0x411] sm:$0xff]
  %v2340 = vld [vmem:[%s1230 + $0x429] sm:$0xff]
  %v2341 = vld [vmem:[%s1230 + $0x431] sm:$0xff]
  %v2342 = vlaneseq
  %v2343 = vshrl.u32 %v2342, 7
  %v2344 = vsub.s32 2, %v2343
  %v2345 = vrot.slane %v1296, %v2344
  %v2346 = vmul.f32 %v2278, %v2345
  %v2347 = vmul.f32 %v2279, %v2345
  %v2348 = vmul.f32 %v2280, %v2345
  %v2349 = vmul.f32 %v2281, %v2345
  %v2350 = vmul.f32 %v2282, %v2345
  %v2351 = vmul.f32 %v2283, %v2345
  %v2352 = vmul.f32 %v2284, %v2345
  %v2353 = vmul.f32 %v2285, %v2345
  %v2354 = vmul.f32 %v2286, %v2345
  %v2355 = vmul.f32 %v2287, %v2345
  %v2356 = vmul.f32 %v2288, %v2345
  %v2357 = vmul.f32 %v2289, %v2345
  %v2358 = vmul.f32 %v2290, %v2345
  %v2359 = vmul.f32 %v2291, %v2345
  %v2360 = vmul.f32 %v2292, %v2345
  %v2361 = vmul.f32 %v2293, %v2345
  %v2362 = vmul.f32 %v2294, %v2345
  %v2363 = vmul.f32 %v2295, %v2345
  %v2364 = vmul.f32 %v2296, %v2345
  %v2365 = vmul.f32 %v2297, %v2345
  %v2366 = vmul.f32 %v2298, %v2345
  %v2367 = vmul.f32 %v2299, %v2345
  %v2368 = vmul.f32 %v2300, %v2345
  %v2369 = vmul.f32 %v2301, %v2345
  %v2370 = vmul.f32 %v2302, %v2345
  %v2371 = vmul.f32 %v2303, %v2345
  %v2372 = vmul.f32 %v2304, %v2345
  %v2373 = vmul.f32 %v2305, %v2345
  %v2374 = vmul.f32 %v2306, %v2345
  %v2375 = vmul.f32 %v2307, %v2345
  %v2376 = vmul.f32 %v2308, %v2345
  %v2377 = vmul.f32 %v2309, %v2345
  %v2378 = vmul.f32 %v2310, %v2345
  %v2379 = vmul.f32 %v2311, %v2345
  %v2380 = vmul.f32 %v2312, %v2345
  %v2381 = vmul.f32 %v2313, %v2345
  %v2382 = vmul.f32 %v2314, %v2345
  %v2383 = vmul.f32 %v2315, %v2345
  %v2384 = vmul.f32 %v2316, %v2345
  %v2385 = vmul.f32 %v2317, %v2345
  %v2386 = vmul.f32 %v2318, %v2345
  %v2387 = vmul.f32 %v2319, %v2345
  %v2388 = vmul.f32 %v2320, %v2345
  %v2389 = vmul.f32 %v2321, %v2345
  %v2390 = vmul.f32 %v2322, %v2345
  %v2391 = vmul.f32 %v2323, %v2345
  %v2392 = vmul.f32 %v2324, %v2345
  %v2393 = vmul.f32 %v2325, %v2345
  %v2394 = vmul.f32 %v2326, %v2345
  %v2395 = vmul.f32 %v2327, %v2345
  %v2396 = vmul.f32 %v2328, %v2345
  %v2397 = vmul.f32 %v2329, %v2345
  %v2398 = vmul.f32 %v2330, %v2345
  %v2399 = vmul.f32 %v2331, %v2345
  %v2400 = vmul.f32 %v2332, %v2345
  %v2401 = vmul.f32 %v2333, %v2345
  %v2402 = vmul.f32 %v2334, %v2345
  %v2403 = vmul.f32 %v2335, %v2345
  %v2404 = vmul.f32 %v2336, %v2345
  %v2405 = vmul.f32 %v2337, %v2345
  %v2406 = vmul.f32 %v2338, %v2345
  %v2407 = vmul.f32 %v2339, %v2345
  %v2408 = vmul.f32 %v2340, %v2345
  %v2409 = vmul.f32 %v2341, %v2345
  %v2410 = vadd.f32 %v2214, %v2346
  %v2411 = vadd.f32 %v2215, %v2347
  %v2412 = vadd.f32 %v2216, %v2348
  %v2413 = vadd.f32 %v2217, %v2349
  %v2414 = vadd.f32 %v2218, %v2350
  %v2415 = vadd.f32 %v2219, %v2351
  %v2416 = vadd.f32 %v2220, %v2352
  %v2417 = vadd.f32 %v2221, %v2353
  %v2418 = vadd.f32 %v2222, %v2354
  %v2419 = vadd.f32 %v2223, %v2355
  %v2420 = vadd.f32 %v2224, %v2356
  %v2421 = vadd.f32 %v2225, %v2357
  %v2422 = vadd.f32 %v2226, %v2358
  %v2423 = vadd.f32 %v2227, %v2359
  %v2424 = vadd.f32 %v2228, %v2360
  %v2425 = vadd.f32 %v2229, %v2361
  %v2426 = vadd.f32 %v2230, %v2362
  %v2427 = vadd.f32 %v2231, %v2363
  %v2428 = vadd.f32 %v2232, %v2364
  %v2429 = vadd.f32 %v2233, %v2365
  %v2430 = vadd.f32 %v2234, %v2366
  %v2431 = vadd.f32 %v2235, %v2367
  %v2432 = vadd.f32 %v2236, %v2368
  %v2433 = vadd.f32 %v2237, %v2369
  %v2434 = vadd.f32 %v2238, %v2370
  %v2435 = vadd.f32 %v2239, %v2371
  %v2436 = vadd.f32 %v2240, %v2372
  %v2437 = vadd.f32 %v2241, %v2373
  %v2438 = vadd.f32 %v2242, %v2374
  %v2439 = vadd.f32 %v2243, %v2375
  %v2440 = vadd.f32 %v2244, %v2376
  %v2441 = vadd.f32 %v2245, %v2377
  %v2442 = vadd.f32 %v2246, %v2378
  %v2443 = vadd.f32 %v2247, %v2379
  %v2444 = vadd.f32 %v2248, %v2380
  %v2445 = vadd.f32 %v2249, %v2381
  %v2446 = vadd.f32 %v2250, %v2382
  %v2447 = vadd.f32 %v2251, %v2383
  %v2448 = vadd.f32 %v2252, %v2384
  %v2449 = vadd.f32 %v2253, %v2385
  %v2450 = vadd.f32 %v2254, %v2386
  %v2451 = vadd.f32 %v2255, %v2387
  %v2452 = vadd.f32 %v2256, %v2388
  %v2453 = vadd.f32 %v2257, %v2389
  %v2454 = vadd.f32 %v2258, %v2390
  %v2455 = vadd.f32 %v2259, %v2391
  %v2456 = vadd.f32 %v2260, %v2392
  %v2457 = vadd.f32 %v2261, %v2393
  %v2458 = vadd.f32 %v2262, %v2394
  %v2459 = vadd.f32 %v2263, %v2395
  %v2460 = vadd.f32 %v2264, %v2396
  %v2461 = vadd.f32 %v2265, %v2397
  %v2462 = vadd.f32 %v2266, %v2398
  %v2463 = vadd.f32 %v2267, %v2399
  %v2464 = vadd.f32 %v2268, %v2400
  %v2465 = vadd.f32 %v2269, %v2401
  %v2466 = vadd.f32 %v2270, %v2402
  %v2467 = vadd.f32 %v2271, %v2403
  %v2468 = vadd.f32 %v2272, %v2404
  %v2469 = vadd.f32 %v2273, %v2405
  %v2470 = vadd.f32 %v2274, %v2406
  %v2471 = vadd.f32 %v2275, %v2407
  %v2472 = vadd.f32 %v2276, %v2408
  %v2473 = vadd.f32 %v2277, %v2409
  %s2474 = scalar_lea.vmem [#allocation2], 64
  %v2475 = vld [vmem:[%s2474 + $0x7] sm:$0xff]
  %v2476 = vld [vmem:[%s2474 + $0xf] sm:$0xff]
  %v2477 = vld [vmem:[%s2474 + $0x27] sm:$0xff]
  %v2478 = vld [vmem:[%s2474 + $0x2f] sm:$0xff]
  %v2479 = vld [vmem:[%s2474 + $0x47] sm:$0xff]
  %v2480 = vld [vmem:[%s2474 + $0x4f] sm:$0xff]
  %v2481 = vld [vmem:[%s2474 + $0x67] sm:$0xff]
  %v2482 = vld [vmem:[%s2474 + $0x6f] sm:$0xff]
  %v2483 = vld [vmem:[%s2474 + $0x87] sm:$0xff]
  %v2484 = vld [vmem:[%s2474 + $0x8f] sm:$0xff]
  %v2485 = vld [vmem:[%s2474 + $0xa7] sm:$0xff]
  %v2486 = vld [vmem:[%s2474 + $0xaf] sm:$0xff]
  %v2487 = vld [vmem:[%s2474 + $0xc7] sm:$0xff]
  %v2488 = vld [vmem:[%s2474 + $0xcf] sm:$0xff]
  %v2489 = vld [vmem:[%s2474 + $0xe7] sm:$0xff]
  %v2490 = vld [vmem:[%s2474 + $0xef] sm:$0xff]
  %v2491 = vld [vmem:[%s2474 + $0x107] sm:$0xff]
  %v2492 = vld [vmem:[%s2474 + $0x10f] sm:$0xff]
  %v2493 = vld [vmem:[%s2474 + $0x127] sm:$0xff]
  %v2494 = vld [vmem:[%s2474 + $0x12f] sm:$0xff]
  %v2495 = vld [vmem:[%s2474 + $0x147] sm:$0xff]
  %v2496 = vld [vmem:[%s2474 + $0x14f] sm:$0xff]
  %v2497 = vld [vmem:[%s2474 + $0x167] sm:$0xff]
  %v2498 = vld [vmem:[%s2474 + $0x16f] sm:$0xff]
  %v2499 = vld [vmem:[%s2474 + $0x187] sm:$0xff]
  %v2500 = vld [vmem:[%s2474 + $0x18f] sm:$0xff]
  %v2501 = vld [vmem:[%s2474 + $0x1a7] sm:$0xff]
  %v2502 = vld [vmem:[%s2474 + $0x1af] sm:$0xff]
  %v2503 = vld [vmem:[%s2474 + $0x1c7] sm:$0xff]
  %v2504 = vld [vmem:[%s2474 + $0x1cf] sm:$0xff]
  %v2505 = vld [vmem:[%s2474 + $0x1e7] sm:$0xff]
  %v2506 = vld [vmem:[%s2474 + $0x1ef] sm:$0xff]
  %v2507 = vld [vmem:[%s2474 + $0x247] sm:$0xff]
  %v2508 = vld [vmem:[%s2474 + $0x24f] sm:$0xff]
  %v2509 = vld [vmem:[%s2474 + $0x267] sm:$0xff]
  %v2510 = vld [vmem:[%s2474 + $0x26f] sm:$0xff]
  %v2511 = vld [vmem:[%s2474 + $0x287] sm:$0xff]
  %v2512 = vld [vmem:[%s2474 + $0x28f] sm:$0xff]
  %v2513 = vld [vmem:[%s2474 + $0x2a7] sm:$0xff]
  %v2514 = vld [vmem:[%s2474 + $0x2af] sm:$0xff]
  %v2515 = vld [vmem:[%s2474 + $0x2c7] sm:$0xff]
  %v2516 = vld [vmem:[%s2474 + $0x2cf] sm:$0xff]
  %v2517 = vld [vmem:[%s2474 + $0x2e7] sm:$0xff]
  %v2518 = vld [vmem:[%s2474 + $0x2ef] sm:$0xff]
  %v2519 = vld [vmem:[%s2474 + $0x307] sm:$0xff]
  %v2520 = vld [vmem:[%s2474 + $0x30f] sm:$0xff]
  %v2521 = vld [vmem:[%s2474 + $0x327] sm:$0xff]
  %v2522 = vld [vmem:[%s2474 + $0x32f] sm:$0xff]
  %v2523 = vld [vmem:[%s2474 + $0x347] sm:$0xff]
  %v2524 = vld [vmem:[%s2474 + $0x34f] sm:$0xff]
  %v2525 = vld [vmem:[%s2474 + $0x367] sm:$0xff]
  %v2526 = vld [vmem:[%s2474 + $0x36f] sm:$0xff]
  %v2527 = vld [vmem:[%s2474 + $0x387] sm:$0xff]
  %v2528 = vld [vmem:[%s2474 + $0x38f] sm:$0xff]
  %v2529 = vld [vmem:[%s2474 + $0x3a7] sm:$0xff]
  %v2530 = vld [vmem:[%s2474 + $0x3af] sm:$0xff]
  %v2531 = vld [vmem:[%s2474 + $0x3c7] sm:$0xff]
  %v2532 = vld [vmem:[%s2474 + $0x3cf] sm:$0xff]
  %v2533 = vld [vmem:[%s2474 + $0x3e7] sm:$0xff]
  %v2534 = vld [vmem:[%s2474 + $0x3ef] sm:$0xff]
  %v2535 = vld [vmem:[%s2474 + $0x407] sm:$0xff]
  %v2536 = vld [vmem:[%s2474 + $0x40f] sm:$0xff]
  %v2537 = vld [vmem:[%s2474 + $0x427] sm:$0xff]
  %v2538 = vld [vmem:[%s2474 + $0x42f] sm:$0xff]
  %v2539 = vlaneseq
  %v2540 = vshrl.u32 %v2539, 7
  %v2541 = vsub.s32 0, %v2540
  %v2542 = vrot.slane %v1297, %v2541
  %v2543 = vmul.f32 %v2475, %v2542
  %v2544 = vmul.f32 %v2476, %v2542
  %v2545 = vmul.f32 %v2477, %v2542
  %v2546 = vmul.f32 %v2478, %v2542
  %v2547 = vmul.f32 %v2479, %v2542
  %v2548 = vmul.f32 %v2480, %v2542
  %v2549 = vmul.f32 %v2481, %v2542
  %v2550 = vmul.f32 %v2482, %v2542
  %v2551 = vmul.f32 %v2483, %v2542
  %v2552 = vmul.f32 %v2484, %v2542
  %v2553 = vmul.f32 %v2485, %v2542
  %v2554 = vmul.f32 %v2486, %v2542
  %v2555 = vmul.f32 %v2487, %v2542
  %v2556 = vmul.f32 %v2488, %v2542
  %v2557 = vmul.f32 %v2489, %v2542
  %v2558 = vmul.f32 %v2490, %v2542
  %v2559 = vmul.f32 %v2491, %v2542
  %v2560 = vmul.f32 %v2492, %v2542
  %v2561 = vmul.f32 %v2493, %v2542
  %v2562 = vmul.f32 %v2494, %v2542
  %v2563 = vmul.f32 %v2495, %v2542
  %v2564 = vmul.f32 %v2496, %v2542
  %v2565 = vmul.f32 %v2497, %v2542
  %v2566 = vmul.f32 %v2498, %v2542
  %v2567 = vmul.f32 %v2499, %v2542
  %v2568 = vmul.f32 %v2500, %v2542
  %v2569 = vmul.f32 %v2501, %v2542
  %v2570 = vmul.f32 %v2502, %v2542
  %v2571 = vmul.f32 %v2503, %v2542
  %v2572 = vmul.f32 %v2504, %v2542
  %v2573 = vmul.f32 %v2505, %v2542
  %v2574 = vmul.f32 %v2506, %v2542
  %v2575 = vmul.f32 %v2507, %v2542
  %v2576 = vmul.f32 %v2508, %v2542
  %v2577 = vmul.f32 %v2509, %v2542
  %v2578 = vmul.f32 %v2510, %v2542
  %v2579 = vmul.f32 %v2511, %v2542
  %v2580 = vmul.f32 %v2512, %v2542
  %v2581 = vmul.f32 %v2513, %v2542
  %v2582 = vmul.f32 %v2514, %v2542
  %v2583 = vmul.f32 %v2515, %v2542
  %v2584 = vmul.f32 %v2516, %v2542
  %v2585 = vmul.f32 %v2517, %v2542
  %v2586 = vmul.f32 %v2518, %v2542
  %v2587 = vmul.f32 %v2519, %v2542
  %v2588 = vmul.f32 %v2520, %v2542
  %v2589 = vmul.f32 %v2521, %v2542
  %v2590 = vmul.f32 %v2522, %v2542
  %v2591 = vmul.f32 %v2523, %v2542
  %v2592 = vmul.f32 %v2524, %v2542
  %v2593 = vmul.f32 %v2525, %v2542
  %v2594 = vmul.f32 %v2526, %v2542
  %v2595 = vmul.f32 %v2527, %v2542
  %v2596 = vmul.f32 %v2528, %v2542
  %v2597 = vmul.f32 %v2529, %v2542
  %v2598 = vmul.f32 %v2530, %v2542
  %v2599 = vmul.f32 %v2531, %v2542
  %v2600 = vmul.f32 %v2532, %v2542
  %v2601 = vmul.f32 %v2533, %v2542
  %v2602 = vmul.f32 %v2534, %v2542
  %v2603 = vmul.f32 %v2535, %v2542
  %v2604 = vmul.f32 %v2536, %v2542
  %v2605 = vmul.f32 %v2537, %v2542
  %v2606 = vmul.f32 %v2538, %v2542
  %v2607 = vadd.f32 %v2410, %v2543
  %v2608 = vadd.f32 %v2411, %v2544
  %v2609 = vadd.f32 %v2412, %v2545
  %v2610 = vadd.f32 %v2413, %v2546
  %v2611 = vadd.f32 %v2414, %v2547
  %v2612 = vadd.f32 %v2415, %v2548
  %v2613 = vadd.f32 %v2416, %v2549
  %v2614 = vadd.f32 %v2417, %v2550
  %v2615 = vadd.f32 %v2418, %v2551
  %v2616 = vadd.f32 %v2419, %v2552
  %v2617 = vadd.f32 %v2420, %v2553
  %v2618 = vadd.f32 %v2421, %v2554
  %v2619 = vadd.f32 %v2422, %v2555
  %v2620 = vadd.f32 %v2423, %v2556
  %v2621 = vadd.f32 %v2424, %v2557
  %v2622 = vadd.f32 %v2425, %v2558
  %v2623 = vadd.f32 %v2426, %v2559
  %v2624 = vadd.f32 %v2427, %v2560
  %v2625 = vadd.f32 %v2428, %v2561
  %v2626 = vadd.f32 %v2429, %v2562
  %v2627 = vadd.f32 %v2430, %v2563
  %v2628 = vadd.f32 %v2431, %v2564
  %v2629 = vadd.f32 %v2432, %v2565
  %v2630 = vadd.f32 %v2433, %v2566
  %v2631 = vadd.f32 %v2434, %v2567
  %v2632 = vadd.f32 %v2435, %v2568
  %v2633 = vadd.f32 %v2436, %v2569
  %v2634 = vadd.f32 %v2437, %v2570
  %v2635 = vadd.f32 %v2438, %v2571
  %v2636 = vadd.f32 %v2439, %v2572
  %v2637 = vadd.f32 %v2440, %v2573
  %v2638 = vadd.f32 %v2441, %v2574
  %v2639 = vadd.f32 %v2442, %v2575
  %v2640 = vadd.f32 %v2443, %v2576
  %v2641 = vadd.f32 %v2444, %v2577
  %v2642 = vadd.f32 %v2445, %v2578
  %v2643 = vadd.f32 %v2446, %v2579
  %v2644 = vadd.f32 %v2447, %v2580
  %v2645 = vadd.f32 %v2448, %v2581
  %v2646 = vadd.f32 %v2449, %v2582
  %v2647 = vadd.f32 %v2450, %v2583
  %v2648 = vadd.f32 %v2451, %v2584
  %v2649 = vadd.f32 %v2452, %v2585
  %v2650 = vadd.f32 %v2453, %v2586
  %v2651 = vadd.f32 %v2454, %v2587
  %v2652 = vadd.f32 %v2455, %v2588
  %v2653 = vadd.f32 %v2456, %v2589
  %v2654 = vadd.f32 %v2457, %v2590
  %v2655 = vadd.f32 %v2458, %v2591
  %v2656 = vadd.f32 %v2459, %v2592
  %v2657 = vadd.f32 %v2460, %v2593
  %v2658 = vadd.f32 %v2461, %v2594
  %v2659 = vadd.f32 %v2462, %v2595
  %v2660 = vadd.f32 %v2463, %v2596
  %v2661 = vadd.f32 %v2464, %v2597
  %v2662 = vadd.f32 %v2465, %v2598
  %v2663 = vadd.f32 %v2466, %v2599
  %v2664 = vadd.f32 %v2467, %v2600
  %v2665 = vadd.f32 %v2468, %v2601
  %v2666 = vadd.f32 %v2469, %v2602
  %v2667 = vadd.f32 %v2470, %v2603
  %v2668 = vadd.f32 %v2471, %v2604
  %v2669 = vadd.f32 %v2472, %v2605
  %v2670 = vadd.f32 %v2473, %v2606
  %v2671 = vld [vmem:[%s2474 + $0x8] sm:$0xff]
  %v2672 = vld [vmem:[%s2474 + $0x10] sm:$0xff]
  %v2673 = vld [vmem:[%s2474 + $0x28] sm:$0xff]
  %v2674 = vld [vmem:[%s2474 + $0x30] sm:$0xff]
  %v2675 = vld [vmem:[%s2474 + $0x48] sm:$0xff]
  %v2676 = vld [vmem:[%s2474 + $0x50] sm:$0xff]
  %v2677 = vld [vmem:[%s2474 + $0x68] sm:$0xff]
  %v2678 = vld [vmem:[%s2474 + $0x70] sm:$0xff]
  %v2679 = vld [vmem:[%s2474 + $0x88] sm:$0xff]
  %v2680 = vld [vmem:[%s2474 + $0x90] sm:$0xff]
  %v2681 = vld [vmem:[%s2474 + $0xa8] sm:$0xff]
  %v2682 = vld [vmem:[%s2474 + $0xb0] sm:$0xff]
  %v2683 = vld [vmem:[%s2474 + $0xc8] sm:$0xff]
  %v2684 = vld [vmem:[%s2474 + $0xd0] sm:$0xff]
  %v2685 = vld [vmem:[%s2474 + $0xe8] sm:$0xff]
  %v2686 = vld [vmem:[%s2474 + $0xf0] sm:$0xff]
  %v2687 = vld [vmem:[%s2474 + $0x108] sm:$0xff]
  %v2688 = vld [vmem:[%s2474 + $0x110] sm:$0xff]
  %v2689 = vld [vmem:[%s2474 + $0x128] sm:$0xff]
  %v2690 = vld [vmem:[%s2474 + $0x130] sm:$0xff]
  %v2691 = vld [vmem:[%s2474 + $0x148] sm:$0xff]
  %v2692 = vld [vmem:[%s2474 + $0x150] sm:$0xff]
  %v2693 = vld [vmem:[%s2474 + $0x168] sm:$0xff]
  %v2694 = vld [vmem:[%s2474 + $0x170] sm:$0xff]
  %v2695 = vld [vmem:[%s2474 + $0x188] sm:$0xff]
  %v2696 = vld [vmem:[%s2474 + $0x190] sm:$0xff]
  %v2697 = vld [vmem:[%s2474 + $0x1a8] sm:$0xff]
  %v2698 = vld [vmem:[%s2474 + $0x1b0] sm:$0xff]
  %v2699 = vld [vmem:[%s2474 + $0x1c8] sm:$0xff]
  %v2700 = vld [vmem:[%s2474 + $0x1d0] sm:$0xff]
  %v2701 = vld [vmem:[%s2474 + $0x1e8] sm:$0xff]
  %v2702 = vld [vmem:[%s2474 + $0x1f0] sm:$0xff]
  %v2703 = vld [vmem:[%s2474 + $0x248] sm:$0xff]
  %v2704 = vld [vmem:[%s2474 + $0x250] sm:$0xff]
  %v2705 = vld [vmem:[%s2474 + $0x268] sm:$0xff]
  %v2706 = vld [vmem:[%s2474 + $0x270] sm:$0xff]
  %v2707 = vld [vmem:[%s2474 + $0x288] sm:$0xff]
  %v2708 = vld [vmem:[%s2474 + $0x290] sm:$0xff]
  %v2709 = vld [vmem:[%s2474 + $0x2a8] sm:$0xff]
  %v2710 = vld [vmem:[%s2474 + $0x2b0] sm:$0xff]
  %v2711 = vld [vmem:[%s2474 + $0x2c8] sm:$0xff]
  %v2712 = vld [vmem:[%s2474 + $0x2d0] sm:$0xff]
  %v2713 = vld [vmem:[%s2474 + $0x2e8] sm:$0xff]
  %v2714 = vld [vmem:[%s2474 + $0x2f0] sm:$0xff]
  %v2715 = vld [vmem:[%s2474 + $0x308] sm:$0xff]
  %v2716 = vld [vmem:[%s2474 + $0x310] sm:$0xff]
  %v2717 = vld [vmem:[%s2474 + $0x328] sm:$0xff]
  %v2718 = vld [vmem:[%s2474 + $0x330] sm:$0xff]
  %v2719 = vld [vmem:[%s2474 + $0x348] sm:$0xff]
  %v2720 = vld [vmem:[%s2474 + $0x350] sm:$0xff]
  %v2721 = vld [vmem:[%s2474 + $0x368] sm:$0xff]
  %v2722 = vld [vmem:[%s2474 + $0x370] sm:$0xff]
  %v2723 = vld [vmem:[%s2474 + $0x388] sm:$0xff]
  %v2724 = vld [vmem:[%s2474 + $0x390] sm:$0xff]
  %v2725 = vld [vmem:[%s2474 + $0x3a8] sm:$0xff]
  %v2726 = vld [vmem:[%s2474 + $0x3b0] sm:$0xff]
  %v2727 = vld [vmem:[%s2474 + $0x3c8] sm:$0xff]
  %v2728 = vld [vmem:[%s2474 + $0x3d0] sm:$0xff]
  %v2729 = vld [vmem:[%s2474 + $0x3e8] sm:$0xff]
  %v2730 = vld [vmem:[%s2474 + $0x3f0] sm:$0xff]
  %v2731 = vld [vmem:[%s2474 + $0x408] sm:$0xff]
  %v2732 = vld [vmem:[%s2474 + $0x410] sm:$0xff]
  %v2733 = vld [vmem:[%s2474 + $0x428] sm:$0xff]
  %v2734 = vld [vmem:[%s2474 + $0x430] sm:$0xff]
  %v2735 = vlaneseq
  %v2736 = vshrl.u32 %v2735, 7
  %v2737 = vsub.s32 1, %v2736
  %v2738 = vrot.slane %v1297, %v2737
  %v2739 = vmul.f32 %v2671, %v2738
  %v2740 = vmul.f32 %v2672, %v2738
  %v2741 = vmul.f32 %v2673, %v2738
  %v2742 = vmul.f32 %v2674, %v2738
  %v2743 = vmul.f32 %v2675, %v2738
  %v2744 = vmul.f32 %v2676, %v2738
  %v2745 = vmul.f32 %v2677, %v2738
  %v2746 = vmul.f32 %v2678, %v2738
  %v2747 = vmul.f32 %v2679, %v2738
  %v2748 = vmul.f32 %v2680, %v2738
  %v2749 = vmul.f32 %v2681, %v2738
  %v2750 = vmul.f32 %v2682, %v2738
  %v2751 = vmul.f32 %v2683, %v2738
  %v2752 = vmul.f32 %v2684, %v2738
  %v2753 = vmul.f32 %v2685, %v2738
  %v2754 = vmul.f32 %v2686, %v2738
  %v2755 = vmul.f32 %v2687, %v2738
  %v2756 = vmul.f32 %v2688, %v2738
  %v2757 = vmul.f32 %v2689, %v2738
  %v2758 = vmul.f32 %v2690, %v2738
  %v2759 = vmul.f32 %v2691, %v2738
  %v2760 = vmul.f32 %v2692, %v2738
  %v2761 = vmul.f32 %v2693, %v2738
  %v2762 = vmul.f32 %v2694, %v2738
  %v2763 = vmul.f32 %v2695, %v2738
  %v2764 = vmul.f32 %v2696, %v2738
  %v2765 = vmul.f32 %v2697, %v2738
  %v2766 = vmul.f32 %v2698, %v2738
  %v2767 = vmul.f32 %v2699, %v2738
  %v2768 = vmul.f32 %v2700, %v2738
  %v2769 = vmul.f32 %v2701, %v2738
  %v2770 = vmul.f32 %v2702, %v2738
  %v2771 = vmul.f32 %v2703, %v2738
  %v2772 = vmul.f32 %v2704, %v2738
  %v2773 = vmul.f32 %v2705, %v2738
  %v2774 = vmul.f32 %v2706, %v2738
  %v2775 = vmul.f32 %v2707, %v2738
  %v2776 = vmul.f32 %v2708, %v2738
  %v2777 = vmul.f32 %v2709, %v2738
  %v2778 = vmul.f32 %v2710, %v2738
  %v2779 = vmul.f32 %v2711, %v2738
  %v2780 = vmul.f32 %v2712, %v2738
  %v2781 = vmul.f32 %v2713, %v2738
  %v2782 = vmul.f32 %v2714, %v2738
  %v2783 = vmul.f32 %v2715, %v2738
  %v2784 = vmul.f32 %v2716, %v2738
  %v2785 = vmul.f32 %v2717, %v2738
  %v2786 = vmul.f32 %v2718, %v2738
  %v2787 = vmul.f32 %v2719, %v2738
  %v2788 = vmul.f32 %v2720, %v2738
  %v2789 = vmul.f32 %v2721, %v2738
  %v2790 = vmul.f32 %v2722, %v2738
  %v2791 = vmul.f32 %v2723, %v2738
  %v2792 = vmul.f32 %v2724, %v2738
  %v2793 = vmul.f32 %v2725, %v2738
  %v2794 = vmul.f32 %v2726, %v2738
  %v2795 = vmul.f32 %v2727, %v2738
  %v2796 = vmul.f32 %v2728, %v2738
  %v2797 = vmul.f32 %v2729, %v2738
  %v2798 = vmul.f32 %v2730, %v2738
  %v2799 = vmul.f32 %v2731, %v2738
  %v2800 = vmul.f32 %v2732, %v2738
  %v2801 = vmul.f32 %v2733, %v2738
  %v2802 = vmul.f32 %v2734, %v2738
  %v2803 = vadd.f32 %v2607, %v2739
  %v2804 = vadd.f32 %v2608, %v2740
  %v2805 = vadd.f32 %v2609, %v2741
  %v2806 = vadd.f32 %v2610, %v2742
  %v2807 = vadd.f32 %v2611, %v2743
  %v2808 = vadd.f32 %v2612, %v2744
  %v2809 = vadd.f32 %v2613, %v2745
  %v2810 = vadd.f32 %v2614, %v2746
  %v2811 = vadd.f32 %v2615, %v2747
  %v2812 = vadd.f32 %v2616, %v2748
  %v2813 = vadd.f32 %v2617, %v2749
  %v2814 = vadd.f32 %v2618, %v2750
  %v2815 = vadd.f32 %v2619, %v2751
  %v2816 = vadd.f32 %v2620, %v2752
  %v2817 = vadd.f32 %v2621, %v2753
  %v2818 = vadd.f32 %v2622, %v2754
  %v2819 = vadd.f32 %v2623, %v2755
  %v2820 = vadd.f32 %v2624, %v2756
  %v2821 = vadd.f32 %v2625, %v2757
  %v2822 = vadd.f32 %v2626, %v2758
  %v2823 = vadd.f32 %v2627, %v2759
  %v2824 = vadd.f32 %v2628, %v2760
  %v2825 = vadd.f32 %v2629, %v2761
  %v2826 = vadd.f32 %v2630, %v2762
  %v2827 = vadd.f32 %v2631, %v2763
  %v2828 = vadd.f32 %v2632, %v2764
  %v2829 = vadd.f32 %v2633, %v2765
  %v2830 = vadd.f32 %v2634, %v2766
  %v2831 = vadd.f32 %v2635, %v2767
  %v2832 = vadd.f32 %v2636, %v2768
  %v2833 = vadd.f32 %v2637, %v2769
  %v2834 = vadd.f32 %v2638, %v2770
  %v2835 = vadd.f32 %v2639, %v2771
  %v2836 = vadd.f32 %v2640, %v2772
  %v2837 = vadd.f32 %v2641, %v2773
  %v2838 = vadd.f32 %v2642, %v2774
  %v2839 = vadd.f32 %v2643, %v2775
  %v2840 = vadd.f32 %v2644, %v2776
  %v2841 = vadd.f32 %v2645, %v2777
  %v2842 = vadd.f32 %v2646, %v2778
  %v2843 = vadd.f32 %v2647, %v2779
  %v2844 = vadd.f32 %v2648, %v2780
  %v2845 = vadd.f32 %v2649, %v2781
  %v2846 = vadd.f32 %v2650, %v2782
  %v2847 = vadd.f32 %v2651, %v2783
  %v2848 = vadd.f32 %v2652, %v2784
  %v2849 = vadd.f32 %v2653, %v2785
  %v2850 = vadd.f32 %v2654, %v2786
  %v2851 = vadd.f32 %v2655, %v2787
  %v2852 = vadd.f32 %v2656, %v2788
  %v2853 = vadd.f32 %v2657, %v2789
  %v2854 = vadd.f32 %v2658, %v2790
  %v2855 = vadd.f32 %v2659, %v2791
  %v2856 = vadd.f32 %v2660, %v2792
  %v2857 = vadd.f32 %v2661, %v2793
  %v2858 = vadd.f32 %v2662, %v2794
  %v2859 = vadd.f32 %v2663, %v2795
  %v2860 = vadd.f32 %v2664, %v2796
  %v2861 = vadd.f32 %v2665, %v2797
  %v2862 = vadd.f32 %v2666, %v2798
  %v2863 = vadd.f32 %v2667, %v2799
  %v2864 = vadd.f32 %v2668, %v2800
  %v2865 = vadd.f32 %v2669, %v2801
  %v2866 = vadd.f32 %v2670, %v2802
  %v2867 = vld [vmem:[%s2474 + $0x9] sm:$0xff]
  %v2868 = vld [vmem:[%s2474 + $0x11] sm:$0xff]
  %v2869 = vld [vmem:[%s2474 + $0x29] sm:$0xff]
  %v2870 = vld [vmem:[%s2474 + $0x31] sm:$0xff]
  %v2871 = vld [vmem:[%s2474 + $0x49] sm:$0xff]
  %v2872 = vld [vmem:[%s2474 + $0x51] sm:$0xff]
  %v2873 = vld [vmem:[%s2474 + $0x69] sm:$0xff]
  %v2874 = vld [vmem:[%s2474 + $0x71] sm:$0xff]
  %v2875 = vld [vmem:[%s2474 + $0x89] sm:$0xff]
  %v2876 = vld [vmem:[%s2474 + $0x91] sm:$0xff]
  %v2877 = vld [vmem:[%s2474 + $0xa9] sm:$0xff]
  %v2878 = vld [vmem:[%s2474 + $0xb1] sm:$0xff]
  %v2879 = vld [vmem:[%s2474 + $0xc9] sm:$0xff]
  %v2880 = vld [vmem:[%s2474 + $0xd1] sm:$0xff]
  %v2881 = vld [vmem:[%s2474 + $0xe9] sm:$0xff]
  %v2882 = vld [vmem:[%s2474 + $0xf1] sm:$0xff]
  %v2883 = vld [vmem:[%s2474 + $0x109] sm:$0xff]
  %v2884 = vld [vmem:[%s2474 + $0x111] sm:$0xff]
  %v2885 = vld [vmem:[%s2474 + $0x129] sm:$0xff]
  %v2886 = vld [vmem:[%s2474 + $0x131] sm:$0xff]
  %v2887 = vld [vmem:[%s2474 + $0x149] sm:$0xff]
  %v2888 = vld [vmem:[%s2474 + $0x151] sm:$0xff]
  %v2889 = vld [vmem:[%s2474 + $0x169] sm:$0xff]
  %v2890 = vld [vmem:[%s2474 + $0x171] sm:$0xff]
  %v2891 = vld [vmem:[%s2474 + $0x189] sm:$0xff]
  %v2892 = vld [vmem:[%s2474 + $0x191] sm:$0xff]
  %v2893 = vld [vmem:[%s2474 + $0x1a9] sm:$0xff]
  %v2894 = vld [vmem:[%s2474 + $0x1b1] sm:$0xff]
  %v2895 = vld [vmem:[%s2474 + $0x1c9] sm:$0xff]
  %v2896 = vld [vmem:[%s2474 + $0x1d1] sm:$0xff]
  %v2897 = vld [vmem:[%s2474 + $0x1e9] sm:$0xff]
  %v2898 = vld [vmem:[%s2474 + $0x1f1] sm:$0xff]
  %v2899 = vld [vmem:[%s2474 + $0x249] sm:$0xff]
  %v2900 = vld [vmem:[%s2474 + $0x251] sm:$0xff]
  %v2901 = vld [vmem:[%s2474 + $0x269] sm:$0xff]
  %v2902 = vld [vmem:[%s2474 + $0x271] sm:$0xff]
  %v2903 = vld [vmem:[%s2474 + $0x289] sm:$0xff]
  %v2904 = vld [vmem:[%s2474 + $0x291] sm:$0xff]
  %v2905 = vld [vmem:[%s2474 + $0x2a9] sm:$0xff]
  %v2906 = vld [vmem:[%s2474 + $0x2b1] sm:$0xff]
  %v2907 = vld [vmem:[%s2474 + $0x2c9] sm:$0xff]
  %v2908 = vld [vmem:[%s2474 + $0x2d1] sm:$0xff]
  %v2909 = vld [vmem:[%s2474 + $0x2e9] sm:$0xff]
  %v2910 = vld [vmem:[%s2474 + $0x2f1] sm:$0xff]
  %v2911 = vld [vmem:[%s2474 + $0x309] sm:$0xff]
  %v2912 = vld [vmem:[%s2474 + $0x311] sm:$0xff]
  %v2913 = vld [vmem:[%s2474 + $0x329] sm:$0xff]
  %v2914 = vld [vmem:[%s2474 + $0x331] sm:$0xff]
  %v2915 = vld [vmem:[%s2474 + $0x349] sm:$0xff]
  %v2916 = vld [vmem:[%s2474 + $0x351] sm:$0xff]
  %v2917 = vld [vmem:[%s2474 + $0x369] sm:$0xff]
  %v2918 = vld [vmem:[%s2474 + $0x371] sm:$0xff]
  %v2919 = vld [vmem:[%s2474 + $0x389] sm:$0xff]
  %v2920 = vld [vmem:[%s2474 + $0x391] sm:$0xff]
  %v2921 = vld [vmem:[%s2474 + $0x3a9] sm:$0xff]
  %v2922 = vld [vmem:[%s2474 + $0x3b1] sm:$0xff]
  %v2923 = vld [vmem:[%s2474 + $0x3c9] sm:$0xff]
  %v2924 = vld [vmem:[%s2474 + $0x3d1] sm:$0xff]
  %v2925 = vld [vmem:[%s2474 + $0x3e9] sm:$0xff]
  %v2926 = vld [vmem:[%s2474 + $0x3f1] sm:$0xff]
  %v2927 = vld [vmem:[%s2474 + $0x409] sm:$0xff]
  %v2928 = vld [vmem:[%s2474 + $0x411] sm:$0xff]
  %v2929 = vld [vmem:[%s2474 + $0x429] sm:$0xff]
  %v2930 = vld [vmem:[%s2474 + $0x431] sm:$0xff]
  %v2931 = vlaneseq
  %v2932 = vshrl.u32 %v2931, 7
  %v2933 = vsub.s32 2, %v2932
  %v2934 = vrot.slane %v1297, %v2933
  %v2935 = vmul.f32 %v2867, %v2934
  %v2936 = vmul.f32 %v2868, %v2934
  %v2937 = vmul.f32 %v2869, %v2934
  %v2938 = vmul.f32 %v2870, %v2934
  %v2939 = vmul.f32 %v2871, %v2934
  %v2940 = vmul.f32 %v2872, %v2934
  %v2941 = vmul.f32 %v2873, %v2934
  %v2942 = vmul.f32 %v2874, %v2934
  %v2943 = vmul.f32 %v2875, %v2934
  %v2944 = vmul.f32 %v2876, %v2934
  %v2945 = vmul.f32 %v2877, %v2934
  %v2946 = vmul.f32 %v2878, %v2934
  %v2947 = vmul.f32 %v2879, %v2934
  %v2948 = vmul.f32 %v2880, %v2934
  %v2949 = vmul.f32 %v2881, %v2934
  %v2950 = vmul.f32 %v2882, %v2934
  %v2951 = vmul.f32 %v2883, %v2934
  %v2952 = vmul.f32 %v2884, %v2934
  %v2953 = vmul.f32 %v2885, %v2934
  %v2954 = vmul.f32 %v2886, %v2934
  %v2955 = vmul.f32 %v2887, %v2934
  %v2956 = vmul.f32 %v2888, %v2934
  %v2957 = vmul.f32 %v2889, %v2934
  %v2958 = vmul.f32 %v2890, %v2934
  %v2959 = vmul.f32 %v2891, %v2934
  %v2960 = vmul.f32 %v2892, %v2934
  %v2961 = vmul.f32 %v2893, %v2934
  %v2962 = vmul.f32 %v2894, %v2934
  %v2963 = vmul.f32 %v2895, %v2934
  %v2964 = vmul.f32 %v2896, %v2934
  %v2965 = vmul.f32 %v2897, %v2934
  %v2966 = vmul.f32 %v2898, %v2934
  %v2967 = vmul.f32 %v2899, %v2934
  %v2968 = vmul.f32 %v2900, %v2934
  %v2969 = vmul.f32 %v2901, %v2934
  %v2970 = vmul.f32 %v2902, %v2934
  %v2971 = vmul.f32 %v2903, %v2934
  %v2972 = vmul.f32 %v2904, %v2934
  %v2973 = vmul.f32 %v2905, %v2934
  %v2974 = vmul.f32 %v2906, %v2934
  %v2975 = vmul.f32 %v2907, %v2934
  %v2976 = vmul.f32 %v2908, %v2934
  %v2977 = vmul.f32 %v2909, %v2934
  %v2978 = vmul.f32 %v2910, %v2934
  %v2979 = vmul.f32 %v2911, %v2934
  %v2980 = vmul.f32 %v2912, %v2934
  %v2981 = vmul.f32 %v2913, %v2934
  %v2982 = vmul.f32 %v2914, %v2934
  %v2983 = vmul.f32 %v2915, %v2934
  %v2984 = vmul.f32 %v2916, %v2934
  %v2985 = vmul.f32 %v2917, %v2934
  %v2986 = vmul.f32 %v2918, %v2934
  %v2987 = vmul.f32 %v2919, %v2934
  %v2988 = vmul.f32 %v2920, %v2934
  %v2989 = vmul.f32 %v2921, %v2934
  %v2990 = vmul.f32 %v2922, %v2934
  %v2991 = vmul.f32 %v2923, %v2934
  %v2992 = vmul.f32 %v2924, %v2934
  %v2993 = vmul.f32 %v2925, %v2934
  %v2994 = vmul.f32 %v2926, %v2934
  %v2995 = vmul.f32 %v2927, %v2934
  %v2996 = vmul.f32 %v2928, %v2934
  %v2997 = vmul.f32 %v2929, %v2934
  %v2998 = vmul.f32 %v2930, %v2934
  %v2999 = vadd.f32 %v2803, %v2935
  %v3000 = vadd.f32 %v2804, %v2936
  %v3001 = vadd.f32 %v2805, %v2937
  %v3002 = vadd.f32 %v2806, %v2938
  %v3003 = vadd.f32 %v2807, %v2939
  %v3004 = vadd.f32 %v2808, %v2940
  %v3005 = vadd.f32 %v2809, %v2941
  %v3006 = vadd.f32 %v2810, %v2942
  %v3007 = vadd.f32 %v2811, %v2943
  %v3008 = vadd.f32 %v2812, %v2944
  %v3009 = vadd.f32 %v2813, %v2945
  %v3010 = vadd.f32 %v2814, %v2946
  %v3011 = vadd.f32 %v2815, %v2947
  %v3012 = vadd.f32 %v2816, %v2948
  %v3013 = vadd.f32 %v2817, %v2949
  %v3014 = vadd.f32 %v2818, %v2950
  %v3015 = vadd.f32 %v2819, %v2951
  %v3016 = vadd.f32 %v2820, %v2952
  %v3017 = vadd.f32 %v2821, %v2953
  %v3018 = vadd.f32 %v2822, %v2954
  %v3019 = vadd.f32 %v2823, %v2955
  %v3020 = vadd.f32 %v2824, %v2956
  %v3021 = vadd.f32 %v2825, %v2957
  %v3022 = vadd.f32 %v2826, %v2958
  %v3023 = vadd.f32 %v2827, %v2959
  %v3024 = vadd.f32 %v2828, %v2960
  %v3025 = vadd.f32 %v2829, %v2961
  %v3026 = vadd.f32 %v2830, %v2962
  %v3027 = vadd.f32 %v2831, %v2963
  %v3028 = vadd.f32 %v2832, %v2964
  %v3029 = vadd.f32 %v2833, %v2965
  %v3030 = vadd.f32 %v2834, %v2966
  %v3031 = vadd.f32 %v2835, %v2967
  %v3032 = vadd.f32 %v2836, %v2968
  %v3033 = vadd.f32 %v2837, %v2969
  %v3034 = vadd.f32 %v2838, %v2970
  %v3035 = vadd.f32 %v2839, %v2971
  %v3036 = vadd.f32 %v2840, %v2972
  %v3037 = vadd.f32 %v2841, %v2973
  %v3038 = vadd.f32 %v2842, %v2974
  %v3039 = vadd.f32 %v2843, %v2975
  %v3040 = vadd.f32 %v2844, %v2976
  %v3041 = vadd.f32 %v2845, %v2977
  %v3042 = vadd.f32 %v2846, %v2978
  %v3043 = vadd.f32 %v2847, %v2979
  %v3044 = vadd.f32 %v2848, %v2980
  %v3045 = vadd.f32 %v2849, %v2981
  %v3046 = vadd.f32 %v2850, %v2982
  %v3047 = vadd.f32 %v2851, %v2983
  %v3048 = vadd.f32 %v2852, %v2984
  %v3049 = vadd.f32 %v2853, %v2985
  %v3050 = vadd.f32 %v2854, %v2986
  %v3051 = vadd.f32 %v2855, %v2987
  %v3052 = vadd.f32 %v2856, %v2988
  %v3053 = vadd.f32 %v2857, %v2989
  %v3054 = vadd.f32 %v2858, %v2990
  %v3055 = vadd.f32 %v2859, %v2991
  %v3056 = vadd.f32 %v2860, %v2992
  %v3057 = vadd.f32 %v2861, %v2993
  %v3058 = vadd.f32 %v2862, %v2994
  %v3059 = vadd.f32 %v2863, %v2995
  %v3060 = vadd.f32 %v2864, %v2996
  %v3061 = vadd.f32 %v2865, %v2997
  %v3062 = vadd.f32 %v2866, %v2998
  %v3063 = vld [vmem:[%s6] sm:$0x1]
  %v3065 = vlaneseq
  %v3066 = vshrl.u32 %v3065, 7
  %v3067 = vsub.s32 0, %v3066
  %v3068 = vrot.slane %v3063, %v3067
  %v3070 = vadd.f32 %v2999, %v3068
  %v3071 = vadd.f32 %v3000, %v3068
  %v3072 = vadd.f32 %v3001, %v3068
  %v3073 = vadd.f32 %v3002, %v3068
  %v3074 = vadd.f32 %v3003, %v3068
  %v3075 = vadd.f32 %v3004, %v3068
  %v3076 = vadd.f32 %v3005, %v3068
  %v3077 = vadd.f32 %v3006, %v3068
  %v3078 = vadd.f32 %v3007, %v3068
  %v3079 = vadd.f32 %v3008, %v3068
  %v3080 = vadd.f32 %v3009, %v3068
  %v3081 = vadd.f32 %v3010, %v3068
  %v3082 = vadd.f32 %v3011, %v3068
  %v3083 = vadd.f32 %v3012, %v3068
  %v3084 = vadd.f32 %v3013, %v3068
  %v3085 = vadd.f32 %v3014, %v3068
  %v3086 = vadd.f32 %v3015, %v3068
  %v3087 = vadd.f32 %v3016, %v3068
  %v3088 = vadd.f32 %v3017, %v3068
  %v3089 = vadd.f32 %v3018, %v3068
  %v3090 = vadd.f32 %v3019, %v3068
  %v3091 = vadd.f32 %v3020, %v3068
  %v3092 = vadd.f32 %v3021, %v3068
  %v3093 = vadd.f32 %v3022, %v3068
  %v3094 = vadd.f32 %v3023, %v3068
  %v3095 = vadd.f32 %v3024, %v3068
  %v3096 = vadd.f32 %v3025, %v3068
  %v3097 = vadd.f32 %v3026, %v3068
  %v3098 = vadd.f32 %v3027, %v3068
  %v3099 = vadd.f32 %v3028, %v3068
  %v3100 = vadd.f32 %v3029, %v3068
  %v3101 = vadd.f32 %v3030, %v3068
  %v3102 = vadd.f32 %v3031, %v3068
  %v3103 = vadd.f32 %v3032, %v3068
  %v3104 = vadd.f32 %v3033, %v3068
  %v3105 = vadd.f32 %v3034, %v3068
  %v3106 = vadd.f32 %v3035, %v3068
  %v3107 = vadd.f32 %v3036, %v3068
  %v3108 = vadd.f32 %v3037, %v3068
  %v3109 = vadd.f32 %v3038, %v3068
  %v3110 = vadd.f32 %v3039, %v3068
  %v3111 = vadd.f32 %v3040, %v3068
  %v3112 = vadd.f32 %v3041, %v3068
  %v3113 = vadd.f32 %v3042, %v3068
  %v3114 = vadd.f32 %v3043, %v3068
  %v3115 = vadd.f32 %v3044, %v3068
  %v3116 = vadd.f32 %v3045, %v3068
  %v3117 = vadd.f32 %v3046, %v3068
  %v3118 = vadd.f32 %v3047, %v3068
  %v3119 = vadd.f32 %v3048, %v3068
  %v3120 = vadd.f32 %v3049, %v3068
  %v3121 = vadd.f32 %v3050, %v3068
  %v3122 = vadd.f32 %v3051, %v3068
  %v3123 = vadd.f32 %v3052, %v3068
  %v3124 = vadd.f32 %v3053, %v3068
  %v3125 = vadd.f32 %v3054, %v3068
  %v3126 = vadd.f32 %v3055, %v3068
  %v3127 = vadd.f32 %v3056, %v3068
  %v3128 = vadd.f32 %v3057, %v3068
  %v3129 = vadd.f32 %v3058, %v3068
  %v3130 = vadd.f32 %v3059, %v3068
  %v3131 = vadd.f32 %v3060, %v3068
  %v3132 = vadd.f32 %v3061, %v3068
  %v3133 = vadd.f32 %v3062, %v3068
  %v3134 = vadd.f32 %v3070, %v369
  %v3135 = vadd.f32 %v3071, %v374
  %v3136 = vadd.f32 %v3072, %v379
  %v3137 = vadd.f32 %v3073, %v384
  %v3138 = vadd.f32 %v3074, %v389
  %v3139 = vadd.f32 %v3075, %v394
  %v3140 = vadd.f32 %v3076, %v399
  %v3141 = vadd.f32 %v3077, %v404
  %v3142 = vadd.f32 %v3078, %v409
  %v3143 = vadd.f32 %v3079, %v414
  %v3144 = vadd.f32 %v3080, %v419
  %v3145 = vadd.f32 %v3081, %v424
  %v3146 = vadd.f32 %v3082, %v429
  %v3147 = vadd.f32 %v3083, %v434
  %v3148 = vadd.f32 %v3084, %v439
  %v3149 = vadd.f32 %v3085, %v444
  %v3150 = vadd.f32 %v3086, %v449
  %v3151 = vadd.f32 %v3087, %v454
  %v3152 = vadd.f32 %v3088, %v459
  %v3153 = vadd.f32 %v3089, %v464
  %v3154 = vadd.f32 %v3090, %v469
  %v3155 = vadd.f32 %v3091, %v474
  %v3156 = vadd.f32 %v3092, %v479
  %v3157 = vadd.f32 %v3093, %v484
  %v3158 = vadd.f32 %v3094, %v489
  %v3159 = vadd.f32 %v3095, %v494
  %v3160 = vadd.f32 %v3096, %v499
  %v3161 = vadd.f32 %v3097, %v504
  %v3162 = vadd.f32 %v3098, %v509
  %v3163 = vadd.f32 %v3099, %v514
  %v3164 = vadd.f32 %v3100, %v519
  %v3165 = vadd.f32 %v3101, %v524
  %v3166 = vadd.f32 %v3102, %v529
  %v3167 = vadd.f32 %v3103, %v534
  %v3168 = vadd.f32 %v3104, %v539
  %v3169 = vadd.f32 %v3105, %v544
  %v3170 = vadd.f32 %v3106, %v549
  %v3171 = vadd.f32 %v3107, %v554
  %v3172 = vadd.f32 %v3108, %v559
  %v3173 = vadd.f32 %v3109, %v564
  %v3174 = vadd.f32 %v3110, %v569
  %v3175 = vadd.f32 %v3111, %v574
  %v3176 = vadd.f32 %v3112, %v579
  %v3177 = vadd.f32 %v3113, %v584
  %v3178 = vadd.f32 %v3114, %v589
  %v3179 = vadd.f32 %v3115, %v594
  %v3180 = vadd.f32 %v3116, %v599
  %v3181 = vadd.f32 %v3117, %v604
  %v3182 = vadd.f32 %v3118, %v609
  %v3183 = vadd.f32 %v3119, %v614
  %v3184 = vadd.f32 %v3120, %v619
  %v3185 = vadd.f32 %v3121, %v624
  %v3186 = vadd.f32 %v3122, %v629
  %v3187 = vadd.f32 %v3123, %v634
  %v3188 = vadd.f32 %v3124, %v639
  %v3189 = vadd.f32 %v3125, %v644
  %v3190 = vadd.f32 %v3126, %v649
  %v3191 = vadd.f32 %v3127, %v654
  %v3192 = vadd.f32 %v3128, %v659
  %v3193 = vadd.f32 %v3129, %v664
  %v3194 = vadd.f32 %v3130, %v669
  %v3195 = vadd.f32 %v3131, %v674
  %v3196 = vadd.f32 %v3132, %v679
  %v3197 = vadd.f32 %v3133, %v684
  %v3198 = vmul.f32 %v3134, 0.5
  %v3199 = vmul.f32 %v3135, 0.5
  %v3200 = vmul.f32 %v3136, 0.5
  %v3201 = vmul.f32 %v3137, 0.5
  %v3202 = vmul.f32 %v3138, 0.5
  %v3203 = vmul.f32 %v3139, 0.5
  %v3204 = vmul.f32 %v3140, 0.5
  %v3205 = vmul.f32 %v3141, 0.5
  %v3206 = vmul.f32 %v3142, 0.5
  %v3207 = vmul.f32 %v3143, 0.5
  %v3208 = vmul.f32 %v3144, 0.5
  %v3209 = vmul.f32 %v3145, 0.5
  %v3210 = vmul.f32 %v3146, 0.5
  %v3211 = vmul.f32 %v3147, 0.5
  %v3212 = vmul.f32 %v3148, 0.5
  %v3213 = vmul.f32 %v3149, 0.5
  %v3214 = vmul.f32 %v3150, 0.5
  %v3215 = vmul.f32 %v3151, 0.5
  %v3216 = vmul.f32 %v3152, 0.5
  %v3217 = vmul.f32 %v3153, 0.5
  %v3218 = vmul.f32 %v3154, 0.5
  %v3219 = vmul.f32 %v3155, 0.5
  %v3220 = vmul.f32 %v3156, 0.5
  %v3221 = vmul.f32 %v3157, 0.5
  %v3222 = vmul.f32 %v3158, 0.5
  %v3223 = vmul.f32 %v3159, 0.5
  %v3224 = vmul.f32 %v3160, 0.5
  %v3225 = vmul.f32 %v3161, 0.5
  %v3226 = vmul.f32 %v3162, 0.5
  %v3227 = vmul.f32 %v3163, 0.5
  %v3228 = vmul.f32 %v3164, 0.5
  %v3229 = vmul.f32 %v3165, 0.5
  %v3230 = vmul.f32 %v3166, 0.5
  %v3231 = vmul.f32 %v3167, 0.5
  %v3232 = vmul.f32 %v3168, 0.5
  %v3233 = vmul.f32 %v3169, 0.5
  %v3234 = vmul.f32 %v3170, 0.5
  %v3235 = vmul.f32 %v3171, 0.5
  %v3236 = vmul.f32 %v3172, 0.5
  %v3237 = vmul.f32 %v3173, 0.5
  %v3238 = vmul.f32 %v3174, 0.5
  %v3239 = vmul.f32 %v3175, 0.5
  %v3240 = vmul.f32 %v3176, 0.5
  %v3241 = vmul.f32 %v3177, 0.5
  %v3242 = vmul.f32 %v3178, 0.5
  %v3243 = vmul.f32 %v3179, 0.5
  %v3244 = vmul.f32 %v3180, 0.5
  %v3245 = vmul.f32 %v3181, 0.5
  %v3246 = vmul.f32 %v3182, 0.5
  %v3247 = vmul.f32 %v3183, 0.5
  %v3248 = vmul.f32 %v3184, 0.5
  %v3249 = vmul.f32 %v3185, 0.5
  %v3250 = vmul.f32 %v3186, 0.5
  %v3251 = vmul.f32 %v3187, 0.5
  %v3252 = vmul.f32 %v3188, 0.5
  %v3253 = vmul.f32 %v3189, 0.5
  %v3254 = vmul.f32 %v3190, 0.5
  %v3255 = vmul.f32 %v3191, 0.5
  %v3256 = vmul.f32 %v3192, 0.5
  %v3257 = vmul.f32 %v3193, 0.5
  %v3258 = vmul.f32 %v3194, 0.5
  %v3259 = vmul.f32 %v3195, 0.5
  %v3260 = vmul.f32 %v3196, 0.5
  %v3261 = vmul.f32 %v3197, 0.5
  %v3262 = vmul.f32 %v3134, 0.70710677
  %v3263 = vmul.f32 %v3135, 0.70710677
  %v3264 = vmul.f32 %v3136, 0.70710677
  %v3265 = vmul.f32 %v3137, 0.70710677
  %v3266 = vmul.f32 %v3138, 0.70710677
  %v3267 = vmul.f32 %v3139, 0.70710677
  %v3268 = vmul.f32 %v3140, 0.70710677
  %v3269 = vmul.f32 %v3141, 0.70710677
  %v3270 = vmul.f32 %v3142, 0.70710677
  %v3271 = vmul.f32 %v3143, 0.70710677
  %v3272 = vmul.f32 %v3144, 0.70710677
  %v3273 = vmul.f32 %v3145, 0.70710677
  %v3274 = vmul.f32 %v3146, 0.70710677
  %v3275 = vmul.f32 %v3147, 0.70710677
  %v3276 = vmul.f32 %v3148, 0.70710677
  %v3277 = vmul.f32 %v3149, 0.70710677
  %v3278 = vmul.f32 %v3150, 0.70710677
  %v3279 = vmul.f32 %v3151, 0.70710677
  %v3280 = vmul.f32 %v3152, 0.70710677
  %v3281 = vmul.f32 %v3153, 0.70710677
  %v3282 = vmul.f32 %v3154, 0.70710677
  %v3283 = vmul.f32 %v3155, 0.70710677
  %v3284 = vmul.f32 %v3156, 0.70710677
  %v3285 = vmul.f32 %v3157, 0.70710677
  %v3286 = vmul.f32 %v3158, 0.70710677
  %v3287 = vmul.f32 %v3159, 0.70710677
  %v3288 = vmul.f32 %v3160, 0.70710677
  %v3289 = vmul.f32 %v3161, 0.70710677
  %v3290 = vmul.f32 %v3162, 0.70710677
  %v3291 = vmul.f32 %v3163, 0.70710677
  %v3292 = vmul.f32 %v3164, 0.70710677
  %v3293 = vmul.f32 %v3165, 0.70710677
  %v3294 = vmul.f32 %v3166, 0.70710677
  %v3295 = vmul.f32 %v3167, 0.70710677
  %v3296 = vmul.f32 %v3168, 0.70710677
  %v3297 = vmul.f32 %v3169, 0.70710677
  %v3298 = vmul.f32 %v3170, 0.70710677
  %v3299 = vmul.f32 %v3171, 0.70710677
  %v3300 = vmul.f32 %v3172, 0.70710677
  %v3301 = vmul.f32 %v3173, 0.70710677
  %v3302 = vmul.f32 %v3174, 0.70710677
  %v3303 = vmul.f32 %v3175, 0.70710677
  %v3304 = vmul.f32 %v3176, 0.70710677
  %v3305 = vmul.f32 %v3177, 0.70710677
  %v3306 = vmul.f32 %v3178, 0.70710677
  %v3307 = vmul.f32 %v3179, 0.70710677
  %v3308 = vmul.f32 %v3180, 0.70710677
  %v3309 = vmul.f32 %v3181, 0.70710677
  %v3310 = vmul.f32 %v3182, 0.70710677
  %v3311 = vmul.f32 %v3183, 0.70710677
  %v3312 = vmul.f32 %v3184, 0.70710677
  %v3313 = vmul.f32 %v3185, 0.70710677
  %v3314 = vmul.f32 %v3186, 0.70710677
  %v3315 = vmul.f32 %v3187, 0.70710677
  %v3316 = vmul.f32 %v3188, 0.70710677
  %v3317 = vmul.f32 %v3189, 0.70710677
  %v3318 = vmul.f32 %v3190, 0.70710677
  %v3319 = vmul.f32 %v3191, 0.70710677
  %v3320 = vmul.f32 %v3192, 0.70710677
  %v3321 = vmul.f32 %v3193, 0.70710677
  %v3322 = vmul.f32 %v3194, 0.70710677
  %v3323 = vmul.f32 %v3195, 0.70710677
  %v3324 = vmul.f32 %v3196, 0.70710677
  %v3325 = vmul.f32 %v3197, 0.70710677
  %vm3326 = vcmp.ge.f32.partialorder %v3262, 0.0
  %vm3327 = vcmp.ge.f32.partialorder %v3263, 0.0
  %vm3328 = vcmp.ge.f32.partialorder %v3264, 0.0
  %vm3329 = vcmp.ge.f32.partialorder %v3265, 0.0
  %vm3330 = vcmp.ge.f32.partialorder %v3266, 0.0
  %vm3331 = vcmp.ge.f32.partialorder %v3267, 0.0
  %vm3332 = vcmp.ge.f32.partialorder %v3268, 0.0
  %vm3333 = vcmp.ge.f32.partialorder %v3269, 0.0
  %vm3334 = vcmp.ge.f32.partialorder %v3270, 0.0
  %vm3335 = vcmp.ge.f32.partialorder %v3271, 0.0
  %vm3336 = vcmp.ge.f32.partialorder %v3272, 0.0
  %vm3337 = vcmp.ge.f32.partialorder %v3273, 0.0
  %vm3338 = vcmp.ge.f32.partialorder %v3274, 0.0
  %vm3339 = vcmp.ge.f32.partialorder %v3275, 0.0
  %vm3340 = vcmp.ge.f32.partialorder %v3276, 0.0
  %vm3341 = vcmp.ge.f32.partialorder %v3277, 0.0
  %vm3342 = vcmp.ge.f32.partialorder %v3278, 0.0
  %vm3343 = vcmp.ge.f32.partialorder %v3279, 0.0
  %vm3344 = vcmp.ge.f32.partialorder %v3280, 0.0
  %vm3345 = vcmp.ge.f32.partialorder %v3281, 0.0
  %vm3346 = vcmp.ge.f32.partialorder %v3282, 0.0
  %vm3347 = vcmp.ge.f32.partialorder %v3283, 0.0
  %vm3348 = vcmp.ge.f32.partialorder %v3284, 0.0
  %vm3349 = vcmp.ge.f32.partialorder %v3285, 0.0
  %vm3350 = vcmp.ge.f32.partialorder %v3286, 0.0
  %vm3351 = vcmp.ge.f32.partialorder %v3287, 0.0
  %vm3352 = vcmp.ge.f32.partialorder %v3288, 0.0
  %vm3353 = vcmp.ge.f32.partialorder %v3289, 0.0
  %vm3354 = vcmp.ge.f32.partialorder %v3290, 0.0
  %vm3355 = vcmp.ge.f32.partialorder %v3291, 0.0
  %vm3356 = vcmp.ge.f32.partialorder %v3292, 0.0
  %vm3357 = vcmp.ge.f32.partialorder %v3293, 0.0
  %vm3358 = vcmp.ge.f32.partialorder %v3294, 0.0
  %vm3359 = vcmp.ge.f32.partialorder %v3295, 0.0
  %vm3360 = vcmp.ge.f32.partialorder %v3296, 0.0
  %vm3361 = vcmp.ge.f32.partialorder %v3297, 0.0
  %vm3362 = vcmp.ge.f32.partialorder %v3298, 0.0
  %vm3363 = vcmp.ge.f32.partialorder %v3299, 0.0
  %vm3364 = vcmp.ge.f32.partialorder %v3300, 0.0
  %vm3365 = vcmp.ge.f32.partialorder %v3301, 0.0
  %vm3366 = vcmp.ge.f32.partialorder %v3302, 0.0
  %vm3367 = vcmp.ge.f32.partialorder %v3303, 0.0
  %vm3368 = vcmp.ge.f32.partialorder %v3304, 0.0
  %vm3369 = vcmp.ge.f32.partialorder %v3305, 0.0
  %vm3370 = vcmp.ge.f32.partialorder %v3306, 0.0
  %vm3371 = vcmp.ge.f32.partialorder %v3307, 0.0
  %vm3372 = vcmp.ge.f32.partialorder %v3308, 0.0
  %vm3373 = vcmp.ge.f32.partialorder %v3309, 0.0
  %vm3374 = vcmp.ge.f32.partialorder %v3310, 0.0
  %vm3375 = vcmp.ge.f32.partialorder %v3311, 0.0
  %vm3376 = vcmp.ge.f32.partialorder %v3312, 0.0
  %vm3377 = vcmp.ge.f32.partialorder %v3313, 0.0
  %vm3378 = vcmp.ge.f32.partialorder %v3314, 0.0
  %vm3379 = vcmp.ge.f32.partialorder %v3315, 0.0
  %vm3380 = vcmp.ge.f32.partialorder %v3316, 0.0
  %vm3381 = vcmp.ge.f32.partialorder %v3317, 0.0
  %vm3382 = vcmp.ge.f32.partialorder %v3318, 0.0
  %vm3383 = vcmp.ge.f32.partialorder %v3319, 0.0
  %vm3384 = vcmp.ge.f32.partialorder %v3320, 0.0
  %vm3385 = vcmp.ge.f32.partialorder %v3321, 0.0
  %vm3386 = vcmp.ge.f32.partialorder %v3322, 0.0
  %vm3387 = vcmp.ge.f32.partialorder %v3323, 0.0
  %vm3388 = vcmp.ge.f32.partialorder %v3324, 0.0
  %vm3389 = vcmp.ge.f32.partialorder %v3325, 0.0
  %v3390 = vsel %vm3326, 1.0, -1.0
  %v3391 = vsel %vm3327, 1.0, -1.0
  %v3392 = vsel %vm3328, 1.0, -1.0
  %v3393 = vsel %vm3329, 1.0, -1.0
  %v3394 = vsel %vm3330, 1.0, -1.0
  %v3395 = vsel %vm3331, 1.0, -1.0
  %v3396 = vsel %vm3332, 1.0, -1.0
  %v3397 = vsel %vm3333, 1.0, -1.0
  %v3398 = vsel %vm3334, 1.0, -1.0
  %v3399 = vsel %vm3335, 1.0, -1.0
  %v3400 = vsel %vm3336, 1.0, -1.0
  %v3401 = vsel %vm3337, 1.0, -1.0
  %v3402 = vsel %vm3338, 1.0, -1.0
  %v3403 = vsel %vm3339, 1.0, -1.0
  %v3404 = vsel %vm3340, 1.0, -1.0
  %v3405 = vsel %vm3341, 1.0, -1.0
  %v3406 = vsel %vm3342, 1.0, -1.0
  %v3407 = vsel %vm3343, 1.0, -1.0
  %v3408 = vsel %vm3344, 1.0, -1.0
  %v3409 = vsel %vm3345, 1.0, -1.0
  %v3410 = vsel %vm3346, 1.0, -1.0
  %v3411 = vsel %vm3347, 1.0, -1.0
  %v3412 = vsel %vm3348, 1.0, -1.0
  %v3413 = vsel %vm3349, 1.0, -1.0
  %v3414 = vsel %vm3350, 1.0, -1.0
  %v3415 = vsel %vm3351, 1.0, -1.0
  %v3416 = vsel %vm3352, 1.0, -1.0
  %v3417 = vsel %vm3353, 1.0, -1.0
  %v3418 = vsel %vm3354, 1.0, -1.0
  %v3419 = vsel %vm3355, 1.0, -1.0
  %v3420 = vsel %vm3356, 1.0, -1.0
  %v3421 = vsel %vm3357, 1.0, -1.0
  %v3422 = vsel %vm3358, 1.0, -1.0
  %v3423 = vsel %vm3359, 1.0, -1.0
  %v3424 = vsel %vm3360, 1.0, -1.0
  %v3425 = vsel %vm3361, 1.0, -1.0
  %v3426 = vsel %vm3362, 1.0, -1.0
  %v3427 = vsel %vm3363, 1.0, -1.0
  %v3428 = vsel %vm3364, 1.0, -1.0
  %v3429 = vsel %vm3365, 1.0, -1.0
  %v3430 = vsel %vm3366, 1.0, -1.0
  %v3431 = vsel %vm3367, 1.0, -1.0
  %v3432 = vsel %vm3368, 1.0, -1.0
  %v3433 = vsel %vm3369, 1.0, -1.0
  %v3434 = vsel %vm3370, 1.0, -1.0
  %v3435 = vsel %vm3371, 1.0, -1.0
  %v3436 = vsel %vm3372, 1.0, -1.0
  %v3437 = vsel %vm3373, 1.0, -1.0
  %v3438 = vsel %vm3374, 1.0, -1.0
  %v3439 = vsel %vm3375, 1.0, -1.0
  %v3440 = vsel %vm3376, 1.0, -1.0
  %v3441 = vsel %vm3377, 1.0, -1.0
  %v3442 = vsel %vm3378, 1.0, -1.0
  %v3443 = vsel %vm3379, 1.0, -1.0
  %v3444 = vsel %vm3380, 1.0, -1.0
  %v3445 = vsel %vm3381, 1.0, -1.0
  %v3446 = vsel %vm3382, 1.0, -1.0
  %v3447 = vsel %vm3383, 1.0, -1.0
  %v3448 = vsel %vm3384, 1.0, -1.0
  %v3449 = vsel %vm3385, 1.0, -1.0
  %v3450 = vsel %vm3386, 1.0, -1.0
  %v3451 = vsel %vm3387, 1.0, -1.0
  %v3452 = vsel %vm3388, 1.0, -1.0
  %v3453 = vsel %vm3389, 1.0, -1.0
  %v3454 = vand.u32 2147483647, %v3262
  %v3455 = vand.u32 2147483647, %v3263
  %v3456 = vand.u32 2147483647, %v3264
  %v3457 = vand.u32 2147483647, %v3265
  %v3458 = vand.u32 2147483647, %v3266
  %v3459 = vand.u32 2147483647, %v3267
  %v3460 = vand.u32 2147483647, %v3268
  %v3461 = vand.u32 2147483647, %v3269
  %v3462 = vand.u32 2147483647, %v3270
  %v3463 = vand.u32 2147483647, %v3271
  %v3464 = vand.u32 2147483647, %v3272
  %v3465 = vand.u32 2147483647, %v3273
  %v3466 = vand.u32 2147483647, %v3274
  %v3467 = vand.u32 2147483647, %v3275
  %v3468 = vand.u32 2147483647, %v3276
  %v3469 = vand.u32 2147483647, %v3277
  %v3470 = vand.u32 2147483647, %v3278
  %v3471 = vand.u32 2147483647, %v3279
  %v3472 = vand.u32 2147483647, %v3280
  %v3473 = vand.u32 2147483647, %v3281
  %v3474 = vand.u32 2147483647, %v3282
  %v3475 = vand.u32 2147483647, %v3283
  %v3476 = vand.u32 2147483647, %v3284
  %v3477 = vand.u32 2147483647, %v3285
  %v3478 = vand.u32 2147483647, %v3286
  %v3479 = vand.u32 2147483647, %v3287
  %v3480 = vand.u32 2147483647, %v3288
  %v3481 = vand.u32 2147483647, %v3289
  %v3482 = vand.u32 2147483647, %v3290
  %v3483 = vand.u32 2147483647, %v3291
  %v3484 = vand.u32 2147483647, %v3292
  %v3485 = vand.u32 2147483647, %v3293
  %v3486 = vand.u32 2147483647, %v3294
  %v3487 = vand.u32 2147483647, %v3295
  %v3488 = vand.u32 2147483647, %v3296
  %v3489 = vand.u32 2147483647, %v3297
  %v3490 = vand.u32 2147483647, %v3298
  %v3491 = vand.u32 2147483647, %v3299
  %v3492 = vand.u32 2147483647, %v3300
  %v3493 = vand.u32 2147483647, %v3301
  %v3494 = vand.u32 2147483647, %v3302
  %v3495 = vand.u32 2147483647, %v3303
  %v3496 = vand.u32 2147483647, %v3304
  %v3497 = vand.u32 2147483647, %v3305
  %v3498 = vand.u32 2147483647, %v3306
  %v3499 = vand.u32 2147483647, %v3307
  %v3500 = vand.u32 2147483647, %v3308
  %v3501 = vand.u32 2147483647, %v3309
  %v3502 = vand.u32 2147483647, %v3310
  %v3503 = vand.u32 2147483647, %v3311
  %v3504 = vand.u32 2147483647, %v3312
  %v3505 = vand.u32 2147483647, %v3313
  %v3506 = vand.u32 2147483647, %v3314
  %v3507 = vand.u32 2147483647, %v3315
  %v3508 = vand.u32 2147483647, %v3316
  %v3509 = vand.u32 2147483647, %v3317
  %v3510 = vand.u32 2147483647, %v3318
  %v3511 = vand.u32 2147483647, %v3319
  %v3512 = vand.u32 2147483647, %v3320
  %v3513 = vand.u32 2147483647, %v3321
  %v3514 = vand.u32 2147483647, %v3322
  %v3515 = vand.u32 2147483647, %v3323
  %v3516 = vand.u32 2147483647, %v3324
  %v3517 = vand.u32 2147483647, %v3325
  %v3518 = vmul.f32 %v3454, 0.3275911
  %v3519 = vmul.f32 %v3455, 0.3275911
  %v3520 = vmul.f32 %v3456, 0.3275911
  %v3521 = vmul.f32 %v3457, 0.3275911
  %v3522 = vmul.f32 %v3458, 0.3275911
  %v3523 = vmul.f32 %v3459, 0.3275911
  %v3524 = vmul.f32 %v3460, 0.3275911
  %v3525 = vmul.f32 %v3461, 0.3275911
  %v3526 = vmul.f32 %v3462, 0.3275911
  %v3527 = vmul.f32 %v3463, 0.3275911
  %v3528 = vmul.f32 %v3464, 0.3275911
  %v3529 = vmul.f32 %v3465, 0.3275911
  %v3530 = vmul.f32 %v3466, 0.3275911
  %v3531 = vmul.f32 %v3467, 0.3275911
  %v3532 = vmul.f32 %v3468, 0.3275911
  %v3533 = vmul.f32 %v3469, 0.3275911
  %v3534 = vmul.f32 %v3470, 0.3275911
  %v3535 = vmul.f32 %v3471, 0.3275911
  %v3536 = vmul.f32 %v3472, 0.3275911
  %v3537 = vmul.f32 %v3473, 0.3275911
  %v3538 = vmul.f32 %v3474, 0.3275911
  %v3539 = vmul.f32 %v3475, 0.3275911
  %v3540 = vmul.f32 %v3476, 0.3275911
  %v3541 = vmul.f32 %v3477, 0.3275911
  %v3542 = vmul.f32 %v3478, 0.3275911
  %v3543 = vmul.f32 %v3479, 0.3275911
  %v3544 = vmul.f32 %v3480, 0.3275911
  %v3545 = vmul.f32 %v3481, 0.3275911
  %v3546 = vmul.f32 %v3482, 0.3275911
  %v3547 = vmul.f32 %v3483, 0.3275911
  %v3548 = vmul.f32 %v3484, 0.3275911
  %v3549 = vmul.f32 %v3485, 0.3275911
  %v3550 = vmul.f32 %v3486, 0.3275911
  %v3551 = vmul.f32 %v3487, 0.3275911
  %v3552 = vmul.f32 %v3488, 0.3275911
  %v3553 = vmul.f32 %v3489, 0.3275911
  %v3554 = vmul.f32 %v3490, 0.3275911
  %v3555 = vmul.f32 %v3491, 0.3275911
  %v3556 = vmul.f32 %v3492, 0.3275911
  %v3557 = vmul.f32 %v3493, 0.3275911
  %v3558 = vmul.f32 %v3494, 0.3275911
  %v3559 = vmul.f32 %v3495, 0.3275911
  %v3560 = vmul.f32 %v3496, 0.3275911
  %v3561 = vmul.f32 %v3497, 0.3275911
  %v3562 = vmul.f32 %v3498, 0.3275911
  %v3563 = vmul.f32 %v3499, 0.3275911
  %v3564 = vmul.f32 %v3500, 0.3275911
  %v3565 = vmul.f32 %v3501, 0.3275911
  %v3566 = vmul.f32 %v3502, 0.3275911
  %v3567 = vmul.f32 %v3503, 0.3275911
  %v3568 = vmul.f32 %v3504, 0.3275911
  %v3569 = vmul.f32 %v3505, 0.3275911
  %v3570 = vmul.f32 %v3506, 0.3275911
  %v3571 = vmul.f32 %v3507, 0.3275911
  %v3572 = vmul.f32 %v3508, 0.3275911
  %v3573 = vmul.f32 %v3509, 0.3275911
  %v3574 = vmul.f32 %v3510, 0.3275911
  %v3575 = vmul.f32 %v3511, 0.3275911
  %v3576 = vmul.f32 %v3512, 0.3275911
  %v3577 = vmul.f32 %v3513, 0.3275911
  %v3578 = vmul.f32 %v3514, 0.3275911
  %v3579 = vmul.f32 %v3515, 0.3275911
  %v3580 = vmul.f32 %v3516, 0.3275911
  %v3581 = vmul.f32 %v3517, 0.3275911
  %v3582 = vadd.f32 %v3518, 1.0
  %v3583 = vadd.f32 %v3519, 1.0
  %v3584 = vadd.f32 %v3520, 1.0
  %v3585 = vadd.f32 %v3521, 1.0
  %v3586 = vadd.f32 %v3522, 1.0
  %v3587 = vadd.f32 %v3523, 1.0
  %v3588 = vadd.f32 %v3524, 1.0
  %v3589 = vadd.f32 %v3525, 1.0
  %v3590 = vadd.f32 %v3526, 1.0
  %v3591 = vadd.f32 %v3527, 1.0
  %v3592 = vadd.f32 %v3528, 1.0
  %v3593 = vadd.f32 %v3529, 1.0
  %v3594 = vadd.f32 %v3530, 1.0
  %v3595 = vadd.f32 %v3531, 1.0
  %v3596 = vadd.f32 %v3532, 1.0
  %v3597 = vadd.f32 %v3533, 1.0
  %v3598 = vadd.f32 %v3534, 1.0
  %v3599 = vadd.f32 %v3535, 1.0
  %v3600 = vadd.f32 %v3536, 1.0
  %v3601 = vadd.f32 %v3537, 1.0
  %v3602 = vadd.f32 %v3538, 1.0
  %v3603 = vadd.f32 %v3539, 1.0
  %v3604 = vadd.f32 %v3540, 1.0
  %v3605 = vadd.f32 %v3541, 1.0
  %v3606 = vadd.f32 %v3542, 1.0
  %v3607 = vadd.f32 %v3543, 1.0
  %v3608 = vadd.f32 %v3544, 1.0
  %v3609 = vadd.f32 %v3545, 1.0
  %v3610 = vadd.f32 %v3546, 1.0
  %v3611 = vadd.f32 %v3547, 1.0
  %v3612 = vadd.f32 %v3548, 1.0
  %v3613 = vadd.f32 %v3549, 1.0
  %v3614 = vadd.f32 %v3550, 1.0
  %v3615 = vadd.f32 %v3551, 1.0
  %v3616 = vadd.f32 %v3552, 1.0
  %v3617 = vadd.f32 %v3553, 1.0
  %v3618 = vadd.f32 %v3554, 1.0
  %v3619 = vadd.f32 %v3555, 1.0
  %v3620 = vadd.f32 %v3556, 1.0
  %v3621 = vadd.f32 %v3557, 1.0
  %v3622 = vadd.f32 %v3558, 1.0
  %v3623 = vadd.f32 %v3559, 1.0
  %v3624 = vadd.f32 %v3560, 1.0
  %v3625 = vadd.f32 %v3561, 1.0
  %v3626 = vadd.f32 %v3562, 1.0
  %v3627 = vadd.f32 %v3563, 1.0
  %v3628 = vadd.f32 %v3564, 1.0
  %v3629 = vadd.f32 %v3565, 1.0
  %v3630 = vadd.f32 %v3566, 1.0
  %v3631 = vadd.f32 %v3567, 1.0
  %v3632 = vadd.f32 %v3568, 1.0
  %v3633 = vadd.f32 %v3569, 1.0
  %v3634 = vadd.f32 %v3570, 1.0
  %v3635 = vadd.f32 %v3571, 1.0
  %v3636 = vadd.f32 %v3572, 1.0
  %v3637 = vadd.f32 %v3573, 1.0
  %v3638 = vadd.f32 %v3574, 1.0
  %v3639 = vadd.f32 %v3575, 1.0
  %v3640 = vadd.f32 %v3576, 1.0
  %v3641 = vadd.f32 %v3577, 1.0
  %v3642 = vadd.f32 %v3578, 1.0
  %v3643 = vadd.f32 %v3579, 1.0
  %v3644 = vadd.f32 %v3580, 1.0
  %v3645 = vadd.f32 %v3581, 1.0
  %v3646 = vrcp.pop %v3582
  %v3647 = vrcp.pop %v3583
  %v3648 = vrcp.pop %v3584
  %v3649 = vrcp.pop %v3585
  %v3650 = vrcp.pop %v3586
  %v3651 = vrcp.pop %v3587
  %v3652 = vrcp.pop %v3588
  %v3653 = vrcp.pop %v3589
  %v3654 = vrcp.pop %v3590
  %v3655 = vrcp.pop %v3591
  %v3656 = vrcp.pop %v3592
  %v3657 = vrcp.pop %v3593
  %v3658 = vrcp.pop %v3594
  %v3659 = vrcp.pop %v3595
  %v3660 = vrcp.pop %v3596
  %v3661 = vrcp.pop %v3597
  %v3662 = vrcp.pop %v3598
  %v3663 = vrcp.pop %v3599
  %v3664 = vrcp.pop %v3600
  %v3665 = vrcp.pop %v3601
  %v3666 = vrcp.pop %v3602
  %v3667 = vrcp.pop %v3603
  %v3668 = vrcp.pop %v3604
  %v3669 = vrcp.pop %v3605
  %v3670 = vrcp.pop %v3606
  %v3671 = vrcp.pop %v3607
  %v3672 = vrcp.pop %v3608
  %v3673 = vrcp.pop %v3609
  %v3674 = vrcp.pop %v3610
  %v3675 = vrcp.pop %v3611
  %v3676 = vrcp.pop %v3612
  %v3677 = vrcp.pop %v3613
  %v3678 = vrcp.pop %v3614
  %v3679 = vrcp.pop %v3615
  %v3680 = vrcp.pop %v3616
  %v3681 = vrcp.pop %v3617
  %v3682 = vrcp.pop %v3618
  %v3683 = vrcp.pop %v3619
  %v3684 = vrcp.pop %v3620
  %v3685 = vrcp.pop %v3621
  %v3686 = vrcp.pop %v3622
  %v3687 = vrcp.pop %v3623
  %v3688 = vrcp.pop %v3624
  %v3689 = vrcp.pop %v3625
  %v3690 = vrcp.pop %v3626
  %v3691 = vrcp.pop %v3627
  %v3692 = vrcp.pop %v3628
  %v3693 = vrcp.pop %v3629
  %v3694 = vrcp.pop %v3630
  %v3695 = vrcp.pop %v3631
  %v3696 = vrcp.pop %v3632
  %v3697 = vrcp.pop %v3633
  %v3698 = vrcp.pop %v3634
  %v3699 = vrcp.pop %v3635
  %v3700 = vrcp.pop %v3636
  %v3701 = vrcp.pop %v3637
  %v3702 = vrcp.pop %v3638
  %v3703 = vrcp.pop %v3639
  %v3704 = vrcp.pop %v3640
  %v3705 = vrcp.pop %v3641
  %v3706 = vrcp.pop %v3642
  %v3707 = vrcp.pop %v3643
  %v3708 = vrcp.pop %v3644
  %v3709 = vrcp.pop %v3645
  %v3710 = vmul.f32 %v3582, %v3646
  %v3711 = vmul.f32 %v3583, %v3647
  %v3712 = vmul.f32 %v3584, %v3648
  %v3713 = vmul.f32 %v3585, %v3649
  %v3714 = vmul.f32 %v3586, %v3650
  %v3715 = vmul.f32 %v3587, %v3651
  %v3716 = vmul.f32 %v3588, %v3652
  %v3717 = vmul.f32 %v3589, %v3653
  %v3718 = vmul.f32 %v3590, %v3654
  %v3719 = vmul.f32 %v3591, %v3655
  %v3720 = vmul.f32 %v3592, %v3656
  %v3721 = vmul.f32 %v3593, %v3657
  %v3722 = vmul.f32 %v3594, %v3658
  %v3723 = vmul.f32 %v3595, %v3659
  %v3724 = vmul.f32 %v3596, %v3660
  %v3725 = vmul.f32 %v3597, %v3661
  %v3726 = vmul.f32 %v3598, %v3662
  %v3727 = vmul.f32 %v3599, %v3663
  %v3728 = vmul.f32 %v3600, %v3664
  %v3729 = vmul.f32 %v3601, %v3665
  %v3730 = vmul.f32 %v3602, %v3666
  %v3731 = vmul.f32 %v3603, %v3667
  %v3732 = vmul.f32 %v3604, %v3668
  %v3733 = vmul.f32 %v3605, %v3669
  %v3734 = vmul.f32 %v3606, %v3670
  %v3735 = vmul.f32 %v3607, %v3671
  %v3736 = vmul.f32 %v3608, %v3672
  %v3737 = vmul.f32 %v3609, %v3673
  %v3738 = vmul.f32 %v3610, %v3674
  %v3739 = vmul.f32 %v3611, %v3675
  %v3740 = vmul.f32 %v3612, %v3676
  %v3741 = vmul.f32 %v3613, %v3677
  %v3742 = vmul.f32 %v3614, %v3678
  %v3743 = vmul.f32 %v3615, %v3679
  %v3744 = vmul.f32 %v3616, %v3680
  %v3745 = vmul.f32 %v3617, %v3681
  %v3746 = vmul.f32 %v3618, %v3682
  %v3747 = vmul.f32 %v3619, %v3683
  %v3748 = vmul.f32 %v3620, %v3684
  %v3749 = vmul.f32 %v3621, %v3685
  %v3750 = vmul.f32 %v3622, %v3686
  %v3751 = vmul.f32 %v3623, %v3687
  %v3752 = vmul.f32 %v3624, %v3688
  %v3753 = vmul.f32 %v3625, %v3689
  %v3754 = vmul.f32 %v3626, %v3690
  %v3755 = vmul.f32 %v3627, %v3691
  %v3756 = vmul.f32 %v3628, %v3692
  %v3757 = vmul.f32 %v3629, %v3693
  %v3758 = vmul.f32 %v3630, %v3694
  %v3759 = vmul.f32 %v3631, %v3695
  %v3760 = vmul.f32 %v3632, %v3696
  %v3761 = vmul.f32 %v3633, %v3697
  %v3762 = vmul.f32 %v3634, %v3698
  %v3763 = vmul.f32 %v3635, %v3699
  %v3764 = vmul.f32 %v3636, %v3700
  %v3765 = vmul.f32 %v3637, %v3701
  %v3766 = vmul.f32 %v3638, %v3702
  %v3767 = vmul.f32 %v3639, %v3703
  %v3768 = vmul.f32 %v3640, %v3704
  %v3769 = vmul.f32 %v3641, %v3705
  %v3770 = vmul.f32 %v3642, %v3706
  %v3771 = vmul.f32 %v3643, %v3707
  %v3772 = vmul.f32 %v3644, %v3708
  %v3773 = vmul.f32 %v3645, %v3709
  %v3774 = vsub.f32 2.0, %v3710
  %v3775 = vsub.f32 2.0, %v3711
  %v3776 = vsub.f32 2.0, %v3712
  %v3777 = vsub.f32 2.0, %v3713
  %v3778 = vsub.f32 2.0, %v3714
  %v3779 = vsub.f32 2.0, %v3715
  %v3780 = vsub.f32 2.0, %v3716
  %v3781 = vsub.f32 2.0, %v3717
  %v3782 = vsub.f32 2.0, %v3718
  %v3783 = vsub.f32 2.0, %v3719
  %v3784 = vsub.f32 2.0, %v3720
  %v3785 = vsub.f32 2.0, %v3721
  %v3786 = vsub.f32 2.0, %v3722
  %v3787 = vsub.f32 2.0, %v3723
  %v3788 = vsub.f32 2.0, %v3724
  %v3789 = vsub.f32 2.0, %v3725
  %v3790 = vsub.f32 2.0, %v3726
  %v3791 = vsub.f32 2.0, %v3727
  %v3792 = vsub.f32 2.0, %v3728
  %v3793 = vsub.f32 2.0, %v3729
  %v3794 = vsub.f32 2.0, %v3730
  %v3795 = vsub.f32 2.0, %v3731
  %v3796 = vsub.f32 2.0, %v3732
  %v3797 = vsub.f32 2.0, %v3733
  %v3798 = vsub.f32 2.0, %v3734
  %v3799 = vsub.f32 2.0, %v3735
  %v3800 = vsub.f32 2.0, %v3736
  %v3801 = vsub.f32 2.0, %v3737
  %v3802 = vsub.f32 2.0, %v3738
  %v3803 = vsub.f32 2.0, %v3739
  %v3804 = vsub.f32 2.0, %v3740
  %v3805 = vsub.f32 2.0, %v3741
  %v3806 = vsub.f32 2.0, %v3742
  %v3807 = vsub.f32 2.0, %v3743
  %v3808 = vsub.f32 2.0, %v3744
  %v3809 = vsub.f32 2.0, %v3745
  %v3810 = vsub.f32 2.0, %v3746
  %v3811 = vsub.f32 2.0, %v3747
  %v3812 = vsub.f32 2.0, %v3748
  %v3813 = vsub.f32 2.0, %v3749
  %v3814 = vsub.f32 2.0, %v3750
  %v3815 = vsub.f32 2.0, %v3751
  %v3816 = vsub.f32 2.0, %v3752
  %v3817 = vsub.f32 2.0, %v3753
  %v3818 = vsub.f32 2.0, %v3754
  %v3819 = vsub.f32 2.0, %v3755
  %v3820 = vsub.f32 2.0, %v3756
  %v3821 = vsub.f32 2.0, %v3757
  %v3822 = vsub.f32 2.0, %v3758
  %v3823 = vsub.f32 2.0, %v3759
  %v3824 = vsub.f32 2.0, %v3760
  %v3825 = vsub.f32 2.0, %v3761
  %v3826 = vsub.f32 2.0, %v3762
  %v3827 = vsub.f32 2.0, %v3763
  %v3828 = vsub.f32 2.0, %v3764
  %v3829 = vsub.f32 2.0, %v3765
  %v3830 = vsub.f32 2.0, %v3766
  %v3831 = vsub.f32 2.0, %v3767
  %v3832 = vsub.f32 2.0, %v3768
  %v3833 = vsub.f32 2.0, %v3769
  %v3834 = vsub.f32 2.0, %v3770
  %v3835 = vsub.f32 2.0, %v3771
  %v3836 = vsub.f32 2.0, %v3772
  %v3837 = vsub.f32 2.0, %v3773
  %v3838 = vmul.f32 %v3646, %v3774
  %v3839 = vmul.f32 %v3647, %v3775
  %v3840 = vmul.f32 %v3648, %v3776
  %v3841 = vmul.f32 %v3649, %v3777
  %v3842 = vmul.f32 %v3650, %v3778
  %v3843 = vmul.f32 %v3651, %v3779
  %v3844 = vmul.f32 %v3652, %v3780
  %v3845 = vmul.f32 %v3653, %v3781
  %v3846 = vmul.f32 %v3654, %v3782
  %v3847 = vmul.f32 %v3655, %v3783
  %v3848 = vmul.f32 %v3656, %v3784
  %v3849 = vmul.f32 %v3657, %v3785
  %v3850 = vmul.f32 %v3658, %v3786
  %v3851 = vmul.f32 %v3659, %v3787
  %v3852 = vmul.f32 %v3660, %v3788
  %v3853 = vmul.f32 %v3661, %v3789
  %v3854 = vmul.f32 %v3662, %v3790
  %v3855 = vmul.f32 %v3663, %v3791
  %v3856 = vmul.f32 %v3664, %v3792
  %v3857 = vmul.f32 %v3665, %v3793
  %v3858 = vmul.f32 %v3666, %v3794
  %v3859 = vmul.f32 %v3667, %v3795
  %v3860 = vmul.f32 %v3668, %v3796
  %v3861 = vmul.f32 %v3669, %v3797
  %v3862 = vmul.f32 %v3670, %v3798
  %v3863 = vmul.f32 %v3671, %v3799
  %v3864 = vmul.f32 %v3672, %v3800
  %v3865 = vmul.f32 %v3673, %v3801
  %v3866 = vmul.f32 %v3674, %v3802
  %v3867 = vmul.f32 %v3675, %v3803
  %v3868 = vmul.f32 %v3676, %v3804
  %v3869 = vmul.f32 %v3677, %v3805
  %v3870 = vmul.f32 %v3678, %v3806
  %v3871 = vmul.f32 %v3679, %v3807
  %v3872 = vmul.f32 %v3680, %v3808
  %v3873 = vmul.f32 %v3681, %v3809
  %v3874 = vmul.f32 %v3682, %v3810
  %v3875 = vmul.f32 %v3683, %v3811
  %v3876 = vmul.f32 %v3684, %v3812
  %v3877 = vmul.f32 %v3685, %v3813
  %v3878 = vmul.f32 %v3686, %v3814
  %v3879 = vmul.f32 %v3687, %v3815
  %v3880 = vmul.f32 %v3688, %v3816
  %v3881 = vmul.f32 %v3689, %v3817
  %v3882 = vmul.f32 %v3690, %v3818
  %v3883 = vmul.f32 %v3691, %v3819
  %v3884 = vmul.f32 %v3692, %v3820
  %v3885 = vmul.f32 %v3693, %v3821
  %v3886 = vmul.f32 %v3694, %v3822
  %v3887 = vmul.f32 %v3695, %v3823
  %v3888 = vmul.f32 %v3696, %v3824
  %v3889 = vmul.f32 %v3697, %v3825
  %v3890 = vmul.f32 %v3698, %v3826
  %v3891 = vmul.f32 %v3699, %v3827
  %v3892 = vmul.f32 %v3700, %v3828
  %v3893 = vmul.f32 %v3701, %v3829
  %v3894 = vmul.f32 %v3702, %v3830
  %v3895 = vmul.f32 %v3703, %v3831
  %v3896 = vmul.f32 %v3704, %v3832
  %v3897 = vmul.f32 %v3705, %v3833
  %v3898 = vmul.f32 %v3706, %v3834
  %v3899 = vmul.f32 %v3707, %v3835
  %v3900 = vmul.f32 %v3708, %v3836
  %v3901 = vmul.f32 %v3709, %v3837
  %v3902 = vmul.f32 %v3838, 1.0614054
  %v3903 = vmul.f32 %v3839, 1.0614054
  %v3904 = vmul.f32 %v3840, 1.0614054
  %v3905 = vmul.f32 %v3841, 1.0614054
  %v3906 = vmul.f32 %v3842, 1.0614054
  %v3907 = vmul.f32 %v3843, 1.0614054
  %v3908 = vmul.f32 %v3844, 1.0614054
  %v3909 = vmul.f32 %v3845, 1.0614054
  %v3910 = vmul.f32 %v3846, 1.0614054
  %v3911 = vmul.f32 %v3847, 1.0614054
  %v3912 = vmul.f32 %v3848, 1.0614054
  %v3913 = vmul.f32 %v3849, 1.0614054
  %v3914 = vmul.f32 %v3850, 1.0614054
  %v3915 = vmul.f32 %v3851, 1.0614054
  %v3916 = vmul.f32 %v3852, 1.0614054
  %v3917 = vmul.f32 %v3853, 1.0614054
  %v3918 = vmul.f32 %v3854, 1.0614054
  %v3919 = vmul.f32 %v3855, 1.0614054
  %v3920 = vmul.f32 %v3856, 1.0614054
  %v3921 = vmul.f32 %v3857, 1.0614054
  %v3922 = vmul.f32 %v3858, 1.0614054
  %v3923 = vmul.f32 %v3859, 1.0614054
  %v3924 = vmul.f32 %v3860, 1.0614054
  %v3925 = vmul.f32 %v3861, 1.0614054
  %v3926 = vmul.f32 %v3862, 1.0614054
  %v3927 = vmul.f32 %v3863, 1.0614054
  %v3928 = vmul.f32 %v3864, 1.0614054
  %v3929 = vmul.f32 %v3865, 1.0614054
  %v3930 = vmul.f32 %v3866, 1.0614054
  %v3931 = vmul.f32 %v3867, 1.0614054
  %v3932 = vmul.f32 %v3868, 1.0614054
  %v3933 = vmul.f32 %v3869, 1.0614054
  %v3934 = vmul.f32 %v3870, 1.0614054
  %v3935 = vmul.f32 %v3871, 1.0614054
  %v3936 = vmul.f32 %v3872, 1.0614054
  %v3937 = vmul.f32 %v3873, 1.0614054
  %v3938 = vmul.f32 %v3874, 1.0614054
  %v3939 = vmul.f32 %v3875, 1.0614054
  %v3940 = vmul.f32 %v3876, 1.0614054
  %v3941 = vmul.f32 %v3877, 1.0614054
  %v3942 = vmul.f32 %v3878, 1.0614054
  %v3943 = vmul.f32 %v3879, 1.0614054
  %v3944 = vmul.f32 %v3880, 1.0614054
  %v3945 = vmul.f32 %v3881, 1.0614054
  %v3946 = vmul.f32 %v3882, 1.0614054
  %v3947 = vmul.f32 %v3883, 1.0614054
  %v3948 = vmul.f32 %v3884, 1.0614054
  %v3949 = vmul.f32 %v3885, 1.0614054
  %v3950 = vmul.f32 %v3886, 1.0614054
  %v3951 = vmul.f32 %v3887, 1.0614054
  %v3952 = vmul.f32 %v3888, 1.0614054
  %v3953 = vmul.f32 %v3889, 1.0614054
  %v3954 = vmul.f32 %v3890, 1.0614054
  %v3955 = vmul.f32 %v3891, 1.0614054
  %v3956 = vmul.f32 %v3892, 1.0614054
  %v3957 = vmul.f32 %v3893, 1.0614054
  %v3958 = vmul.f32 %v3894, 1.0614054
  %v3959 = vmul.f32 %v3895, 1.0614054
  %v3960 = vmul.f32 %v3896, 1.0614054
  %v3961 = vmul.f32 %v3897, 1.0614054
  %v3962 = vmul.f32 %v3898, 1.0614054
  %v3963 = vmul.f32 %v3899, 1.0614054
  %v3964 = vmul.f32 %v3900, 1.0614054
  %v3965 = vmul.f32 %v3901, 1.0614054
  %v3966 = vadd.f32 %v3902, -1.4531521
  %v3967 = vadd.f32 %v3903, -1.4531521
  %v3968 = vadd.f32 %v3904, -1.4531521
  %v3969 = vadd.f32 %v3905, -1.4531521
  %v3970 = vadd.f32 %v3906, -1.4531521
  %v3971 = vadd.f32 %v3907, -1.4531521
  %v3972 = vadd.f32 %v3908, -1.4531521
  %v3973 = vadd.f32 %v3909, -1.4531521
  %v3974 = vadd.f32 %v3910, -1.4531521
  %v3975 = vadd.f32 %v3911, -1.4531521
  %v3976 = vadd.f32 %v3912, -1.4531521
  %v3977 = vadd.f32 %v3913, -1.4531521
  %v3978 = vadd.f32 %v3914, -1.4531521
  %v3979 = vadd.f32 %v3915, -1.4531521
  %v3980 = vadd.f32 %v3916, -1.4531521
  %v3981 = vadd.f32 %v3917, -1.4531521
  %v3982 = vadd.f32 %v3918, -1.4531521
  %v3983 = vadd.f32 %v3919, -1.4531521
  %v3984 = vadd.f32 %v3920, -1.4531521
  %v3985 = vadd.f32 %v3921, -1.4531521
  %v3986 = vadd.f32 %v3922, -1.4531521
  %v3987 = vadd.f32 %v3923, -1.4531521
  %v3988 = vadd.f32 %v3924, -1.4531521
  %v3989 = vadd.f32 %v3925, -1.4531521
  %v3990 = vadd.f32 %v3926, -1.4531521
  %v3991 = vadd.f32 %v3927, -1.4531521
  %v3992 = vadd.f32 %v3928, -1.4531521
  %v3993 = vadd.f32 %v3929, -1.4531521
  %v3994 = vadd.f32 %v3930, -1.4531521
  %v3995 = vadd.f32 %v3931, -1.4531521
  %v3996 = vadd.f32 %v3932, -1.4531521
  %v3997 = vadd.f32 %v3933, -1.4531521
  %v3998 = vadd.f32 %v3934, -1.4531521
  %v3999 = vadd.f32 %v3935, -1.4531521
  %v4000 = vadd.f32 %v3936, -1.4531521
  %v4001 = vadd.f32 %v3937, -1.4531521
  %v4002 = vadd.f32 %v3938, -1.4531521
  %v4003 = vadd.f32 %v3939, -1.4531521
  %v4004 = vadd.f32 %v3940, -1.4531521
  %v4005 = vadd.f32 %v3941, -1.4531521
  %v4006 = vadd.f32 %v3942, -1.4531521
  %v4007 = vadd.f32 %v3943, -1.4531521
  %v4008 = vadd.f32 %v3944, -1.4531521
  %v4009 = vadd.f32 %v3945, -1.4531521
  %v4010 = vadd.f32 %v3946, -1.4531521
  %v4011 = vadd.f32 %v3947, -1.4531521
  %v4012 = vadd.f32 %v3948, -1.4531521
  %v4013 = vadd.f32 %v3949, -1.4531521
  %v4014 = vadd.f32 %v3950, -1.4531521
  %v4015 = vadd.f32 %v3951, -1.4531521
  %v4016 = vadd.f32 %v3952, -1.4531521
  %v4017 = vadd.f32 %v3953, -1.4531521
  %v4018 = vadd.f32 %v3954, -1.4531521
  %v4019 = vadd.f32 %v3955, -1.4531521
  %v4020 = vadd.f32 %v3956, -1.4531521
  %v4021 = vadd.f32 %v3957, -1.4531521
  %v4022 = vadd.f32 %v3958, -1.4531521
  %v4023 = vadd.f32 %v3959, -1.4531521
  %v4024 = vadd.f32 %v3960, -1.4531521
  %v4025 = vadd.f32 %v3961, -1.4531521
  %v4026 = vadd.f32 %v3962, -1.4531521
  %v4027 = vadd.f32 %v3963, -1.4531521
  %v4028 = vadd.f32 %v3964, -1.4531521
  %v4029 = vadd.f32 %v3965, -1.4531521
  %v4030 = vmul.f32 %v3966, %v3838
  %v4031 = vmul.f32 %v3967, %v3839
  %v4032 = vmul.f32 %v3968, %v3840
  %v4033 = vmul.f32 %v3969, %v3841
  %v4034 = vmul.f32 %v3970, %v3842
  %v4035 = vmul.f32 %v3971, %v3843
  %v4036 = vmul.f32 %v3972, %v3844
  %v4037 = vmul.f32 %v3973, %v3845
  %v4038 = vmul.f32 %v3974, %v3846
  %v4039 = vmul.f32 %v3975, %v3847
  %v4040 = vmul.f32 %v3976, %v3848
  %v4041 = vmul.f32 %v3977, %v3849
  %v4042 = vmul.f32 %v3978, %v3850
  %v4043 = vmul.f32 %v3979, %v3851
  %v4044 = vmul.f32 %v3980, %v3852
  %v4045 = vmul.f32 %v3981, %v3853
  %v4046 = vmul.f32 %v3982, %v3854
  %v4047 = vmul.f32 %v3983, %v3855
  %v4048 = vmul.f32 %v3984, %v3856
  %v4049 = vmul.f32 %v3985, %v3857
  %v4050 = vmul.f32 %v3986, %v3858
  %v4051 = vmul.f32 %v3987, %v3859
  %v4052 = vmul.f32 %v3988, %v3860
  %v4053 = vmul.f32 %v3989, %v3861
  %v4054 = vmul.f32 %v3990, %v3862
  %v4055 = vmul.f32 %v3991, %v3863
  %v4056 = vmul.f32 %v3992, %v3864
  %v4057 = vmul.f32 %v3993, %v3865
  %v4058 = vmul.f32 %v3994, %v3866
  %v4059 = vmul.f32 %v3995, %v3867
  %v4060 = vmul.f32 %v3996, %v3868
  %v4061 = vmul.f32 %v3997, %v3869
  %v4062 = vmul.f32 %v3998, %v3870
  %v4063 = vmul.f32 %v3999, %v3871
  %v4064 = vmul.f32 %v4000, %v3872
  %v4065 = vmul.f32 %v4001, %v3873
  %v4066 = vmul.f32 %v4002, %v3874
  %v4067 = vmul.f32 %v4003, %v3875
  %v4068 = vmul.f32 %v4004, %v3876
  %v4069 = vmul.f32 %v4005, %v3877
  %v4070 = vmul.f32 %v4006, %v3878
  %v4071 = vmul.f32 %v4007, %v3879
  %v4072 = vmul.f32 %v4008, %v3880
  %v4073 = vmul.f32 %v4009, %v3881
  %v4074 = vmul.f32 %v4010, %v3882
  %v4075 = vmul.f32 %v4011, %v3883
  %v4076 = vmul.f32 %v4012, %v3884
  %v4077 = vmul.f32 %v4013, %v3885
  %v4078 = vmul.f32 %v4014, %v3886
  %v4079 = vmul.f32 %v4015, %v3887
  %v4080 = vmul.f32 %v4016, %v3888
  %v4081 = vmul.f32 %v4017, %v3889
  %v4082 = vmul.f32 %v4018, %v3890
  %v4083 = vmul.f32 %v4019, %v3891
  %v4084 = vmul.f32 %v4020, %v3892
  %v4085 = vmul.f32 %v4021, %v3893
  %v4086 = vmul.f32 %v4022, %v3894
  %v4087 = vmul.f32 %v4023, %v3895
  %v4088 = vmul.f32 %v4024, %v3896
  %v4089 = vmul.f32 %v4025, %v3897
  %v4090 = vmul.f32 %v4026, %v3898
  %v4091 = vmul.f32 %v4027, %v3899
  %v4092 = vmul.f32 %v4028, %v3900
  %v4093 = vmul.f32 %v4029, %v3901
  %v4094 = vadd.f32 %v4030, 1.4214138
  %v4095 = vadd.f32 %v4031, 1.4214138
  %v4096 = vadd.f32 %v4032, 1.4214138
  %v4097 = vadd.f32 %v4033, 1.4214138
  %v4098 = vadd.f32 %v4034, 1.4214138
  %v4099 = vadd.f32 %v4035, 1.4214138
  %v4100 = vadd.f32 %v4036, 1.4214138
  %v4101 = vadd.f32 %v4037, 1.4214138
  %v4102 = vadd.f32 %v4038, 1.4214138
  %v4103 = vadd.f32 %v4039, 1.4214138
  %v4104 = vadd.f32 %v4040, 1.4214138
  %v4105 = vadd.f32 %v4041, 1.4214138
  %v4106 = vadd.f32 %v4042, 1.4214138
  %v4107 = vadd.f32 %v4043, 1.4214138
  %v4108 = vadd.f32 %v4044, 1.4214138
  %v4109 = vadd.f32 %v4045, 1.4214138
  %v4110 = vadd.f32 %v4046, 1.4214138
  %v4111 = vadd.f32 %v4047, 1.4214138
  %v4112 = vadd.f32 %v4048, 1.4214138
  %v4113 = vadd.f32 %v4049, 1.4214138
  %v4114 = vadd.f32 %v4050, 1.4214138
  %v4115 = vadd.f32 %v4051, 1.4214138
  %v4116 = vadd.f32 %v4052, 1.4214138
  %v4117 = vadd.f32 %v4053, 1.4214138
  %v4118 = vadd.f32 %v4054, 1.4214138
  %v4119 = vadd.f32 %v4055, 1.4214138
  %v4120 = vadd.f32 %v4056, 1.4214138
  %v4121 = vadd.f32 %v4057, 1.4214138
  %v4122 = vadd.f32 %v4058, 1.4214138
  %v4123 = vadd.f32 %v4059, 1.4214138
  %v4124 = vadd.f32 %v4060, 1.4214138
  %v4125 = vadd.f32 %v4061, 1.4214138
  %v4126 = vadd.f32 %v4062, 1.4214138
  %v4127 = vadd.f32 %v4063, 1.4214138
  %v4128 = vadd.f32 %v4064, 1.4214138
  %v4129 = vadd.f32 %v4065, 1.4214138
  %v4130 = vadd.f32 %v4066, 1.4214138
  %v4131 = vadd.f32 %v4067, 1.4214138
  %v4132 = vadd.f32 %v4068, 1.4214138
  %v4133 = vadd.f32 %v4069, 1.4214138
  %v4134 = vadd.f32 %v4070, 1.4214138
  %v4135 = vadd.f32 %v4071, 1.4214138
  %v4136 = vadd.f32 %v4072, 1.4214138
  %v4137 = vadd.f32 %v4073, 1.4214138
  %v4138 = vadd.f32 %v4074, 1.4214138
  %v4139 = vadd.f32 %v4075, 1.4214138
  %v4140 = vadd.f32 %v4076, 1.4214138
  %v4141 = vadd.f32 %v4077, 1.4214138
  %v4142 = vadd.f32 %v4078, 1.4214138
  %v4143 = vadd.f32 %v4079, 1.4214138
  %v4144 = vadd.f32 %v4080, 1.4214138
  %v4145 = vadd.f32 %v4081, 1.4214138
  %v4146 = vadd.f32 %v4082, 1.4214138
  %v4147 = vadd.f32 %v4083, 1.4214138
  %v4148 = vadd.f32 %v4084, 1.4214138
  %v4149 = vadd.f32 %v4085, 1.4214138
  %v4150 = vadd.f32 %v4086, 1.4214138
  %v4151 = vadd.f32 %v4087, 1.4214138
  %v4152 = vadd.f32 %v4088, 1.4214138
  %v4153 = vadd.f32 %v4089, 1.4214138
  %v4154 = vadd.f32 %v4090, 1.4214138
  %v4155 = vadd.f32 %v4091, 1.4214138
  %v4156 = vadd.f32 %v4092, 1.4214138
  %v4157 = vadd.f32 %v4093, 1.4214138
  %v4158 = vmul.f32 %v4094, %v3838
  %v4159 = vmul.f32 %v4095, %v3839
  %v4160 = vmul.f32 %v4096, %v3840
  %v4161 = vmul.f32 %v4097, %v3841
  %v4162 = vmul.f32 %v4098, %v3842
  %v4163 = vmul.f32 %v4099, %v3843
  %v4164 = vmul.f32 %v4100, %v3844
  %v4165 = vmul.f32 %v4101, %v3845
  %v4166 = vmul.f32 %v4102, %v3846
  %v4167 = vmul.f32 %v4103, %v3847
  %v4168 = vmul.f32 %v4104, %v3848
  %v4169 = vmul.f32 %v4105, %v3849
  %v4170 = vmul.f32 %v4106, %v3850
  %v4171 = vmul.f32 %v4107, %v3851
  %v4172 = vmul.f32 %v4108, %v3852
  %v4173 = vmul.f32 %v4109, %v3853
  %v4174 = vmul.f32 %v4110, %v3854
  %v4175 = vmul.f32 %v4111, %v3855
  %v4176 = vmul.f32 %v4112, %v3856
  %v4177 = vmul.f32 %v4113, %v3857
  %v4178 = vmul.f32 %v4114, %v3858
  %v4179 = vmul.f32 %v4115, %v3859
  %v4180 = vmul.f32 %v4116, %v3860
  %v4181 = vmul.f32 %v4117, %v3861
  %v4182 = vmul.f32 %v4118, %v3862
  %v4183 = vmul.f32 %v4119, %v3863
  %v4184 = vmul.f32 %v4120, %v3864
  %v4185 = vmul.f32 %v4121, %v3865
  %v4186 = vmul.f32 %v4122, %v3866
  %v4187 = vmul.f32 %v4123, %v3867
  %v4188 = vmul.f32 %v4124, %v3868
  %v4189 = vmul.f32 %v4125, %v3869
  %v4190 = vmul.f32 %v4126, %v3870
  %v4191 = vmul.f32 %v4127, %v3871
  %v4192 = vmul.f32 %v4128, %v3872
  %v4193 = vmul.f32 %v4129, %v3873
  %v4194 = vmul.f32 %v4130, %v3874
  %v4195 = vmul.f32 %v4131, %v3875
  %v4196 = vmul.f32 %v4132, %v3876
  %v4197 = vmul.f32 %v4133, %v3877
  %v4198 = vmul.f32 %v4134, %v3878
  %v4199 = vmul.f32 %v4135, %v3879
  %v4200 = vmul.f32 %v4136, %v3880
  %v4201 = vmul.f32 %v4137, %v3881
  %v4202 = vmul.f32 %v4138, %v3882
  %v4203 = vmul.f32 %v4139, %v3883
  %v4204 = vmul.f32 %v4140, %v3884
  %v4205 = vmul.f32 %v4141, %v3885
  %v4206 = vmul.f32 %v4142, %v3886
  %v4207 = vmul.f32 %v4143, %v3887
  %v4208 = vmul.f32 %v4144, %v3888
  %v4209 = vmul.f32 %v4145, %v3889
  %v4210 = vmul.f32 %v4146, %v3890
  %v4211 = vmul.f32 %v4147, %v3891
  %v4212 = vmul.f32 %v4148, %v3892
  %v4213 = vmul.f32 %v4149, %v3893
  %v4214 = vmul.f32 %v4150, %v3894
  %v4215 = vmul.f32 %v4151, %v3895
  %v4216 = vmul.f32 %v4152, %v3896
  %v4217 = vmul.f32 %v4153, %v3897
  %v4218 = vmul.f32 %v4154, %v3898
  %v4219 = vmul.f32 %v4155, %v3899
  %v4220 = vmul.f32 %v4156, %v3900
  %v4221 = vmul.f32 %v4157, %v3901
  %v4222 = vadd.f32 %v4158, -0.28449672
  %v4223 = vadd.f32 %v4159, -0.28449672
  %v4224 = vadd.f32 %v4160, -0.28449672
  %v4225 = vadd.f32 %v4161, -0.28449672
  %v4226 = vadd.f32 %v4162, -0.28449672
  %v4227 = vadd.f32 %v4163, -0.28449672
  %v4228 = vadd.f32 %v4164, -0.28449672
  %v4229 = vadd.f32 %v4165, -0.28449672
  %v4230 = vadd.f32 %v4166, -0.28449672
  %v4231 = vadd.f32 %v4167, -0.28449672
  %v4232 = vadd.f32 %v4168, -0.28449672
  %v4233 = vadd.f32 %v4169, -0.28449672
  %v4234 = vadd.f32 %v4170, -0.28449672
  %v4235 = vadd.f32 %v4171, -0.28449672
  %v4236 = vadd.f32 %v4172, -0.28449672
  %v4237 = vadd.f32 %v4173, -0.28449672
  %v4238 = vadd.f32 %v4174, -0.28449672
  %v4239 = vadd.f32 %v4175, -0.28449672
  %v4240 = vadd.f32 %v4176, -0.28449672
  %v4241 = vadd.f32 %v4177, -0.28449672
  %v4242 = vadd.f32 %v4178, -0.28449672
  %v4243 = vadd.f32 %v4179, -0.28449672
  %v4244 = vadd.f32 %v4180, -0.28449672
  %v4245 = vadd.f32 %v4181, -0.28449672
  %v4246 = vadd.f32 %v4182, -0.28449672
  %v4247 = vadd.f32 %v4183, -0.28449672
  %v4248 = vadd.f32 %v4184, -0.28449672
  %v4249 = vadd.f32 %v4185, -0.28449672
  %v4250 = vadd.f32 %v4186, -0.28449672
  %v4251 = vadd.f32 %v4187, -0.28449672
  %v4252 = vadd.f32 %v4188, -0.28449672
  %v4253 = vadd.f32 %v4189, -0.28449672
  %v4254 = vadd.f32 %v4190, -0.28449672
  %v4255 = vadd.f32 %v4191, -0.28449672
  %v4256 = vadd.f32 %v4192, -0.28449672
  %v4257 = vadd.f32 %v4193, -0.28449672
  %v4258 = vadd.f32 %v4194, -0.28449672
  %v4259 = vadd.f32 %v4195, -0.28449672
  %v4260 = vadd.f32 %v4196, -0.28449672
  %v4261 = vadd.f32 %v4197, -0.28449672
  %v4262 = vadd.f32 %v4198, -0.28449672
  %v4263 = vadd.f32 %v4199, -0.28449672
  %v4264 = vadd.f32 %v4200, -0.28449672
  %v4265 = vadd.f32 %v4201, -0.28449672
  %v4266 = vadd.f32 %v4202, -0.28449672
  %v4267 = vadd.f32 %v4203, -0.28449672
  %v4268 = vadd.f32 %v4204, -0.28449672
  %v4269 = vadd.f32 %v4205, -0.28449672
  %v4270 = vadd.f32 %v4206, -0.28449672
  %v4271 = vadd.f32 %v4207, -0.28449672
  %v4272 = vadd.f32 %v4208, -0.28449672
  %v4273 = vadd.f32 %v4209, -0.28449672
  %v4274 = vadd.f32 %v4210, -0.28449672
  %v4275 = vadd.f32 %v4211, -0.28449672
  %v4276 = vadd.f32 %v4212, -0.28449672
  %v4277 = vadd.f32 %v4213, -0.28449672
  %v4278 = vadd.f32 %v4214, -0.28449672
  %v4279 = vadd.f32 %v4215, -0.28449672
  %v4280 = vadd.f32 %v4216, -0.28449672
  %v4281 = vadd.f32 %v4217, -0.28449672
  %v4282 = vadd.f32 %v4218, -0.28449672
  %v4283 = vadd.f32 %v4219, -0.28449672
  %v4284 = vadd.f32 %v4220, -0.28449672
  %v4285 = vadd.f32 %v4221, -0.28449672
  %v4286 = vmul.f32 %v4222, %v3838
  %v4287 = vmul.f32 %v4223, %v3839
  %v4288 = vmul.f32 %v4224, %v3840
  %v4289 = vmul.f32 %v4225, %v3841
  %v4290 = vmul.f32 %v4226, %v3842
  %v4291 = vmul.f32 %v4227, %v3843
  %v4292 = vmul.f32 %v4228, %v3844
  %v4293 = vmul.f32 %v4229, %v3845
  %v4294 = vmul.f32 %v4230, %v3846
  %v4295 = vmul.f32 %v4231, %v3847
  %v4296 = vmul.f32 %v4232, %v3848
  %v4297 = vmul.f32 %v4233, %v3849
  %v4298 = vmul.f32 %v4234, %v3850
  %v4299 = vmul.f32 %v4235, %v3851
  %v4300 = vmul.f32 %v4236, %v3852
  %v4301 = vmul.f32 %v4237, %v3853
  %v4302 = vmul.f32 %v4238, %v3854
  %v4303 = vmul.f32 %v4239, %v3855
  %v4304 = vmul.f32 %v4240, %v3856
  %v4305 = vmul.f32 %v4241, %v3857
  %v4306 = vmul.f32 %v4242, %v3858
  %v4307 = vmul.f32 %v4243, %v3859
  %v4308 = vmul.f32 %v4244, %v3860
  %v4309 = vmul.f32 %v4245, %v3861
  %v4310 = vmul.f32 %v4246, %v3862
  %v4311 = vmul.f32 %v4247, %v3863
  %v4312 = vmul.f32 %v4248, %v3864
  %v4313 = vmul.f32 %v4249, %v3865
  %v4314 = vmul.f32 %v4250, %v3866
  %v4315 = vmul.f32 %v4251, %v3867
  %v4316 = vmul.f32 %v4252, %v3868
  %v4317 = vmul.f32 %v4253, %v3869
  %v4318 = vmul.f32 %v4254, %v3870
  %v4319 = vmul.f32 %v4255, %v3871
  %v4320 = vmul.f32 %v4256, %v3872
  %v4321 = vmul.f32 %v4257, %v3873
  %v4322 = vmul.f32 %v4258, %v3874
  %v4323 = vmul.f32 %v4259, %v3875
  %v4324 = vmul.f32 %v4260, %v3876
  %v4325 = vmul.f32 %v4261, %v3877
  %v4326 = vmul.f32 %v4262, %v3878
  %v4327 = vmul.f32 %v4263, %v3879
  %v4328 = vmul.f32 %v4264, %v3880
  %v4329 = vmul.f32 %v4265, %v3881
  %v4330 = vmul.f32 %v4266, %v3882
  %v4331 = vmul.f32 %v4267, %v3883
  %v4332 = vmul.f32 %v4268, %v3884
  %v4333 = vmul.f32 %v4269, %v3885
  %v4334 = vmul.f32 %v4270, %v3886
  %v4335 = vmul.f32 %v4271, %v3887
  %v4336 = vmul.f32 %v4272, %v3888
  %v4337 = vmul.f32 %v4273, %v3889
  %v4338 = vmul.f32 %v4274, %v3890
  %v4339 = vmul.f32 %v4275, %v3891
  %v4340 = vmul.f32 %v4276, %v3892
  %v4341 = vmul.f32 %v4277, %v3893
  %v4342 = vmul.f32 %v4278, %v3894
  %v4343 = vmul.f32 %v4279, %v3895
  %v4344 = vmul.f32 %v4280, %v3896
  %v4345 = vmul.f32 %v4281, %v3897
  %v4346 = vmul.f32 %v4282, %v3898
  %v4347 = vmul.f32 %v4283, %v3899
  %v4348 = vmul.f32 %v4284, %v3900
  %v4349 = vmul.f32 %v4285, %v3901
  %v4350 = vadd.f32 %v4286, 0.2548296
  %v4351 = vadd.f32 %v4287, 0.2548296
  %v4352 = vadd.f32 %v4288, 0.2548296
  %v4353 = vadd.f32 %v4289, 0.2548296
  %v4354 = vadd.f32 %v4290, 0.2548296
  %v4355 = vadd.f32 %v4291, 0.2548296
  %v4356 = vadd.f32 %v4292, 0.2548296
  %v4357 = vadd.f32 %v4293, 0.2548296
  %v4358 = vadd.f32 %v4294, 0.2548296
  %v4359 = vadd.f32 %v4295, 0.2548296
  %v4360 = vadd.f32 %v4296, 0.2548296
  %v4361 = vadd.f32 %v4297, 0.2548296
  %v4362 = vadd.f32 %v4298, 0.2548296
  %v4363 = vadd.f32 %v4299, 0.2548296
  %v4364 = vadd.f32 %v4300, 0.2548296
  %v4365 = vadd.f32 %v4301, 0.2548296
  %v4366 = vadd.f32 %v4302, 0.2548296
  %v4367 = vadd.f32 %v4303, 0.2548296
  %v4368 = vadd.f32 %v4304, 0.2548296
  %v4369 = vadd.f32 %v4305, 0.2548296
  %v4370 = vadd.f32 %v4306, 0.2548296
  %v4371 = vadd.f32 %v4307, 0.2548296
  %v4372 = vadd.f32 %v4308, 0.2548296
  %v4373 = vadd.f32 %v4309, 0.2548296
  %v4374 = vadd.f32 %v4310, 0.2548296
  %v4375 = vadd.f32 %v4311, 0.2548296
  %v4376 = vadd.f32 %v4312, 0.2548296
  %v4377 = vadd.f32 %v4313, 0.2548296
  %v4378 = vadd.f32 %v4314, 0.2548296
  %v4379 = vadd.f32 %v4315, 0.2548296
  %v4380 = vadd.f32 %v4316, 0.2548296
  %v4381 = vadd.f32 %v4317, 0.2548296
  %v4382 = vadd.f32 %v4318, 0.2548296
  %v4383 = vadd.f32 %v4319, 0.2548296
  %v4384 = vadd.f32 %v4320, 0.2548296
  %v4385 = vadd.f32 %v4321, 0.2548296
  %v4386 = vadd.f32 %v4322, 0.2548296
  %v4387 = vadd.f32 %v4323, 0.2548296
  %v4388 = vadd.f32 %v4324, 0.2548296
  %v4389 = vadd.f32 %v4325, 0.2548296
  %v4390 = vadd.f32 %v4326, 0.2548296
  %v4391 = vadd.f32 %v4327, 0.2548296
  %v4392 = vadd.f32 %v4328, 0.2548296
  %v4393 = vadd.f32 %v4329, 0.2548296
  %v4394 = vadd.f32 %v4330, 0.2548296
  %v4395 = vadd.f32 %v4331, 0.2548296
  %v4396 = vadd.f32 %v4332, 0.2548296
  %v4397 = vadd.f32 %v4333, 0.2548296
  %v4398 = vadd.f32 %v4334, 0.2548296
  %v4399 = vadd.f32 %v4335, 0.2548296
  %v4400 = vadd.f32 %v4336, 0.2548296
  %v4401 = vadd.f32 %v4337, 0.2548296
  %v4402 = vadd.f32 %v4338, 0.2548296
  %v4403 = vadd.f32 %v4339, 0.2548296
  %v4404 = vadd.f32 %v4340, 0.2548296
  %v4405 = vadd.f32 %v4341, 0.2548296
  %v4406 = vadd.f32 %v4342, 0.2548296
  %v4407 = vadd.f32 %v4343, 0.2548296
  %v4408 = vadd.f32 %v4344, 0.2548296
  %v4409 = vadd.f32 %v4345, 0.2548296
  %v4410 = vadd.f32 %v4346, 0.2548296
  %v4411 = vadd.f32 %v4347, 0.2548296
  %v4412 = vadd.f32 %v4348, 0.2548296
  %v4413 = vadd.f32 %v4349, 0.2548296
  %v4414 = vmul.f32 %v4350, %v3838
  %v4415 = vmul.f32 %v4351, %v3839
  %v4416 = vmul.f32 %v4352, %v3840
  %v4417 = vmul.f32 %v4353, %v3841
  %v4418 = vmul.f32 %v4354, %v3842
  %v4419 = vmul.f32 %v4355, %v3843
  %v4420 = vmul.f32 %v4356, %v3844
  %v4421 = vmul.f32 %v4357, %v3845
  %v4422 = vmul.f32 %v4358, %v3846
  %v4423 = vmul.f32 %v4359, %v3847
  %v4424 = vmul.f32 %v4360, %v3848
  %v4425 = vmul.f32 %v4361, %v3849
  %v4426 = vmul.f32 %v4362, %v3850
  %v4427 = vmul.f32 %v4363, %v3851
  %v4428 = vmul.f32 %v4364, %v3852
  %v4429 = vmul.f32 %v4365, %v3853
  %v4430 = vmul.f32 %v4366, %v3854
  %v4431 = vmul.f32 %v4367, %v3855
  %v4432 = vmul.f32 %v4368, %v3856
  %v4433 = vmul.f32 %v4369, %v3857
  %v4434 = vmul.f32 %v4370, %v3858
  %v4435 = vmul.f32 %v4371, %v3859
  %v4436 = vmul.f32 %v4372, %v3860
  %v4437 = vmul.f32 %v4373, %v3861
  %v4438 = vmul.f32 %v4374, %v3862
  %v4439 = vmul.f32 %v4375, %v3863
  %v4440 = vmul.f32 %v4376, %v3864
  %v4441 = vmul.f32 %v4377, %v3865
  %v4442 = vmul.f32 %v4378, %v3866
  %v4443 = vmul.f32 %v4379, %v3867
  %v4444 = vmul.f32 %v4380, %v3868
  %v4445 = vmul.f32 %v4381, %v3869
  %v4446 = vmul.f32 %v4382, %v3870
  %v4447 = vmul.f32 %v4383, %v3871
  %v4448 = vmul.f32 %v4384, %v3872
  %v4449 = vmul.f32 %v4385, %v3873
  %v4450 = vmul.f32 %v4386, %v3874
  %v4451 = vmul.f32 %v4387, %v3875
  %v4452 = vmul.f32 %v4388, %v3876
  %v4453 = vmul.f32 %v4389, %v3877
  %v4454 = vmul.f32 %v4390, %v3878
  %v4455 = vmul.f32 %v4391, %v3879
  %v4456 = vmul.f32 %v4392, %v3880
  %v4457 = vmul.f32 %v4393, %v3881
  %v4458 = vmul.f32 %v4394, %v3882
  %v4459 = vmul.f32 %v4395, %v3883
  %v4460 = vmul.f32 %v4396, %v3884
  %v4461 = vmul.f32 %v4397, %v3885
  %v4462 = vmul.f32 %v4398, %v3886
  %v4463 = vmul.f32 %v4399, %v3887
  %v4464 = vmul.f32 %v4400, %v3888
  %v4465 = vmul.f32 %v4401, %v3889
  %v4466 = vmul.f32 %v4402, %v3890
  %v4467 = vmul.f32 %v4403, %v3891
  %v4468 = vmul.f32 %v4404, %v3892
  %v4469 = vmul.f32 %v4405, %v3893
  %v4470 = vmul.f32 %v4406, %v3894
  %v4471 = vmul.f32 %v4407, %v3895
  %v4472 = vmul.f32 %v4408, %v3896
  %v4473 = vmul.f32 %v4409, %v3897
  %v4474 = vmul.f32 %v4410, %v3898
  %v4475 = vmul.f32 %v4411, %v3899
  %v4476 = vmul.f32 %v4412, %v3900
  %v4477 = vmul.f32 %v4413, %v3901
  %v4478 = vsub.f32 0.0, %v3454
  %v4479 = vsub.f32 0.0, %v3455
  %v4480 = vsub.f32 0.0, %v3456
  %v4481 = vsub.f32 0.0, %v3457
  %v4482 = vsub.f32 0.0, %v3458
  %v4483 = vsub.f32 0.0, %v3459
  %v4484 = vsub.f32 0.0, %v3460
  %v4485 = vsub.f32 0.0, %v3461
  %v4486 = vsub.f32 0.0, %v3462
  %v4487 = vsub.f32 0.0, %v3463
  %v4488 = vsub.f32 0.0, %v3464
  %v4489 = vsub.f32 0.0, %v3465
  %v4490 = vsub.f32 0.0, %v3466
  %v4491 = vsub.f32 0.0, %v3467
  %v4492 = vsub.f32 0.0, %v3468
  %v4493 = vsub.f32 0.0, %v3469
  %v4494 = vsub.f32 0.0, %v3470
  %v4495 = vsub.f32 0.0, %v3471
  %v4496 = vsub.f32 0.0, %v3472
  %v4497 = vsub.f32 0.0, %v3473
  %v4498 = vsub.f32 0.0, %v3474
  %v4499 = vsub.f32 0.0, %v3475
  %v4500 = vsub.f32 0.0, %v3476
  %v4501 = vsub.f32 0.0, %v3477
  %v4502 = vsub.f32 0.0, %v3478
  %v4503 = vsub.f32 0.0, %v3479
  %v4504 = vsub.f32 0.0, %v3480
  %v4505 = vsub.f32 0.0, %v3481
  %v4506 = vsub.f32 0.0, %v3482
  %v4507 = vsub.f32 0.0, %v3483
  %v4508 = vsub.f32 0.0, %v3484
  %v4509 = vsub.f32 0.0, %v3485
  %v4510 = vsub.f32 0.0, %v3486
  %v4511 = vsub.f32 0.0, %v3487
  %v4512 = vsub.f32 0.0, %v3488
  %v4513 = vsub.f32 0.0, %v3489
  %v4514 = vsub.f32 0.0, %v3490
  %v4515 = vsub.f32 0.0, %v3491
  %v4516 = vsub.f32 0.0, %v3492
  %v4517 = vsub.f32 0.0, %v3493
  %v4518 = vsub.f32 0.0, %v3494
  %v4519 = vsub.f32 0.0, %v3495
  %v4520 = vsub.f32 0.0, %v3496
  %v4521 = vsub.f32 0.0, %v3497
  %v4522 = vsub.f32 0.0, %v3498
  %v4523 = vsub.f32 0.0, %v3499
  %v4524 = vsub.f32 0.0, %v3500
  %v4525 = vsub.f32 0.0, %v3501
  %v4526 = vsub.f32 0.0, %v3502
  %v4527 = vsub.f32 0.0, %v3503
  %v4528 = vsub.f32 0.0, %v3504
  %v4529 = vsub.f32 0.0, %v3505
  %v4530 = vsub.f32 0.0, %v3506
  %v4531 = vsub.f32 0.0, %v3507
  %v4532 = vsub.f32 0.0, %v3508
  %v4533 = vsub.f32 0.0, %v3509
  %v4534 = vsub.f32 0.0, %v3510
  %v4535 = vsub.f32 0.0, %v3511
  %v4536 = vsub.f32 0.0, %v3512
  %v4537 = vsub.f32 0.0, %v3513
  %v4538 = vsub.f32 0.0, %v3514
  %v4539 = vsub.f32 0.0, %v3515
  %v4540 = vsub.f32 0.0, %v3516
  %v4541 = vsub.f32 0.0, %v3517
  %v4542 = vmul.f32 %v4478, %v3454
  %v4543 = vmul.f32 %v4479, %v3455
  %v4544 = vmul.f32 %v4480, %v3456
  %v4545 = vmul.f32 %v4481, %v3457
  %v4546 = vmul.f32 %v4482, %v3458
  %v4547 = vmul.f32 %v4483, %v3459
  %v4548 = vmul.f32 %v4484, %v3460
  %v4549 = vmul.f32 %v4485, %v3461
  %v4550 = vmul.f32 %v4486, %v3462
  %v4551 = vmul.f32 %v4487, %v3463
  %v4552 = vmul.f32 %v4488, %v3464
  %v4553 = vmul.f32 %v4489, %v3465
  %v4554 = vmul.f32 %v4490, %v3466
  %v4555 = vmul.f32 %v4491, %v3467
  %v4556 = vmul.f32 %v4492, %v3468
  %v4557 = vmul.f32 %v4493, %v3469
  %v4558 = vmul.f32 %v4494, %v3470
  %v4559 = vmul.f32 %v4495, %v3471
  %v4560 = vmul.f32 %v4496, %v3472
  %v4561 = vmul.f32 %v4497, %v3473
  %v4562 = vmul.f32 %v4498, %v3474
  %v4563 = vmul.f32 %v4499, %v3475
  %v4564 = vmul.f32 %v4500, %v3476
  %v4565 = vmul.f32 %v4501, %v3477
  %v4566 = vmul.f32 %v4502, %v3478
  %v4567 = vmul.f32 %v4503, %v3479
  %v4568 = vmul.f32 %v4504, %v3480
  %v4569 = vmul.f32 %v4505, %v3481
  %v4570 = vmul.f32 %v4506, %v3482
  %v4571 = vmul.f32 %v4507, %v3483
  %v4572 = vmul.f32 %v4508, %v3484
  %v4573 = vmul.f32 %v4509, %v3485
  %v4574 = vmul.f32 %v4510, %v3486
  %v4575 = vmul.f32 %v4511, %v3487
  %v4576 = vmul.f32 %v4512, %v3488
  %v4577 = vmul.f32 %v4513, %v3489
  %v4578 = vmul.f32 %v4514, %v3490
  %v4579 = vmul.f32 %v4515, %v3491
  %v4580 = vmul.f32 %v4516, %v3492
  %v4581 = vmul.f32 %v4517, %v3493
  %v4582 = vmul.f32 %v4518, %v3494
  %v4583 = vmul.f32 %v4519, %v3495
  %v4584 = vmul.f32 %v4520, %v3496
  %v4585 = vmul.f32 %v4521, %v3497
  %v4586 = vmul.f32 %v4522, %v3498
  %v4587 = vmul.f32 %v4523, %v3499
  %v4588 = vmul.f32 %v4524, %v3500
  %v4589 = vmul.f32 %v4525, %v3501
  %v4590 = vmul.f32 %v4526, %v3502
  %v4591 = vmul.f32 %v4527, %v3503
  %v4592 = vmul.f32 %v4528, %v3504
  %v4593 = vmul.f32 %v4529, %v3505
  %v4594 = vmul.f32 %v4530, %v3506
  %v4595 = vmul.f32 %v4531, %v3507
  %v4596 = vmul.f32 %v4532, %v3508
  %v4597 = vmul.f32 %v4533, %v3509
  %v4598 = vmul.f32 %v4534, %v3510
  %v4599 = vmul.f32 %v4535, %v3511
  %v4600 = vmul.f32 %v4536, %v3512
  %v4601 = vmul.f32 %v4537, %v3513
  %v4602 = vmul.f32 %v4538, %v3514
  %v4603 = vmul.f32 %v4539, %v3515
  %v4604 = vmul.f32 %v4540, %v3516
  %v4605 = vmul.f32 %v4541, %v3517
  %v4606 = vmul.f32 %v4542, 1.442695
  %v4607 = vpow.pop %v4606
  %v4608 = vmul.f32 %v4543, 1.442695
  %v4609 = vpow.pop %v4608
  %v4610 = vmul.f32 %v4544, 1.442695
  %v4611 = vpow.pop %v4610
  %v4612 = vmul.f32 %v4545, 1.442695
  %v4613 = vpow.pop %v4612
  %v4614 = vmul.f32 %v4546, 1.442695
  %v4615 = vpow.pop %v4614
  %v4616 = vmul.f32 %v4547, 1.442695
  %v4617 = vpow.pop %v4616
  %v4618 = vmul.f32 %v4548, 1.442695
  %v4619 = vpow.pop %v4618
  %v4620 = vmul.f32 %v4549, 1.442695
  %v4621 = vpow.pop %v4620
  %v4622 = vmul.f32 %v4550, 1.442695
  %v4623 = vpow.pop %v4622
  %v4624 = vmul.f32 %v4551, 1.442695
  %v4625 = vpow.pop %v4624
  %v4626 = vmul.f32 %v4552, 1.442695
  %v4627 = vpow.pop %v4626
  %v4628 = vmul.f32 %v4553, 1.442695
  %v4629 = vpow.pop %v4628
  %v4630 = vmul.f32 %v4554, 1.442695
  %v4631 = vpow.pop %v4630
  %v4632 = vmul.f32 %v4555, 1.442695
  %v4633 = vpow.pop %v4632
  %v4634 = vmul.f32 %v4556, 1.442695
  %v4635 = vpow.pop %v4634
  %v4636 = vmul.f32 %v4557, 1.442695
  %v4637 = vpow.pop %v4636
  %v4638 = vmul.f32 %v4558, 1.442695
  %v4639 = vpow.pop %v4638
  %v4640 = vmul.f32 %v4559, 1.442695
  %v4641 = vpow.pop %v4640
  %v4642 = vmul.f32 %v4560, 1.442695
  %v4643 = vpow.pop %v4642
  %v4644 = vmul.f32 %v4561, 1.442695
  %v4645 = vpow.pop %v4644
  %v4646 = vmul.f32 %v4562, 1.442695
  %v4647 = vpow.pop %v4646
  %v4648 = vmul.f32 %v4563, 1.442695
  %v4649 = vpow.pop %v4648
  %v4650 = vmul.f32 %v4564, 1.442695
  %v4651 = vpow.pop %v4650
  %v4652 = vmul.f32 %v4565, 1.442695
  %v4653 = vpow.pop %v4652
  %v4654 = vmul.f32 %v4566, 1.442695
  %v4655 = vpow.pop %v4654
  %v4656 = vmul.f32 %v4567, 1.442695
  %v4657 = vpow.pop %v4656
  %v4658 = vmul.f32 %v4568, 1.442695
  %v4659 = vpow.pop %v4658
  %v4660 = vmul.f32 %v4569, 1.442695
  %v4661 = vpow.pop %v4660
  %v4662 = vmul.f32 %v4570, 1.442695
  %v4663 = vpow.pop %v4662
  %v4664 = vmul.f32 %v4571, 1.442695
  %v4665 = vpow.pop %v4664
  %v4666 = vmul.f32 %v4572, 1.442695
  %v4667 = vpow.pop %v4666
  %v4668 = vmul.f32 %v4573, 1.442695
  %v4669 = vpow.pop %v4668
  %v4670 = vmul.f32 %v4574, 1.442695
  %v4671 = vpow.pop %v4670
  %v4672 = vmul.f32 %v4575, 1.442695
  %v4673 = vpow.pop %v4672
  %v4674 = vmul.f32 %v4576, 1.442695
  %v4675 = vpow.pop %v4674
  %v4676 = vmul.f32 %v4577, 1.442695
  %v4677 = vpow.pop %v4676
  %v4678 = vmul.f32 %v4578, 1.442695
  %v4679 = vpow.pop %v4678
  %v4680 = vmul.f32 %v4579, 1.442695
  %v4681 = vpow.pop %v4680
  %v4682 = vmul.f32 %v4580, 1.442695
  %v4683 = vpow.pop %v4682
  %v4684 = vmul.f32 %v4581, 1.442695
  %v4685 = vpow.pop %v4684
  %v4686 = vmul.f32 %v4582, 1.442695
  %v4687 = vpow.pop %v4686
  %v4688 = vmul.f32 %v4583, 1.442695
  %v4689 = vpow.pop %v4688
  %v4690 = vmul.f32 %v4584, 1.442695
  %v4691 = vpow.pop %v4690
  %v4692 = vmul.f32 %v4585, 1.442695
  %v4693 = vpow.pop %v4692
  %v4694 = vmul.f32 %v4586, 1.442695
  %v4695 = vpow.pop %v4694
  %v4696 = vmul.f32 %v4587, 1.442695
  %v4697 = vpow.pop %v4696
  %v4698 = vmul.f32 %v4588, 1.442695
  %v4699 = vpow.pop %v4698
  %v4700 = vmul.f32 %v4589, 1.442695
  %v4701 = vpow.pop %v4700
  %v4702 = vmul.f32 %v4590, 1.442695
  %v4703 = vpow.pop %v4702
  %v4704 = vmul.f32 %v4591, 1.442695
  %v4705 = vpow.pop %v4704
  %v4706 = vmul.f32 %v4592, 1.442695
  %v4707 = vpow.pop %v4706
  %v4708 = vmul.f32 %v4593, 1.442695
  %v4709 = vpow.pop %v4708
  %v4710 = vmul.f32 %v4594, 1.442695
  %v4711 = vpow.pop %v4710
  %v4712 = vmul.f32 %v4595, 1.442695
  %v4713 = vpow.pop %v4712
  %v4714 = vmul.f32 %v4596, 1.442695
  %v4715 = vpow.pop %v4714
  %v4716 = vmul.f32 %v4597, 1.442695
  %v4717 = vpow.pop %v4716
  %v4718 = vmul.f32 %v4598, 1.442695
  %v4719 = vpow.pop %v4718
  %v4720 = vmul.f32 %v4599, 1.442695
  %v4721 = vpow.pop %v4720
  %v4722 = vmul.f32 %v4600, 1.442695
  %v4723 = vpow.pop %v4722
  %v4724 = vmul.f32 %v4601, 1.442695
  %v4725 = vpow.pop %v4724
  %v4726 = vmul.f32 %v4602, 1.442695
  %v4727 = vpow.pop %v4726
  %v4728 = vmul.f32 %v4603, 1.442695
  %v4729 = vpow.pop %v4728
  %v4730 = vmul.f32 %v4604, 1.442695
  %v4731 = vpow.pop %v4730
  %v4732 = vmul.f32 %v4605, 1.442695
  %v4733 = vpow.pop %v4732
  %v4734 = vmul.f32 %v4414, %v4607
  %v4735 = vmul.f32 %v4415, %v4609
  %v4736 = vmul.f32 %v4416, %v4611
  %v4737 = vmul.f32 %v4417, %v4613
  %v4738 = vmul.f32 %v4418, %v4615
  %v4739 = vmul.f32 %v4419, %v4617
  %v4740 = vmul.f32 %v4420, %v4619
  %v4741 = vmul.f32 %v4421, %v4621
  %v4742 = vmul.f32 %v4422, %v4623
  %v4743 = vmul.f32 %v4423, %v4625
  %v4744 = vmul.f32 %v4424, %v4627
  %v4745 = vmul.f32 %v4425, %v4629
  %v4746 = vmul.f32 %v4426, %v4631
  %v4747 = vmul.f32 %v4427, %v4633
  %v4748 = vmul.f32 %v4428, %v4635
  %v4749 = vmul.f32 %v4429, %v4637
  %v4750 = vmul.f32 %v4430, %v4639
  %v4751 = vmul.f32 %v4431, %v4641
  %v4752 = vmul.f32 %v4432, %v4643
  %v4753 = vmul.f32 %v4433, %v4645
  %v4754 = vmul.f32 %v4434, %v4647
  %v4755 = vmul.f32 %v4435, %v4649
  %v4756 = vmul.f32 %v4436, %v4651
  %v4757 = vmul.f32 %v4437, %v4653
  %v4758 = vmul.f32 %v4438, %v4655
  %v4759 = vmul.f32 %v4439, %v4657
  %v4760 = vmul.f32 %v4440, %v4659
  %v4761 = vmul.f32 %v4441, %v4661
  %v4762 = vmul.f32 %v4442, %v4663
  %v4763 = vmul.f32 %v4443, %v4665
  %v4764 = vmul.f32 %v4444, %v4667
  %v4765 = vmul.f32 %v4445, %v4669
  %v4766 = vmul.f32 %v4446, %v4671
  %v4767 = vmul.f32 %v4447, %v4673
  %v4768 = vmul.f32 %v4448, %v4675
  %v4769 = vmul.f32 %v4449, %v4677
  %v4770 = vmul.f32 %v4450, %v4679
  %v4771 = vmul.f32 %v4451, %v4681
  %v4772 = vmul.f32 %v4452, %v4683
  %v4773 = vmul.f32 %v4453, %v4685
  %v4774 = vmul.f32 %v4454, %v4687
  %v4775 = vmul.f32 %v4455, %v4689
  %v4776 = vmul.f32 %v4456, %v4691
  %v4777 = vmul.f32 %v4457, %v4693
  %v4778 = vmul.f32 %v4458, %v4695
  %v4779 = vmul.f32 %v4459, %v4697
  %v4780 = vmul.f32 %v4460, %v4699
  %v4781 = vmul.f32 %v4461, %v4701
  %v4782 = vmul.f32 %v4462, %v4703
  %v4783 = vmul.f32 %v4463, %v4705
  %v4784 = vmul.f32 %v4464, %v4707
  %v4785 = vmul.f32 %v4465, %v4709
  %v4786 = vmul.f32 %v4466, %v4711
  %v4787 = vmul.f32 %v4467, %v4713
  %v4788 = vmul.f32 %v4468, %v4715
  %v4789 = vmul.f32 %v4469, %v4717
  %v4790 = vmul.f32 %v4470, %v4719
  %v4791 = vmul.f32 %v4471, %v4721
  %v4792 = vmul.f32 %v4472, %v4723
  %v4793 = vmul.f32 %v4473, %v4725
  %v4794 = vmul.f32 %v4474, %v4727
  %v4795 = vmul.f32 %v4475, %v4729
  %v4796 = vmul.f32 %v4476, %v4731
  %v4797 = vmul.f32 %v4477, %v4733
  %v4798 = vsub.f32 1.0, %v4734
  %v4799 = vsub.f32 1.0, %v4735
  %v4800 = vsub.f32 1.0, %v4736
  %v4801 = vsub.f32 1.0, %v4737
  %v4802 = vsub.f32 1.0, %v4738
  %v4803 = vsub.f32 1.0, %v4739
  %v4804 = vsub.f32 1.0, %v4740
  %v4805 = vsub.f32 1.0, %v4741
  %v4806 = vsub.f32 1.0, %v4742
  %v4807 = vsub.f32 1.0, %v4743
  %v4808 = vsub.f32 1.0, %v4744
  %v4809 = vsub.f32 1.0, %v4745
  %v4810 = vsub.f32 1.0, %v4746
  %v4811 = vsub.f32 1.0, %v4747
  %v4812 = vsub.f32 1.0, %v4748
  %v4813 = vsub.f32 1.0, %v4749
  %v4814 = vsub.f32 1.0, %v4750
  %v4815 = vsub.f32 1.0, %v4751
  %v4816 = vsub.f32 1.0, %v4752
  %v4817 = vsub.f32 1.0, %v4753
  %v4818 = vsub.f32 1.0, %v4754
  %v4819 = vsub.f32 1.0, %v4755
  %v4820 = vsub.f32 1.0, %v4756
  %v4821 = vsub.f32 1.0, %v4757
  %v4822 = vsub.f32 1.0, %v4758
  %v4823 = vsub.f32 1.0, %v4759
  %v4824 = vsub.f32 1.0, %v4760
  %v4825 = vsub.f32 1.0, %v4761
  %v4826 = vsub.f32 1.0, %v4762
  %v4827 = vsub.f32 1.0, %v4763
  %v4828 = vsub.f32 1.0, %v4764
  %v4829 = vsub.f32 1.0, %v4765
  %v4830 = vsub.f32 1.0, %v4766
  %v4831 = vsub.f32 1.0, %v4767
  %v4832 = vsub.f32 1.0, %v4768
  %v4833 = vsub.f32 1.0, %v4769
  %v4834 = vsub.f32 1.0, %v4770
  %v4835 = vsub.f32 1.0, %v4771
  %v4836 = vsub.f32 1.0, %v4772
  %v4837 = vsub.f32 1.0, %v4773
  %v4838 = vsub.f32 1.0, %v4774
  %v4839 = vsub.f32 1.0, %v4775
  %v4840 = vsub.f32 1.0, %v4776
  %v4841 = vsub.f32 1.0, %v4777
  %v4842 = vsub.f32 1.0, %v4778
  %v4843 = vsub.f32 1.0, %v4779
  %v4844 = vsub.f32 1.0, %v4780
  %v4845 = vsub.f32 1.0, %v4781
  %v4846 = vsub.f32 1.0, %v4782
  %v4847 = vsub.f32 1.0, %v4783
  %v4848 = vsub.f32 1.0, %v4784
  %v4849 = vsub.f32 1.0, %v4785
  %v4850 = vsub.f32 1.0, %v4786
  %v4851 = vsub.f32 1.0, %v4787
  %v4852 = vsub.f32 1.0, %v4788
  %v4853 = vsub.f32 1.0, %v4789
  %v4854 = vsub.f32 1.0, %v4790
  %v4855 = vsub.f32 1.0, %v4791
  %v4856 = vsub.f32 1.0, %v4792
  %v4857 = vsub.f32 1.0, %v4793
  %v4858 = vsub.f32 1.0, %v4794
  %v4859 = vsub.f32 1.0, %v4795
  %v4860 = vsub.f32 1.0, %v4796
  %v4861 = vsub.f32 1.0, %v4797
  %v4862 = vmul.f32 %v3390, %v4798
  %v4863 = vmul.f32 %v3391, %v4799
  %v4864 = vmul.f32 %v3392, %v4800
  %v4865 = vmul.f32 %v3393, %v4801
  %v4866 = vmul.f32 %v3394, %v4802
  %v4867 = vmul.f32 %v3395, %v4803
  %v4868 = vmul.f32 %v3396, %v4804
  %v4869 = vmul.f32 %v3397, %v4805
  %v4870 = vmul.f32 %v3398, %v4806
  %v4871 = vmul.f32 %v3399, %v4807
  %v4872 = vmul.f32 %v3400, %v4808
  %v4873 = vmul.f32 %v3401, %v4809
  %v4874 = vmul.f32 %v3402, %v4810
  %v4875 = vmul.f32 %v3403, %v4811
  %v4876 = vmul.f32 %v3404, %v4812
  %v4877 = vmul.f32 %v3405, %v4813
  %v4878 = vmul.f32 %v3406, %v4814
  %v4879 = vmul.f32 %v3407, %v4815
  %v4880 = vmul.f32 %v3408, %v4816
  %v4881 = vmul.f32 %v3409, %v4817
  %v4882 = vmul.f32 %v3410, %v4818
  %v4883 = vmul.f32 %v3411, %v4819
  %v4884 = vmul.f32 %v3412, %v4820
  %v4885 = vmul.f32 %v3413, %v4821
  %v4886 = vmul.f32 %v3414, %v4822
  %v4887 = vmul.f32 %v3415, %v4823
  %v4888 = vmul.f32 %v3416, %v4824
  %v4889 = vmul.f32 %v3417, %v4825
  %v4890 = vmul.f32 %v3418, %v4826
  %v4891 = vmul.f32 %v3419, %v4827
  %v4892 = vmul.f32 %v3420, %v4828
  %v4893 = vmul.f32 %v3421, %v4829
  %v4894 = vmul.f32 %v3422, %v4830
  %v4895 = vmul.f32 %v3423, %v4831
  %v4896 = vmul.f32 %v3424, %v4832
  %v4897 = vmul.f32 %v3425, %v4833
  %v4898 = vmul.f32 %v3426, %v4834
  %v4899 = vmul.f32 %v3427, %v4835
  %v4900 = vmul.f32 %v3428, %v4836
  %v4901 = vmul.f32 %v3429, %v4837
  %v4902 = vmul.f32 %v3430, %v4838
  %v4903 = vmul.f32 %v3431, %v4839
  %v4904 = vmul.f32 %v3432, %v4840
  %v4905 = vmul.f32 %v3433, %v4841
  %v4906 = vmul.f32 %v3434, %v4842
  %v4907 = vmul.f32 %v3435, %v4843
  %v4908 = vmul.f32 %v3436, %v4844
  %v4909 = vmul.f32 %v3437, %v4845
  %v4910 = vmul.f32 %v3438, %v4846
  %v4911 = vmul.f32 %v3439, %v4847
  %v4912 = vmul.f32 %v3440, %v4848
  %v4913 = vmul.f32 %v3441, %v4849
  %v4914 = vmul.f32 %v3442, %v4850
  %v4915 = vmul.f32 %v3443, %v4851
  %v4916 = vmul.f32 %v3444, %v4852
  %v4917 = vmul.f32 %v3445, %v4853
  %v4918 = vmul.f32 %v3446, %v4854
  %v4919 = vmul.f32 %v3447, %v4855
  %v4920 = vmul.f32 %v3448, %v4856
  %v4921 = vmul.f32 %v3449, %v4857
  %v4922 = vmul.f32 %v3450, %v4858
  %v4923 = vmul.f32 %v3451, %v4859
  %v4924 = vmul.f32 %v3452, %v4860
  %v4925 = vmul.f32 %v3453, %v4861
  %v4926 = vadd.f32 %v4862, 1.0
  %v4927 = vadd.f32 %v4863, 1.0
  %v4928 = vadd.f32 %v4864, 1.0
  %v4929 = vadd.f32 %v4865, 1.0
  %v4930 = vadd.f32 %v4866, 1.0
  %v4931 = vadd.f32 %v4867, 1.0
  %v4932 = vadd.f32 %v4868, 1.0
  %v4933 = vadd.f32 %v4869, 1.0
  %v4934 = vadd.f32 %v4870, 1.0
  %v4935 = vadd.f32 %v4871, 1.0
  %v4936 = vadd.f32 %v4872, 1.0
  %v4937 = vadd.f32 %v4873, 1.0
  %v4938 = vadd.f32 %v4874, 1.0
  %v4939 = vadd.f32 %v4875, 1.0
  %v4940 = vadd.f32 %v4876, 1.0
  %v4941 = vadd.f32 %v4877, 1.0
  %v4942 = vadd.f32 %v4878, 1.0
  %v4943 = vadd.f32 %v4879, 1.0
  %v4944 = vadd.f32 %v4880, 1.0
  %v4945 = vadd.f32 %v4881, 1.0
  %v4946 = vadd.f32 %v4882, 1.0
  %v4947 = vadd.f32 %v4883, 1.0
  %v4948 = vadd.f32 %v4884, 1.0
  %v4949 = vadd.f32 %v4885, 1.0
  %v4950 = vadd.f32 %v4886, 1.0
  %v4951 = vadd.f32 %v4887, 1.0
  %v4952 = vadd.f32 %v4888, 1.0
  %v4953 = vadd.f32 %v4889, 1.0
  %v4954 = vadd.f32 %v4890, 1.0
  %v4955 = vadd.f32 %v4891, 1.0
  %v4956 = vadd.f32 %v4892, 1.0
  %v4957 = vadd.f32 %v4893, 1.0
  %v4958 = vadd.f32 %v4894, 1.0
  %v4959 = vadd.f32 %v4895, 1.0
  %v4960 = vadd.f32 %v4896, 1.0
  %v4961 = vadd.f32 %v4897, 1.0
  %v4962 = vadd.f32 %v4898, 1.0
  %v4963 = vadd.f32 %v4899, 1.0
  %v4964 = vadd.f32 %v4900, 1.0
  %v4965 = vadd.f32 %v4901, 1.0
  %v4966 = vadd.f32 %v4902, 1.0
  %v4967 = vadd.f32 %v4903, 1.0
  %v4968 = vadd.f32 %v4904, 1.0
  %v4969 = vadd.f32 %v4905, 1.0
  %v4970 = vadd.f32 %v4906, 1.0
  %v4971 = vadd.f32 %v4907, 1.0
  %v4972 = vadd.f32 %v4908, 1.0
  %v4973 = vadd.f32 %v4909, 1.0
  %v4974 = vadd.f32 %v4910, 1.0
  %v4975 = vadd.f32 %v4911, 1.0
  %v4976 = vadd.f32 %v4912, 1.0
  %v4977 = vadd.f32 %v4913, 1.0
  %v4978 = vadd.f32 %v4914, 1.0
  %v4979 = vadd.f32 %v4915, 1.0
  %v4980 = vadd.f32 %v4916, 1.0
  %v4981 = vadd.f32 %v4917, 1.0
  %v4982 = vadd.f32 %v4918, 1.0
  %v4983 = vadd.f32 %v4919, 1.0
  %v4984 = vadd.f32 %v4920, 1.0
  %v4985 = vadd.f32 %v4921, 1.0
  %v4986 = vadd.f32 %v4922, 1.0
  %v4987 = vadd.f32 %v4923, 1.0
  %v4988 = vadd.f32 %v4924, 1.0
  %v4989 = vadd.f32 %v4925, 1.0
  %v4990 = vmul.f32 %v3198, %v4926
  %v4991 = vmul.f32 %v3199, %v4927
  %v4992 = vmul.f32 %v3200, %v4928
  %v4993 = vmul.f32 %v3201, %v4929
  %v4994 = vmul.f32 %v3202, %v4930
  %v4995 = vmul.f32 %v3203, %v4931
  %v4996 = vmul.f32 %v3204, %v4932
  %v4997 = vmul.f32 %v3205, %v4933
  %v4998 = vmul.f32 %v3206, %v4934
  %v4999 = vmul.f32 %v3207, %v4935
  %v5000 = vmul.f32 %v3208, %v4936
  %v5001 = vmul.f32 %v3209, %v4937
  %v5002 = vmul.f32 %v3210, %v4938
  %v5003 = vmul.f32 %v3211, %v4939
  %v5004 = vmul.f32 %v3212, %v4940
  %v5005 = vmul.f32 %v3213, %v4941
  %v5006 = vmul.f32 %v3214, %v4942
  %v5007 = vmul.f32 %v3215, %v4943
  %v5008 = vmul.f32 %v3216, %v4944
  %v5009 = vmul.f32 %v3217, %v4945
  %v5010 = vmul.f32 %v3218, %v4946
  %v5011 = vmul.f32 %v3219, %v4947
  %v5012 = vmul.f32 %v3220, %v4948
  %v5013 = vmul.f32 %v3221, %v4949
  %v5014 = vmul.f32 %v3222, %v4950
  %v5015 = vmul.f32 %v3223, %v4951
  %v5016 = vmul.f32 %v3224, %v4952
  %v5017 = vmul.f32 %v3225, %v4953
  %v5018 = vmul.f32 %v3226, %v4954
  %v5019 = vmul.f32 %v3227, %v4955
  %v5020 = vmul.f32 %v3228, %v4956
  %v5021 = vmul.f32 %v3229, %v4957
  %v5022 = vmul.f32 %v3230, %v4958
  %v5023 = vmul.f32 %v3231, %v4959
  %v5024 = vmul.f32 %v3232, %v4960
  %v5025 = vmul.f32 %v3233, %v4961
  %v5026 = vmul.f32 %v3234, %v4962
  %v5027 = vmul.f32 %v3235, %v4963
  %v5028 = vmul.f32 %v3236, %v4964
  %v5029 = vmul.f32 %v3237, %v4965
  %v5030 = vmul.f32 %v3238, %v4966
  %v5031 = vmul.f32 %v3239, %v4967
  %v5032 = vmul.f32 %v3240, %v4968
  %v5033 = vmul.f32 %v3241, %v4969
  %v5034 = vmul.f32 %v3242, %v4970
  %v5035 = vmul.f32 %v3243, %v4971
  %v5036 = vmul.f32 %v3244, %v4972
  %v5037 = vmul.f32 %v3245, %v4973
  %v5038 = vmul.f32 %v3246, %v4974
  %v5039 = vmul.f32 %v3247, %v4975
  %v5040 = vmul.f32 %v3248, %v4976
  %v5041 = vmul.f32 %v3249, %v4977
  %v5042 = vmul.f32 %v3250, %v4978
  %v5043 = vmul.f32 %v3251, %v4979
  %v5044 = vmul.f32 %v3252, %v4980
  %v5045 = vmul.f32 %v3253, %v4981
  %v5046 = vmul.f32 %v3254, %v4982
  %v5047 = vmul.f32 %v3255, %v4983
  %v5048 = vmul.f32 %v3256, %v4984
  %v5049 = vmul.f32 %v3257, %v4985
  %v5050 = vmul.f32 %v3258, %v4986
  %v5051 = vmul.f32 %v3259, %v4987
  %v5052 = vmul.f32 %v3260, %v4988
  %v5053 = vmul.f32 %v3261, %v4989
  %v5054 = vmul.f32 %v4990, %v766
  %v5055 = vmul.f32 %v4991, %v771
  %v5056 = vmul.f32 %v4992, %v776
  %v5057 = vmul.f32 %v4993, %v781
  %v5058 = vmul.f32 %v4994, %v786
  %v5059 = vmul.f32 %v4995, %v791
  %v5060 = vmul.f32 %v4996, %v796
  %v5061 = vmul.f32 %v4997, %v801
  %v5062 = vmul.f32 %v4998, %v806
  %v5063 = vmul.f32 %v4999, %v811
  %v5064 = vmul.f32 %v5000, %v816
  %v5065 = vmul.f32 %v5001, %v821
  %v5066 = vmul.f32 %v5002, %v826
  %v5067 = vmul.f32 %v5003, %v831
  %v5068 = vmul.f32 %v5004, %v836
  %v5069 = vmul.f32 %v5005, %v841
  %v5070 = vmul.f32 %v5006, %v846
  %v5071 = vmul.f32 %v5007, %v851
  %v5072 = vmul.f32 %v5008, %v856
  %v5073 = vmul.f32 %v5009, %v861
  %v5074 = vmul.f32 %v5010, %v866
  %v5075 = vmul.f32 %v5011, %v871
  %v5076 = vmul.f32 %v5012, %v876
  %v5077 = vmul.f32 %v5013, %v881
  %v5078 = vmul.f32 %v5014, %v886
  %v5079 = vmul.f32 %v5015, %v891
  %v5080 = vmul.f32 %v5016, %v896
  %v5081 = vmul.f32 %v5017, %v901
  %v5082 = vmul.f32 %v5018, %v906
  %v5083 = vmul.f32 %v5019, %v911
  %v5084 = vmul.f32 %v5020, %v916
  %v5085 = vmul.f32 %v5021, %v921
  %v5086 = vmul.f32 %v5022, %v926
  %v5087 = vmul.f32 %v5023, %v931
  %v5088 = vmul.f32 %v5024, %v936
  %v5089 = vmul.f32 %v5025, %v941
  %v5090 = vmul.f32 %v5026, %v946
  %v5091 = vmul.f32 %v5027, %v951
  %v5092 = vmul.f32 %v5028, %v956
  %v5093 = vmul.f32 %v5029, %v961
  %v5094 = vmul.f32 %v5030, %v966
  %v5095 = vmul.f32 %v5031, %v971
  %v5096 = vmul.f32 %v5032, %v976
  %v5097 = vmul.f32 %v5033, %v981
  %v5098 = vmul.f32 %v5034, %v986
  %v5099 = vmul.f32 %v5035, %v991
  %v5100 = vmul.f32 %v5036, %v996
  %v5101 = vmul.f32 %v5037, %v1001
  %v5102 = vmul.f32 %v5038, %v1006
  %v5103 = vmul.f32 %v5039, %v1011
  %v5104 = vmul.f32 %v5040, %v1016
  %v5105 = vmul.f32 %v5041, %v1021
  %v5106 = vmul.f32 %v5042, %v1026
  %v5107 = vmul.f32 %v5043, %v1031
  %v5108 = vmul.f32 %v5044, %v1036
  %v5109 = vmul.f32 %v5045, %v1041
  %v5110 = vmul.f32 %v5046, %v1046
  %v5111 = vmul.f32 %v5047, %v1051
  %v5112 = vmul.f32 %v5048, %v1056
  %v5113 = vmul.f32 %v5049, %v1061
  %v5114 = vmul.f32 %v5050, %v1066
  %v5115 = vmul.f32 %v5051, %v1071
  %v5116 = vmul.f32 %v5052, %v1076
  %v5117 = vmul.f32 %v5053, %v1081
  %v5118 = vld [vmem:[%s7] sm:$0xff]
  %v5119 = vld [vmem:[%s8] sm:$0x1]
  %v5121 = vlaneseq
  %v5122 = vshrl.u32 %v5121, 7
  %v5123 = vsub.s32 0, %v5122
  %v5124 = vrot.slane %v5119, %v5123
  %v5127 = vsel %vm1084, %v5054, 0
  %v5130 = vsel %vm1084, %v5055, 0
  %v5133 = vsel %vm1084, %v5056, 0
  %v5136 = vsel %vm1084, %v5057, 0
  %v5139 = vsel %vm1084, %v5058, 0
  %v5142 = vsel %vm1084, %v5059, 0
  %v5145 = vsel %vm1084, %v5060, 0
  %v5148 = vsel %vm1084, %v5061, 0
  %v5151 = vsel %vm1084, %v5062, 0
  %v5154 = vsel %vm1084, %v5063, 0
  %v5157 = vsel %vm1084, %v5064, 0
  %v5160 = vsel %vm1084, %v5065, 0
  %v5163 = vsel %vm1084, %v5066, 0
  %v5166 = vsel %vm1084, %v5067, 0
  %v5169 = vsel %vm1084, %v5068, 0
  %v5172 = vsel %vm1084, %v5069, 0
  %v5175 = vsel %vm1084, %v5070, 0
  %v5178 = vsel %vm1084, %v5071, 0
  %v5181 = vsel %vm1084, %v5072, 0
  %v5184 = vsel %vm1084, %v5073, 0
  %v5187 = vsel %vm1084, %v5074, 0
  %v5190 = vsel %vm1084, %v5075, 0
  %v5193 = vsel %vm1084, %v5076, 0
  %v5196 = vsel %vm1084, %v5077, 0
  %v5199 = vsel %vm1084, %v5078, 0
  %v5202 = vsel %vm1084, %v5079, 0
  %v5205 = vsel %vm1084, %v5080, 0
  %v5208 = vsel %vm1084, %v5081, 0
  %v5211 = vsel %vm1084, %v5082, 0
  %v5214 = vsel %vm1084, %v5083, 0
  %v5217 = vsel %vm1084, %v5084, 0
  %v5220 = vsel %vm1084, %v5085, 0
  %v5223 = vsel %vm1084, %v5086, 0
  %v5226 = vsel %vm1084, %v5087, 0
  %v5229 = vsel %vm1084, %v5088, 0
  %v5232 = vsel %vm1084, %v5089, 0
  %v5235 = vsel %vm1084, %v5090, 0
  %v5238 = vsel %vm1084, %v5091, 0
  %v5241 = vsel %vm1084, %v5092, 0
  %v5244 = vsel %vm1084, %v5093, 0
  %v5247 = vsel %vm1084, %v5094, 0
  %v5250 = vsel %vm1084, %v5095, 0
  %v5253 = vsel %vm1084, %v5096, 0
  %v5256 = vsel %vm1084, %v5097, 0
  %v5259 = vsel %vm1084, %v5098, 0
  %v5262 = vsel %vm1084, %v5099, 0
  %v5265 = vsel %vm1084, %v5100, 0
  %v5268 = vsel %vm1084, %v5101, 0
  %v5271 = vsel %vm1084, %v5102, 0
  %v5274 = vsel %vm1084, %v5103, 0
  %v5277 = vsel %vm1084, %v5104, 0
  %v5280 = vsel %vm1084, %v5105, 0
  %v5283 = vsel %vm1084, %v5106, 0
  %v5286 = vsel %vm1084, %v5107, 0
  %v5289 = vsel %vm1084, %v5108, 0
  %v5292 = vsel %vm1084, %v5109, 0
  %v5295 = vsel %vm1084, %v5110, 0
  %v5298 = vsel %vm1084, %v5111, 0
  %v5301 = vsel %vm1084, %v5112, 0
  %v5304 = vsel %vm1084, %v5113, 0
  %v5307 = vsel %vm1084, %v5114, 0
  %v5310 = vsel %vm1084, %v5115, 0
  %v5313 = vsel %vm1084, %v5116, 0
  %v5316 = vsel %vm1084, %v5117, 0
  %5318 = vmatprep.subr.mxu0 0.0
  %5319 = vmatpush1.msra.mxu0 %v5118
  %5320 = vmatprep.subr.mxu0 0.0
  %5321 = vmatpush1.msra.mxu0 0.0
  %5322 = vmatprep.subr.mxu0 0.0
  %5323 = vmatpush1.msra.mxu0 0.0
  %5324 = vmatprep.subr.mxu0 0.0
  %5325 = vmatpush1.msra.mxu0 0.0
  %5326 = vmatprep.subr.mxu0 0.0
  %5327 = vmatpush1.msra.mxu0 0.0
  %5328 = vmatprep.subr.mxu0 0.0
  %5329 = vmatpush1.msra.mxu0 0.0
  %5330 = vmatprep.subr.mxu0 0.0
  %5331 = vmatpush1.msra.mxu0 0.0
  %5332 = vmatprep.subr.mxu0 0.0
  %5333 = vmatpush1.msra.mxu0 0.0
  %5334 = vmatprep.subr.mxu0 0.0
  %5335 = vmatpush1.msra.mxu0 0.0
  %5336 = vmatprep.subr.mxu0 0.0
  %5337 = vmatpush1.msra.mxu0 0.0
  %5338 = vmatprep.subr.mxu0 0.0
  %5339 = vmatpush1.msra.mxu0 0.0
  %5340 = vmatprep.subr.mxu0 0.0
  %5341 = vmatpush1.msra.mxu0 0.0
  %5342 = vmatprep.subr.mxu0 0.0
  %5343 = vmatpush1.msra.mxu0 0.0
  %5344 = vmatprep.subr.mxu0 0.0
  %5345 = vmatpush1.msra.mxu0 0.0
  %5346 = vmatprep.subr.mxu0 0.0
  %5347 = vmatpush1.msra.mxu0 0.0
  %5348 = vmatprep.subr.mxu0 0.0
  %5349 = vmatpush1.msra.mxu0 0.0
  %5350 = vmatprep.subr.mxu0 0.0
  %5351 = vmatpush1.msra.mxu0 0.0
  %5352 = vmatprep.subr.mxu0 0.0
  %5353 = vmatpush1.msra.mxu0 0.0
  %5354 = vmatprep.subr.mxu0 0.0
  %5355 = vmatpush1.msra.mxu0 0.0
  %5356 = vmatprep.subr.mxu0 0.0
  %5357 = vmatpush1.msra.mxu0 0.0
  %5358 = vmatprep.subr.mxu0 0.0
  %5359 = vmatpush1.msra.mxu0 0.0
  %5360 = vmatprep.subr.mxu0 0.0
  %5361 = vmatpush1.msra.mxu0 0.0
  %5362 = vmatprep.subr.mxu0 0.0
  %5363 = vmatpush1.msra.mxu0 0.0
  %5364 = vmatprep.subr.mxu0 0.0
  %5365 = vmatpush1.msra.mxu0 0.0
  %5366 = vmatprep.subr.mxu0 0.0
  %5367 = vmatpush1.msra.mxu0 0.0
  %5368 = vmatprep.subr.mxu0 0.0
  %5369 = vmatpush1.msra.mxu0 0.0
  %5370 = vmatprep.subr.mxu0 0.0
  %5371 = vmatpush1.msra.mxu0 0.0
  %5372 = vmatprep.subr.mxu0 0.0
  %5373 = vmatpush1.msra.mxu0 0.0
  %5374 = vmatprep.subr.mxu0 0.0
  %5375 = vmatpush1.msra.mxu0 0.0
  %5376 = vmatprep.subr.mxu0 0.0
  %5377 = vmatpush1.msra.mxu0 0.0
  %5378 = vmatprep.subr.mxu0 0.0
  %5379 = vmatpush1.msra.mxu0 0.0
  %5380 = vmatprep.subr.mxu0 0.0
  %5381 = vmatpush1.msra.mxu0 0.0
  %5382 = vmatprep.mubr.f32.mxu0 0.0
  %5383 = vmatmul.mubr.f32.gmra.mrb[0].mxu0 %v5127
  %v5384 = vpop.f32.mrb[0].mxu0
  %v5385 = vadd.f32 %v5124, %v5384
  %v5386 = vpop.f32.mrb[0].mxu0
  %5387 = vmatprep.mubr.f32.mxu0 0.0
  %5388 = vmatmul.mubr.f32.gmra.mrb[0].mxu0 %v5130
  %v5389 = vpop.f32.mrb[0].mxu0
  %v5390 = vadd.f32 %v5124, %v5389
  %v5391 = vpop.f32.mrb[0].mxu0
  %5392 = vmatprep.mubr.f32.mxu0 0.0
  %5393 = vmatmul.mubr.f32.gmra.mrb[0].mxu0 %v5133
  %v5394 = vpop.f32.mrb[0].mxu0
  %v5395 = vadd.f32 %v5124, %v5394
  %v5396 = vpop.f32.mrb[0].mxu0
  %5397 = vmatprep.mubr.f32.mxu0 0.0
  %5398 = vmatmul.mubr.f32.gmra.mrb[0].mxu0 %v5136
  %v5399 = vpop.f32.mrb[0].mxu0
  %v5400 = vadd.f32 %v5124, %v5399
  %v5401 = vpop.f32.mrb[0].mxu0
  %5402 = vmatprep.mubr.f32.mxu0 0.0
  %5403 = vmatmul.mubr.f32.gmra.mrb[0].mxu0 %v5139
  %v5404 = vpop.f32.mrb[0].mxu0
  %v5405 = vadd.f32 %v5124, %v5404
  %v5406 = vpop.f32.mrb[0].mxu0
  %5407 = vmatprep.mubr.f32.mxu0 0.0
  %5408 = vmatmul.mubr.f32.gmra.mrb[0].mxu0 %v5142
  %v5409 = vpop.f32.mrb[0].mxu0
  %v5410 = vadd.f32 %v5124, %v5409
  %v5411 = vpop.f32.mrb[0].mxu0
  %5412 = vmatprep.mubr.f32.mxu0 0.0
  %5413 = vmatmul.mubr.f32.gmra.mrb[0].mxu0 %v5145
  %v5414 = vpop.f32.mrb[0].mxu0
  %v5415 = vadd.f32 %v5124, %v5414
  %v5416 = vpop.f32.mrb[0].mxu0
  %5417 = vmatprep.mubr.f32.mxu0 0.0
  %5418 = vmatmul.mubr.f32.gmra.mrb[0].mxu0 %v5148
  %v5419 = vpop.f32.mrb[0].mxu0
  %v5420 = vadd.f32 %v5124, %v5419
  %v5421 = vpop.f32.mrb[0].mxu0
  %5422 = vmatprep.mubr.f32.mxu0 0.0
  %5423 = vmatmul.mubr.f32.gmra.mrb[0].mxu0 %v5151
  %v5424 = vpop.f32.mrb[0].mxu0
  %v5425 = vadd.f32 %v5124, %v5424
  %v5426 = vpop.f32.mrb[0].mxu0
  %5427 = vmatprep.mubr.f32.mxu0 0.0
  %5428 = vmatmul.mubr.f32.gmra.mrb[0].mxu0 %v5154
  %v5429 = vpop.f32.mrb[0].mxu0
  %v5430 = vadd.f32 %v5124, %v5429
  %v5431 = vpop.f32.mrb[0].mxu0
  %5432 = vmatprep.mubr.f32.mxu0 0.0
  %5433 = vmatmul.mubr.f32.gmra.mrb[0].mxu0 %v5157
  %v5434 = vpop.f32.mrb[0].mxu0
  %v5435 = vadd.f32 %v5124, %v5434
  %v5436 = vpop.f32.mrb[0].mxu0
  %5437 = vmatprep.mubr.f32.mxu0 0.0
  %5438 = vmatmul.mubr.f32.gmra.mrb[0].mxu0 %v5160
  %v5439 = vpop.f32.mrb[0].mxu0
  %v5440 = vadd.f32 %v5124, %v5439
  %v5441 = vpop.f32.mrb[0].mxu0
  %5442 = vmatprep.mubr.f32.mxu0 0.0
  %5443 = vmatmul.mubr.f32.gmra.mrb[0].mxu0 %v5163
  %v5444 = vpop.f32.mrb[0].mxu0
  %v5445 = vadd.f32 %v5124, %v5444
  %v5446 = vpop.f32.mrb[0].mxu0
  %5447 = vmatprep.mubr.f32.mxu0 0.0
  %5448 = vmatmul.mubr.f32.gmra.mrb[0].mxu0 %v5166
  %v5449 = vpop.f32.mrb[0].mxu0
  %v5450 = vadd.f32 %v5124, %v5449
  %v5451 = vpop.f32.mrb[0].mxu0
  %5452 = vmatprep.mubr.f32.mxu0 0.0
  %5453 = vmatmul.mubr.f32.gmra.mrb[0].mxu0 %v5169
  %v5454 = vpop.f32.mrb[0].mxu0
  %v5455 = vadd.f32 %v5124, %v5454
  %v5456 = vpop.f32.mrb[0].mxu0
  %5457 = vmatprep.mubr.f32.mxu0 0.0
  %5458 = vmatmul.mubr.f32.gmra.mrb[0].mxu0 %v5172
  %v5459 = vpop.f32.mrb[0].mxu0
  %v5460 = vadd.f32 %v5124, %v5459
  %v5461 = vpop.f32.mrb[0].mxu0
  %5462 = vmatprep.mubr.f32.mxu0 0.0
  %5463 = vmatmul.mubr.f32.gmra.mrb[0].mxu0 %v5175
  %v5464 = vpop.f32.mrb[0].mxu0
  %v5465 = vadd.f32 %v5124, %v5464
  %v5466 = vpop.f32.mrb[0].mxu0
  %5467 = vmatprep.mubr.f32.mxu0 0.0
  %5468 = vmatmul.mubr.f32.gmra.mrb[0].mxu0 %v5178
  %v5469 = vpop.f32.mrb[0].mxu0
  %v5470 = vadd.f32 %v5124, %v5469
  %v5471 = vpop.f32.mrb[0].mxu0
  %5472 = vmatprep.mubr.f32.mxu0 0.0
  %5473 = vmatmul.mubr.f32.gmra.mrb[0].mxu0 %v5181
  %v5474 = vpop.f32.mrb[0].mxu0
  %v5475 = vadd.f32 %v5124, %v5474
  %v5476 = vpop.f32.mrb[0].mxu0
  %5477 = vmatprep.mubr.f32.mxu0 0.0
  %5478 = vmatmul.mubr.f32.gmra.mrb[0].mxu0 %v5184
  %v5479 = vpop.f32.mrb[0].mxu0
  %v5480 = vadd.f32 %v5124, %v5479
  %v5481 = vpop.f32.mrb[0].mxu0
  %5482 = vmatprep.mubr.f32.mxu0 0.0
  %5483 = vmatmul.mubr.f32.gmra.mrb[0].mxu0 %v5187
  %v5484 = vpop.f32.mrb[0].mxu0
  %v5485 = vadd.f32 %v5124, %v5484
  %v5486 = vpop.f32.mrb[0].mxu0
  %5487 = vmatprep.mubr.f32.mxu0 0.0
  %5488 = vmatmul.mubr.f32.gmra.mrb[0].mxu0 %v5190
  %v5489 = vpop.f32.mrb[0].mxu0
  %v5490 = vadd.f32 %v5124, %v5489
  %v5491 = vpop.f32.mrb[0].mxu0
  %5492 = vmatprep.mubr.f32.mxu0 0.0
  %5493 = vmatmul.mubr.f32.gmra.mrb[0].mxu0 %v5193
  %v5494 = vpop.f32.mrb[0].mxu0
  %v5495 = vadd.f32 %v5124, %v5494
  %v5496 = vpop.f32.mrb[0].mxu0
  %5497 = vmatprep.mubr.f32.mxu0 0.0
  %5498 = vmatmul.mubr.f32.gmra.mrb[0].mxu0 %v5196
  %v5499 = vpop.f32.mrb[0].mxu0
  %v5500 = vadd.f32 %v5124, %v5499
  %v5501 = vpop.f32.mrb[0].mxu0
  %5502 = vmatprep.mubr.f32.mxu0 0.0
  %5503 = vmatmul.mubr.f32.gmra.mrb[0].mxu0 %v5199
  %v5504 = vpop.f32.mrb[0].mxu0
  %v5505 = vadd.f32 %v5124, %v5504
  %v5506 = vpop.f32.mrb[0].mxu0
  %5507 = vmatprep.mubr.f32.mxu0 0.0
  %5508 = vmatmul.mubr.f32.gmra.mrb[0].mxu0 %v5202
  %v5509 = vpop.f32.mrb[0].mxu0
  %v5510 = vadd.f32 %v5124, %v5509
  %v5511 = vpop.f32.mrb[0].mxu0
  %5512 = vmatprep.mubr.f32.mxu0 0.0
  %5513 = vmatmul.mubr.f32.gmra.mrb[0].mxu0 %v5205
  %v5514 = vpop.f32.mrb[0].mxu0
  %v5515 = vadd.f32 %v5124, %v5514
  %v5516 = vpop.f32.mrb[0].mxu0
  %5517 = vmatprep.mubr.f32.mxu0 0.0
  %5518 = vmatmul.mubr.f32.gmra.mrb[0].mxu0 %v5208
  %v5519 = vpop.f32.mrb[0].mxu0
  %v5520 = vadd.f32 %v5124, %v5519
  %v5521 = vpop.f32.mrb[0].mxu0
  %5522 = vmatprep.mubr.f32.mxu0 0.0
  %5523 = vmatmul.mubr.f32.gmra.mrb[0].mxu0 %v5211
  %v5524 = vpop.f32.mrb[0].mxu0
  %v5525 = vadd.f32 %v5124, %v5524
  %v5526 = vpop.f32.mrb[0].mxu0
  %5527 = vmatprep.mubr.f32.mxu0 0.0
  %5528 = vmatmul.mubr.f32.gmra.mrb[0].mxu0 %v5214
  %v5529 = vpop.f32.mrb[0].mxu0
  %v5530 = vadd.f32 %v5124, %v5529
  %v5531 = vpop.f32.mrb[0].mxu0
  %5532 = vmatprep.mubr.f32.mxu0 0.0
  %5533 = vmatmul.mubr.f32.gmra.mrb[0].mxu0 %v5217
  %v5534 = vpop.f32.mrb[0].mxu0
  %v5535 = vadd.f32 %v5124, %v5534
  %v5536 = vpop.f32.mrb[0].mxu0
  %5537 = vmatprep.mubr.f32.mxu0 0.0
  %5538 = vmatmul.mubr.f32.gmra.mrb[0].mxu0 %v5220
  %v5539 = vpop.f32.mrb[0].mxu0
  %v5540 = vadd.f32 %v5124, %v5539
  %v5541 = vpop.f32.mrb[0].mxu0
  %5542 = vmatprep.mubr.f32.mxu0 0.0
  %5543 = vmatmul.mubr.f32.gmra.mrb[0].mxu0 %v5223
  %v5544 = vpop.f32.mrb[0].mxu0
  %v5545 = vadd.f32 %v5124, %v5544
  %v5546 = vpop.f32.mrb[0].mxu0
  %5547 = vmatprep.mubr.f32.mxu0 0.0
  %5548 = vmatmul.mubr.f32.gmra.mrb[0].mxu0 %v5226
  %v5549 = vpop.f32.mrb[0].mxu0
  %v5550 = vadd.f32 %v5124, %v5549
  %v5551 = vpop.f32.mrb[0].mxu0
  %5552 = vmatprep.mubr.f32.mxu0 0.0
  %5553 = vmatmul.mubr.f32.gmra.mrb[0].mxu0 %v5229
  %v5554 = vpop.f32.mrb[0].mxu0
  %v5555 = vadd.f32 %v5124, %v5554
  %v5556 = vpop.f32.mrb[0].mxu0
  %5557 = vmatprep.mubr.f32.mxu0 0.0
  %5558 = vmatmul.mubr.f32.gmra.mrb[0].mxu0 %v5232
  %v5559 = vpop.f32.mrb[0].mxu0
  %v5560 = vadd.f32 %v5124, %v5559
  %v5561 = vpop.f32.mrb[0].mxu0
  %5562 = vmatprep.mubr.f32.mxu0 0.0
  %5563 = vmatmul.mubr.f32.gmra.mrb[0].mxu0 %v5235
  %v5564 = vpop.f32.mrb[0].mxu0
  %v5565 = vadd.f32 %v5124, %v5564
  %v5566 = vpop.f32.mrb[0].mxu0
  %5567 = vmatprep.mubr.f32.mxu0 0.0
  %5568 = vmatmul.mubr.f32.gmra.mrb[0].mxu0 %v5238
  %v5569 = vpop.f32.mrb[0].mxu0
  %v5570 = vadd.f32 %v5124, %v5569
  %v5571 = vpop.f32.mrb[0].mxu0
  %5572 = vmatprep.mubr.f32.mxu0 0.0
  %5573 = vmatmul.mubr.f32.gmra.mrb[0].mxu0 %v5241
  %v5574 = vpop.f32.mrb[0].mxu0
  %v5575 = vadd.f32 %v5124, %v5574
  %v5576 = vpop.f32.mrb[0].mxu0
  %5577 = vmatprep.mubr.f32.mxu0 0.0
  %5578 = vmatmul.mubr.f32.gmra.mrb[0].mxu0 %v5244
  %v5579 = vpop.f32.mrb[0].mxu0
  %v5580 = vadd.f32 %v5124, %v5579
  %v5581 = vpop.f32.mrb[0].mxu0
  %5582 = vmatprep.mubr.f32.mxu0 0.0
  %5583 = vmatmul.mubr.f32.gmra.mrb[0].mxu0 %v5247
  %v5584 = vpop.f32.mrb[0].mxu0
  %v5585 = vadd.f32 %v5124, %v5584
  %v5586 = vpop.f32.mrb[0].mxu0
  %5587 = vmatprep.mubr.f32.mxu0 0.0
  %5588 = vmatmul.mubr.f32.gmra.mrb[0].mxu0 %v5250
  %v5589 = vpop.f32.mrb[0].mxu0
  %v5590 = vadd.f32 %v5124, %v5589
  %v5591 = vpop.f32.mrb[0].mxu0
  %5592 = vmatprep.mubr.f32.mxu0 0.0
  %5593 = vmatmul.mubr.f32.gmra.mrb[0].mxu0 %v5253
  %v5594 = vpop.f32.mrb[0].mxu0
  %v5595 = vadd.f32 %v5124, %v5594
  %v5596 = vpop.f32.mrb[0].mxu0
  %5597 = vmatprep.mubr.f32.mxu0 0.0
  %5598 = vmatmul.mubr.f32.gmra.mrb[0].mxu0 %v5256
  %v5599 = vpop.f32.mrb[0].mxu0
  %v5600 = vadd.f32 %v5124, %v5599
  %v5601 = vpop.f32.mrb[0].mxu0
  %5602 = vmatprep.mubr.f32.mxu0 0.0
  %5603 = vmatmul.mubr.f32.gmra.mrb[0].mxu0 %v5259
  %v5604 = vpop.f32.mrb[0].mxu0
  %v5605 = vadd.f32 %v5124, %v5604
  %v5606 = vpop.f32.mrb[0].mxu0
  %5607 = vmatprep.mubr.f32.mxu0 0.0
  %5608 = vmatmul.mubr.f32.gmra.mrb[0].mxu0 %v5262
  %v5609 = vpop.f32.mrb[0].mxu0
  %v5610 = vadd.f32 %v5124, %v5609
  %v5611 = vpop.f32.mrb[0].mxu0
  %5612 = vmatprep.mubr.f32.mxu0 0.0
  %5613 = vmatmul.mubr.f32.gmra.mrb[0].mxu0 %v5265
  %v5614 = vpop.f32.mrb[0].mxu0
  %v5615 = vadd.f32 %v5124, %v5614
  %v5616 = vpop.f32.mrb[0].mxu0
  %5617 = vmatprep.mubr.f32.mxu0 0.0
  %5618 = vmatmul.mubr.f32.gmra.mrb[0].mxu0 %v5268
  %v5619 = vpop.f32.mrb[0].mxu0
  %v5620 = vadd.f32 %v5124, %v5619
  %v5621 = vpop.f32.mrb[0].mxu0
  %5622 = vmatprep.mubr.f32.mxu0 0.0
  %5623 = vmatmul.mubr.f32.gmra.mrb[0].mxu0 %v5271
  %v5624 = vpop.f32.mrb[0].mxu0
  %v5625 = vadd.f32 %v5124, %v5624
  %v5626 = vpop.f32.mrb[0].mxu0
  %5627 = vmatprep.mubr.f32.mxu0 0.0
  %5628 = vmatmul.mubr.f32.gmra.mrb[0].mxu0 %v5274
  %v5629 = vpop.f32.mrb[0].mxu0
  %v5630 = vadd.f32 %v5124, %v5629
  %v5631 = vpop.f32.mrb[0].mxu0
  %5632 = vmatprep.mubr.f32.mxu0 0.0
  %5633 = vmatmul.mubr.f32.gmra.mrb[0].mxu0 %v5277
  %v5634 = vpop.f32.mrb[0].mxu0
  %v5635 = vadd.f32 %v5124, %v5634
  %v5636 = vpop.f32.mrb[0].mxu0
  %5637 = vmatprep.mubr.f32.mxu0 0.0
  %5638 = vmatmul.mubr.f32.gmra.mrb[0].mxu0 %v5280
  %v5639 = vpop.f32.mrb[0].mxu0
  %v5640 = vadd.f32 %v5124, %v5639
  %v5641 = vpop.f32.mrb[0].mxu0
  %5642 = vmatprep.mubr.f32.mxu0 0.0
  %5643 = vmatmul.mubr.f32.gmra.mrb[0].mxu0 %v5283
  %v5644 = vpop.f32.mrb[0].mxu0
  %v5645 = vadd.f32 %v5124, %v5644
  %v5646 = vpop.f32.mrb[0].mxu0
  %5647 = vmatprep.mubr.f32.mxu0 0.0
  %5648 = vmatmul.mubr.f32.gmra.mrb[0].mxu0 %v5286
  %v5649 = vpop.f32.mrb[0].mxu0
  %v5650 = vadd.f32 %v5124, %v5649
  %v5651 = vpop.f32.mrb[0].mxu0
  %5652 = vmatprep.mubr.f32.mxu0 0.0
  %5653 = vmatmul.mubr.f32.gmra.mrb[0].mxu0 %v5289
  %v5654 = vpop.f32.mrb[0].mxu0
  %v5655 = vadd.f32 %v5124, %v5654
  %v5656 = vpop.f32.mrb[0].mxu0
  %5657 = vmatprep.mubr.f32.mxu0 0.0
  %5658 = vmatmul.mubr.f32.gmra.mrb[0].mxu0 %v5292
  %v5659 = vpop.f32.mrb[0].mxu0
  %v5660 = vadd.f32 %v5124, %v5659
  %v5661 = vpop.f32.mrb[0].mxu0
  %5662 = vmatprep.mubr.f32.mxu0 0.0
  %5663 = vmatmul.mubr.f32.gmra.mrb[0].mxu0 %v5295
  %v5664 = vpop.f32.mrb[0].mxu0
  %v5665 = vadd.f32 %v5124, %v5664
  %v5666 = vpop.f32.mrb[0].mxu0
  %5667 = vmatprep.mubr.f32.mxu0 0.0
  %5668 = vmatmul.mubr.f32.gmra.mrb[0].mxu0 %v5298
  %v5669 = vpop.f32.mrb[0].mxu0
  %v5670 = vadd.f32 %v5124, %v5669
  %v5671 = vpop.f32.mrb[0].mxu0
  %5672 = vmatprep.mubr.f32.mxu0 0.0
  %5673 = vmatmul.mubr.f32.gmra.mrb[0].mxu0 %v5301
  %v5674 = vpop.f32.mrb[0].mxu0
  %v5675 = vadd.f32 %v5124, %v5674
  %v5676 = vpop.f32.mrb[0].mxu0
  %5677 = vmatprep.mubr.f32.mxu0 0.0
  %5678 = vmatmul.mubr.f32.gmra.mrb[0].mxu0 %v5304
  %v5679 = vpop.f32.mrb[0].mxu0
  %v5680 = vadd.f32 %v5124, %v5679
  %v5681 = vpop.f32.mrb[0].mxu0
  %5682 = vmatprep.mubr.f32.mxu0 0.0
  %5683 = vmatmul.mubr.f32.gmra.mrb[0].mxu0 %v5307
  %v5684 = vpop.f32.mrb[0].mxu0
  %v5685 = vadd.f32 %v5124, %v5684
  %v5686 = vpop.f32.mrb[0].mxu0
  %5687 = vmatprep.mubr.f32.mxu0 0.0
  %5688 = vmatmul.mubr.f32.gmra.mrb[0].mxu0 %v5310
  %v5689 = vpop.f32.mrb[0].mxu0
  %v5690 = vadd.f32 %v5124, %v5689
  %v5691 = vpop.f32.mrb[0].mxu0
  %5692 = vmatprep.mubr.f32.mxu0 0.0
  %5693 = vmatmul.mubr.f32.gmra.mrb[0].mxu0 %v5313
  %v5694 = vpop.f32.mrb[0].mxu0
  %v5695 = vadd.f32 %v5124, %v5694
  %v5696 = vpop.f32.mrb[0].mxu0
  %5697 = vmatprep.mubr.f32.mxu0 0.0
  %5698 = vmatmul.mubr.f32.gmra.mrb[0].mxu0 %v5316
  %v5699 = vpop.f32.mrb[0].mxu0
  %v5700 = vadd.f32 %v5124, %v5699
  %v5701 = vpop.f32.mrb[0].mxu0
  %5702 = vdwg.mxu0
  %5703 = vst.msk [vmem:[%s9] sm:$0xff] %vm105, %v5385
  %5704 = vst.msk [vmem:[%s9 + $0x8] sm:$0xff] %vm105, %v5390
  %5705 = vst.msk [vmem:[%s9 + $0x10] sm:$0xff] %vm105, %v5395
  %5706 = vst.msk [vmem:[%s9 + $0x18] sm:$0xff] %vm105, %v5400
  %5707 = vst.msk [vmem:[%s9 + $0x20] sm:$0xff] %vm105, %v5405
  %5708 = vst.msk [vmem:[%s9 + $0x28] sm:$0xff] %vm105, %v5410
  %5709 = vst.msk [vmem:[%s9 + $0x30] sm:$0xff] %vm105, %v5415
  %5710 = vst.msk [vmem:[%s9 + $0x38] sm:$0xff] %vm105, %v5420
  %5711 = vst.msk [vmem:[%s9 + $0x40] sm:$0xff] %vm105, %v5425
  %5712 = vst.msk [vmem:[%s9 + $0x48] sm:$0xff] %vm105, %v5430
  %5713 = vst.msk [vmem:[%s9 + $0x50] sm:$0xff] %vm105, %v5435
  %5714 = vst.msk [vmem:[%s9 + $0x58] sm:$0xff] %vm105, %v5440
  %5715 = vst.msk [vmem:[%s9 + $0x60] sm:$0xff] %vm105, %v5445
  %5716 = vst.msk [vmem:[%s9 + $0x68] sm:$0xff] %vm105, %v5450
  %5717 = vst.msk [vmem:[%s9 + $0x70] sm:$0xff] %vm105, %v5455
  %5718 = vst.msk [vmem:[%s9 + $0x78] sm:$0xff] %vm105, %v5460
  %5719 = vst.msk [vmem:[%s9 + $0x80] sm:$0xff] %vm105, %v5465
  %5720 = vst.msk [vmem:[%s9 + $0x88] sm:$0xff] %vm105, %v5470
  %5721 = vst.msk [vmem:[%s9 + $0x90] sm:$0xff] %vm105, %v5475
  %5722 = vst.msk [vmem:[%s9 + $0x98] sm:$0xff] %vm105, %v5480
  %5723 = vst.msk [vmem:[%s9 + $0xa0] sm:$0xff] %vm105, %v5485
  %5724 = vst.msk [vmem:[%s9 + $0xa8] sm:$0xff] %vm105, %v5490
  %5725 = vst.msk [vmem:[%s9 + $0xb0] sm:$0xff] %vm105, %v5495
  %5726 = vst.msk [vmem:[%s9 + $0xb8] sm:$0xff] %vm105, %v5500
  %5727 = vst.msk [vmem:[%s9 + $0xc0] sm:$0xff] %vm105, %v5505
  %5728 = vst.msk [vmem:[%s9 + $0xc8] sm:$0xff] %vm105, %v5510
  %5729 = vst.msk [vmem:[%s9 + $0xd0] sm:$0xff] %vm105, %v5515
  %5730 = vst.msk [vmem:[%s9 + $0xd8] sm:$0xff] %vm105, %v5520
  %5731 = vst.msk [vmem:[%s9 + $0xe0] sm:$0xff] %vm105, %v5525
  %5732 = vst.msk [vmem:[%s9 + $0xe8] sm:$0xff] %vm105, %v5530
  %5733 = vst.msk [vmem:[%s9 + $0xf0] sm:$0xff] %vm105, %v5535
  %5734 = vst.msk [vmem:[%s9 + $0xf8] sm:$0xff] %vm105, %v5540
  %5735 = vst.msk [vmem:[%s9 + $0x100] sm:$0xff] %vm105, %v5545
  %5736 = vst.msk [vmem:[%s9 + $0x108] sm:$0xff] %vm105, %v5550
  %5737 = vst.msk [vmem:[%s9 + $0x110] sm:$0xff] %vm105, %v5555
  %5738 = vst.msk [vmem:[%s9 + $0x118] sm:$0xff] %vm105, %v5560
  %5739 = vst.msk [vmem:[%s9 + $0x120] sm:$0xff] %vm105, %v5565
  %5740 = vst.msk [vmem:[%s9 + $0x128] sm:$0xff] %vm105, %v5570
  %5741 = vst.msk [vmem:[%s9 + $0x130] sm:$0xff] %vm105, %v5575
  %5742 = vst.msk [vmem:[%s9 + $0x138] sm:$0xff] %vm105, %v5580
  %5743 = vst.msk [vmem:[%s9 + $0x140] sm:$0xff] %vm105, %v5585
  %5744 = vst.msk [vmem:[%s9 + $0x148] sm:$0xff] %vm105, %v5590
  %5745 = vst.msk [vmem:[%s9 + $0x150] sm:$0xff] %vm105, %v5595
  %5746 = vst.msk [vmem:[%s9 + $0x158] sm:$0xff] %vm105, %v5600
  %5747 = vst.msk [vmem:[%s9 + $0x160] sm:$0xff] %vm105, %v5605
  %5748 = vst.msk [vmem:[%s9 + $0x168] sm:$0xff] %vm105, %v5610
  %5749 = vst.msk [vmem:[%s9 + $0x170] sm:$0xff] %vm105, %v5615
  %5750 = vst.msk [vmem:[%s9 + $0x178] sm:$0xff] %vm105, %v5620
  %5751 = vst.msk [vmem:[%s9 + $0x180] sm:$0xff] %vm105, %v5625
  %5752 = vst.msk [vmem:[%s9 + $0x188] sm:$0xff] %vm105, %v5630
  %5753 = vst.msk [vmem:[%s9 + $0x190] sm:$0xff] %vm105, %v5635
  %5754 = vst.msk [vmem:[%s9 + $0x198] sm:$0xff] %vm105, %v5640
  %5755 = vst.msk [vmem:[%s9 + $0x1a0] sm:$0xff] %vm105, %v5645
  %5756 = vst.msk [vmem:[%s9 + $0x1a8] sm:$0xff] %vm105, %v5650
  %5757 = vst.msk [vmem:[%s9 + $0x1b0] sm:$0xff] %vm105, %v5655
  %5758 = vst.msk [vmem:[%s9 + $0x1b8] sm:$0xff] %vm105, %v5660
  %5759 = vst.msk [vmem:[%s9 + $0x1c0] sm:$0xff] %vm105, %v5665
  %5760 = vst.msk [vmem:[%s9 + $0x1c8] sm:$0xff] %vm105, %v5670
  %5761 = vst.msk [vmem:[%s9 + $0x1d0] sm:$0xff] %vm105, %v5675
  %5762 = vst.msk [vmem:[%s9 + $0x1d8] sm:$0xff] %vm105, %v5680
  %5763 = vst.msk [vmem:[%s9 + $0x1e0] sm:$0xff] %vm105, %v5685
  %5764 = vst.msk [vmem:[%s9 + $0x1e8] sm:$0xff] %vm105, %v5690
  %5765 = vst.msk [vmem:[%s9 + $0x1f0] sm:$0xff] %vm105, %v5695
  %5766 = vst.msk [vmem:[%s9 + $0x1f8] sm:$0xff] %vm105, %v5700
  // Predicated region
  $region38: #{tpu_custom_call.1} parent=0 // pred_check
    _
  $region39: #{tpu_custom_call.1} parent=0 // pred_check_branch
    %5768 = sbr.rel (0) target = $region41
  $region40: #{tpu_custom_call.1} parent=0 // pred_region
    _
  $region41: #{tpu_custom_call.1} parent=0 // pred_fallthru
    _
  // Predicated region
  $region42: #{tpu_custom_call.1} parent=0 // pred_check
    _
  $region43: #{tpu_custom_call.1} parent=0 // pred_check_branch
    %5770 = sbr.rel (0) target = $region45
  $region44: #{tpu_custom_call.1} parent=0 // pred_region
    _
  $region45: #{tpu_custom_call.1} parent=0 // pred_fallthru
    _

</llo_original>
